<compile_context>
chip_gen: v7x
topology: tpu7x:2x2x1
jax: 0.10.0
libtpu: 0.0.40
codegen_flags: <defaults>
</compile_context>

<pallas_src>
import math
import numpy as np
import jax
import jax.numpy as jnp
from jax.experimental import pallas as pl
from jax.experimental.pallas import tpu as pltpu

# ----------------------------- configuration ------------------------------
SEQ = 8            # number of tokens (q + columns + tables)
HIDDEN = 32        # hidden_size
NUM_HEADS = 4
D_K = HIDDEN // NUM_HEADS
FF = 4 * HIDDEN    # ff_size = hidden * 4
NUM_LAYERS = 2
NUM_RELATIONS = 10 # len(relations2id)
EPS = 1e-5         # nn.LayerNorm default eps

# ---- packed f32 weight slab layout: (NUM_LAYERS, SLAB_ROWS, 128), lane-dense ----
R_WQKVO = 0                     # rows  0:32   lanes 0:96 [wq|wk|wv], lanes 96:128 wo
R_W1 = R_WQKVO + HIDDEN         # rows 32:64   lanes 0:128 w1
R_W2 = R_W1 + HIDDEN            # rows 64:192  lanes 0:32  w2
R_VEC = R_W2 + FF               # rows 192:196 vector rows:
                                #   +0 : [ln1g | ln1b | ln2g | ln2b]
                                #   +1 : [bq | bk | bv | bo]
                                #   +2 : [b1]
                                #   +3 : [b2 | final_g | final_b | pad]  (final LN in layer 0)
R_RELKT = 200                   # rows 200:208 lanes 0:R   rel_k_emb.T  (D_K, R)
R_RELV = 208                    # rows 208:218 lanes 0:DK  rel_v_emb    (R, D_K)
SLAB_ROWS = 224                 # padded to a multiple of 8 sublanes


# ------------------------------ shared math --------------------------------
def _layernorm(x, g, b):
    mean = jnp.mean(x, axis=-1, keepdims=True)
    var = jnp.mean((x - mean) ** 2, axis=-1, keepdims=True)
    return (x - mean) * jax.lax.rsqrt(var + EPS) * g + b


# --------------------------- fused forward kernel ---------------------------
def after_rat_kernel(mask_ref, x_ref, w_ref, out_ref):
    x = x_ref[...]                       # (S, H)
    mask_q = mask_ref[...]               # (S, R, S) f32 one-hot: mask_q[q, r, k] = (rel[q,k]==r)
    scale = 1.0 / math.sqrt(D_K)

    for l in range(NUM_LAYERS):          # static unroll over layers
        # ---- static row-block views of the packed slab (full-lane loads, lane slicing on values)
        wqkvo = w_ref[l, R_WQKVO:R_WQKVO + HIDDEN, :]                   # (32, 128)
        w1 = w_ref[l, R_W1:R_W1 + HIDDEN, :]                            # (32, 128)
        w2 = w_ref[l, R_W2:R_W2 + FF, :][:, 0:HIDDEN]                   # (128, 32)
        ln_row = w_ref[l, R_VEC + 0:R_VEC + 1, :]                       # (1, 128)
        b_row = w_ref[l, R_VEC + 1:R_VEC + 2, :]                        # (1, 128)
        b1 = w_ref[l, R_VEC + 2:R_VEC + 3, :]                           # (1, 128)
        b2 = w_ref[l, R_VEC + 3:R_VEC + 4, :][:, 0:HIDDEN]              # (1, 32)
        relkT = w_ref[l, R_RELKT:R_RELKT + D_K, :][:, 0:NUM_RELATIONS]  # (DK, R)
        relv = w_ref[l, R_RELV:R_RELV + NUM_RELATIONS, :][:, 0:D_K]     # (R, DK)

        wqkv = wqkvo[:, 0:3 * HIDDEN]                                   # (32, 96)
        wo = wqkvo[:, 3 * HIDDEN:4 * HIDDEN]                            # (32, 32)
        ln1g, ln1b = ln_row[:, 0:32], ln_row[:, 32:64]
        ln2g, ln2b = ln_row[:, 64:96], ln_row[:, 96:128]
        bqkv, bo = b_row[:, 0:3 * HIDDEN], b_row[:, 3 * HIDDEN:4 * HIDDEN]

        # ---- sublayer 0: relation-aware multi-head self-attention (pre-norm) ----
        xn = _layernorm(x, ln1g, ln1b)                                              # (S, H)
        qkv = jnp.dot(xn, wqkv, preferred_element_type=jnp.float32) + bqkv          # (S, 3H): 1 push
        q3 = jnp.stack([qkv[:, h * D_K:(h + 1) * D_K]
                        for h in range(NUM_HEADS)])                                  # (NH, S, DK)
        k3 = jnp.stack([qkv[:, HIDDEN + h * D_K:HIDDEN + (h + 1) * D_K]
                        for h in range(NUM_HEADS)])
        v3 = jnp.stack([qkv[:, 2 * HIDDEN + h * D_K:2 * HIDDEN + (h + 1) * D_K]
                        for h in range(NUM_HEADS)])

        # content scores (batch over heads)
        scores = jnp.einsum('hqd,hkd->hqk', q3, k3,
                            preferred_element_type=jnp.float32)                      # (NH, S, S)

        # relation logits: one flat matmul against rel_k^T, then a stacked-mask contraction
        qr = jnp.einsum('hqd,dr->hqr', q3, relkT,
                        preferred_element_type=jnp.float32)                          # (NH, S, R): 1 push
        qr_q = jnp.swapaxes(qr, 0, 1)                                                # (S, NH, R)
        rel_q = jnp.einsum('qhr,qrk->qhk', qr_q, mask_q,
                           preferred_element_type=jnp.float32)                       # (S, NH, S)
        rel_logits = jnp.swapaxes(rel_q, 0, 1)                                       # (NH, S, S)

        scores = (scores + rel_logits) * scale
        scores = scores - jnp.max(scores, axis=-1, keepdims=True)
        e = jnp.exp(scores)
        attn = e * pl.reciprocal(jnp.sum(e, axis=-1, keepdims=True), approx=True)    # (NH, S, S)

        # values: attn @ v  +  (attn "@" rel_v) via stacked-mask contraction
        ctx = jnp.einsum('hqk,hkd->hqd', attn, v3,
                         preferred_element_type=jnp.float32)                         # (NH, S, DK)
        attn_q = jnp.swapaxes(attn, 0, 1)                                            # (S, NH, S)
        ar_q = jnp.einsum('qhk,qrk->qhr', attn_q, mask_q,
                          preferred_element_type=jnp.float32)                        # (S, NH, R)
        ctx_rel_q = jnp.einsum('qhr,rd->qhd', ar_q, relv,
                               preferred_element_type=jnp.float32)                   # (S, NH, DK): 1 push
        heads = ctx + jnp.swapaxes(ctx_rel_q, 0, 1)                                  # (NH, S, DK)

        # head concat folded into a single output matmul
        heads2d = jnp.concatenate([heads[h] for h in range(NUM_HEADS)], axis=-1)     # (S, NH*DK)
        attn_out = jnp.dot(heads2d, wo, preferred_element_type=jnp.float32) + bo     # (S, H): 1 push
        x = x + attn_out                      # residual (dropout = identity in eval mode)

        # ---- sublayer 1: position-wise feed forward (pre-norm) ----
        xn2 = _layernorm(x, ln2g, ln2b)
        hmid = jnp.maximum(
            jnp.dot(xn2, w1, preferred_element_type=jnp.float32) + b1, 0.0)          # (S, FF)
        x = x + jnp.dot(hmid, w2, preferred_element_type=jnp.float32) + b2

    # ---- final encoder LayerNorm (params stored in layer 0's vector row) ----
    vfin = w_ref[0, R_VEC + 3:R_VEC + 4, :]
    fg, fb = vfin[:, HIDDEN:2 * HIDDEN], vfin[:, 2 * HIDDEN:3 * HIDDEN]
    out_ref[...] = _layernorm(x, fg, fb)


# ------------------------------ JAX wrapper ---------------------------------
def after_rat_forward(x, relation, c_base, t_base, wslab):
    """x: (1, S, H) float32, relation: (S, S) int32 relation ids, wslab: (L, 224, 128) f32."""
    # relation one-hot mask stack, built host-side: mask_q[q, r, k] = (relation[q, k] == r)
    mask_q = (relation[:, None, :] ==
              jnp.arange(NUM_RELATIONS, dtype=relation.dtype)[None, :, None]
              ).astype(jnp.float32)                                     # (S, R, S)
    enc = pl.pallas_call(
        after_rat_kernel,
        out_shape=jax.ShapeDtypeStruct((SEQ, HIDDEN), jnp.float32),
        in_specs=[pl.BlockSpec(memory_space=pltpu.MemorySpace.VMEM)] * 3,
        out_specs=pl.BlockSpec(memory_space=pltpu.MemorySpace.VMEM),
    )(mask_q, x[0], wslab)[None]                                         # (1, S, H)
    q_enc_new = enc[:, :c_base]
    c_enc_new = enc[:, c_base:t_base]
    t_enc_new = enc[:, t_base:]
    return q_enc_new, c_enc_new, t_enc_new


# --------------------------- deterministic params ---------------------------
def _linear(key, fan_in, fan_out):
    lim = 1.0 / math.sqrt(fan_in)
    kw, kb = jax.random.split(key)
    w = jax.random.uniform(kw, (fan_in, fan_out), jnp.float32, -lim, lim)
    b = jax.random.uniform(kb, (1, fan_out), jnp.float32, -lim, lim)
    return w, b


def init_params(key):
    keys = jax.random.split(key, NUM_LAYERS)
    layers = []
    for l in range(NUM_LAYERS):
        ks = jax.random.split(keys[l], 8)
        wq, bq = _linear(ks[0], HIDDEN, HIDDEN)
        wk, bk = _linear(ks[1], HIDDEN, HIDDEN)
        wv, bv = _linear(ks[2], HIDDEN, HIDDEN)
        wo, bo = _linear(ks[3], HIDDEN, HIDDEN)
        w1, b1 = _linear(ks[4], HIDDEN, FF)
        w2, b2 = _linear(ks[5], FF, HIDDEN)
        rel_k_emb = 0.1 * jax.random.normal(ks[6], (NUM_RELATIONS, D_K), jnp.float32)
        rel_v_emb = 0.1 * jax.random.normal(ks[7], (NUM_RELATIONS, D_K), jnp.float32)
        layers.append(dict(
            wq=wq, bq=bq, wk=wk, bk=bk, wv=wv, bv=bv, wo=wo, bo=bo,
            w1=w1, b1=b1, w2=w2, b2=b2,
            ln1g=jnp.ones((1, HIDDEN), jnp.float32),
            ln1b=jnp.zeros((1, HIDDEN), jnp.float32),
            ln2g=jnp.ones((1, HIDDEN), jnp.float32),
            ln2b=jnp.zeros((1, HIDDEN), jnp.float32),
            rel_k_emb=rel_k_emb, rel_v_emb=rel_v_emb,
        ))
    return dict(
        layers=layers,
        final_g=jnp.ones((1, HIDDEN), jnp.float32),
        final_b=jnp.zeros((1, HIDDEN), jnp.float32),
    )


def pack_params(params):
    """Pack ALL weights/biases/LN/rel tables into one lane-dense (L, 224, 128) f32 slab."""
    slab = np.zeros((NUM_LAYERS, SLAB_ROWS, 128), np.float32)
    for l, lp in enumerate(params["layers"]):
        wqkv = np.concatenate([np.asarray(lp["wq"]), np.asarray(lp["wk"]),
                               np.asarray(lp["wv"])], axis=1)                 # (32, 96)
        slab[l, R_WQKVO:R_WQKVO + HIDDEN, 0:3 * HIDDEN] = wqkv
        slab[l, R_WQKVO:R_WQKVO + HIDDEN, 3 * HIDDEN:4 * HIDDEN] = np.asarray(lp["wo"])
        slab[l, R_W1:R_W1 + HIDDEN, 0:FF] = np.asarray(lp["w1"])
        slab[l, R_W2:R_W2 + FF, 0:HIDDEN] = np.asarray(lp["w2"])
        slab[l, R_VEC + 0, 0:32] = np.asarray(lp["ln1g"][0])
        slab[l, R_VEC + 0, 32:64] = np.asarray(lp["ln1b"][0])
        slab[l, R_VEC + 0, 64:96] = np.asarray(lp["ln2g"][0])
        slab[l, R_VEC + 0, 96:128] = np.asarray(lp["ln2b"][0])
        bqkv = np.concatenate([np.asarray(lp["bq"]), np.asarray(lp["bk"]),
                               np.asarray(lp["bv"])], axis=1)[0]              # (96,)
        slab[l, R_VEC + 1, 0:3 * HIDDEN] = bqkv
        slab[l, R_VEC + 1, 3 * HIDDEN:4 * HIDDEN] = np.asarray(lp["bo"][0])
        slab[l, R_VEC + 2, 0:FF] = np.asarray(lp["b1"][0])
        slab[l, R_VEC + 3, 0:HIDDEN] = np.asarray(lp["b2"][0])
        slab[l, R_RELKT:R_RELKT + D_K, 0:NUM_RELATIONS] = np.asarray(lp["rel_k_emb"]).T
        slab[l, R_RELV:R_RELV + NUM_RELATIONS, 0:D_K] = np.asarray(lp["rel_v_emb"])
    # final encoder LayerNorm params stored once, in layer 0's vector row 3
    slab[0, R_VEC + 3, HIDDEN:2 * HIDDEN] = np.asarray(params["final_g"][0])
    slab[0, R_VEC + 3, 2 * HIDDEN:3 * HIDDEN] = np.asarray(params["final_b"][0])
    return jnp.asarray(slab)


# ----------------------- pure-JAX reference (validation) --------------------
def reference_forward(x, relation, params):
    h = x[0]
    for lp in params["layers"]:
        relk = lp["rel_k_emb"][relation]                  # (S, S, DK)
        relv = lp["rel_v_emb"][relation]
        xn = _layernorm(h, lp["ln1g"], lp["ln1b"])
        q = xn @ lp["wq"] + lp["bq"]
        k = xn @ lp["wk"] + lp["bk"]
        v = xn @ lp["wv"] + lp["bv"]
        heads = []
        for hd in range(NUM_HEADS):
            sl = slice(hd * D_K, (hd + 1) * D_K)
            qh, kh, vh = q[:, sl], k[:, sl], v[:, sl]
            sc = (qh @ kh.T + jnp.einsum('qd,qkd->qk', qh, relk)) / math.sqrt(D_K)
            attn = jax.nn.softmax(sc, axis=-1)
            heads.append(attn @ vh + jnp.einsum('qk,qkd->qd', attn, relv))
        h = h + jnp.concatenate(heads, axis=-1) @ lp["wo"] + lp["bo"]
        xn2 = _layernorm(h, lp["ln2g"], lp["ln2b"])
        h = h + jnp.maximum(xn2 @ lp["w1"] + lp["b1"], 0.0) @ lp["w2"] + lp["b2"]
    return _layernorm(h, params["final_g"], params["final_b"])[None]


# ---------------------------------- main ------------------------------------
if __name__ == "__main__":
    key = jax.random.PRNGKey(0)
    k_x, k_rel, k_p = jax.random.split(key, 3)

    x = jax.random.normal(k_x, (1, SEQ, HIDDEN), jnp.float32)            # (batch=1, seq, hidden)
    relation = jax.random.randint(k_rel, (SEQ, SEQ), 0, NUM_RELATIONS, jnp.int32)
    params = init_params(k_p)
    wslab = pack_params(params)

    c_base, t_base = 3, 5

    q_enc, c_enc, t_enc = after_rat_forward(x, relation, c_base, t_base, wslab)
    jax.block_until_ready((q_enc, c_enc, t_enc))

    assert q_enc.shape == (1, c_base, HIDDEN)
    assert c_enc.shape == (1, t_base - c_base, HIDDEN)
    assert t_enc.shape == (1, SEQ - t_base, HIDDEN)
    assert jnp.all(jnp.isfinite(q_enc)) and jnp.all(jnp.isfinite(c_enc)) and jnp.all(jnp.isfinite(t_enc))

    # cross-check the fused kernel against the straightforward JAX reference
    enc_kernel = jnp.concatenate([q_enc, c_enc, t_enc], axis=1)
    enc_ref = reference_forward(x, relation, params)
    assert jnp.allclose(enc_kernel, enc_ref, atol=5e-2, rtol=5e-2), (
        float(jnp.max(jnp.abs(enc_kernel - enc_ref))))

    print("KERNEL_OK")
</pallas_src>

<mosaic_0001>
module attributes {stable_mosaic.version = 11 : i64} {
  func.func @after_rat_kernel(%arg0: memref<8x10x8xf32, #tpu.memory_space<vmem>>, %arg1: memref<8x32xf32, #tpu.memory_space<vmem>>, %arg2: memref<2x224x128xf32, #tpu.memory_space<vmem>>, %arg3: memref<8x32xf32, #tpu.memory_space<vmem>>) attributes {dimension_semantics = [], scalar_prefetch = 0 : i64, scratch_operands = 0 : i64, tpu.core_type = #tpu.core_type<tc>} {
    %c0 = arith.constant 0 : index
    %c0_0 = arith.constant 0 : index
    %0 = vector.load %arg1[%c0, %c0_0] : memref<8x32xf32, #tpu.memory_space<vmem>>, vector<8x32xf32>
    %c0_1 = arith.constant 0 : index
    %c0_2 = arith.constant 0 : index
    %c0_3 = arith.constant 0 : index
    %1 = vector.load %arg0[%c0_1, %c0_2, %c0_3] : memref<8x10x8xf32, #tpu.memory_space<vmem>>, vector<8x10x8xf32>
    %c0_4 = arith.constant 0 : index
    %c0_5 = arith.constant 0 : index
    %c0_6 = arith.constant 0 : index
    %2 = vector.load %arg2[%c0_4, %c0_5, %c0_6] : memref<2x224x128xf32, #tpu.memory_space<vmem>>, vector<1x32x128xf32>
    %3 = vector.shape_cast %2 : vector<1x32x128xf32> to vector<32x128xf32>
    %c0_7 = arith.constant 0 : index
    %c32 = arith.constant 32 : index
    %c0_8 = arith.constant 0 : index
    %4 = vector.load %arg2[%c0_7, %c32, %c0_8] : memref<2x224x128xf32, #tpu.memory_space<vmem>>, vector<1x32x128xf32>
    %5 = vector.shape_cast %4 : vector<1x32x128xf32> to vector<32x128xf32>
    %c0_9 = arith.constant 0 : index
    %c64 = arith.constant 64 : index
    %c0_10 = arith.constant 0 : index
    %6 = vector.load %arg2[%c0_9, %c64, %c0_10] : memref<2x224x128xf32, #tpu.memory_space<vmem>>, vector<1x128x128xf32>
    %7 = vector.shape_cast %6 : vector<1x128x128xf32> to vector<128x128xf32>
    %8 = vector.extract_strided_slice %7 {offsets = [0, 0], sizes = [128, 32], strides = [1, 1]} : vector<128x128xf32> to vector<128x32xf32>
    %c0_11 = arith.constant 0 : index
    %c192 = arith.constant 192 : index
    %c0_12 = arith.constant 0 : index
    %9 = vector.load %arg2[%c0_11, %c192, %c0_12] : memref<2x224x128xf32, #tpu.memory_space<vmem>>, vector<1x1x128xf32>
    %10 = vector.shape_cast %9 : vector<1x1x128xf32> to vector<1x128xf32>
    %c0_13 = arith.constant 0 : index
    %c193 = arith.constant 193 : index
    %c0_14 = arith.constant 0 : index
    %11 = vector.load %arg2[%c0_13, %c193, %c0_14] : memref<2x224x128xf32, #tpu.memory_space<vmem>>, vector<1x1x128xf32>
    %12 = vector.shape_cast %11 : vector<1x1x128xf32> to vector<1x128xf32>
    %c0_15 = arith.constant 0 : index
    %c194 = arith.constant 194 : index
    %c0_16 = arith.constant 0 : index
    %13 = vector.load %arg2[%c0_15, %c194, %c0_16] : memref<2x224x128xf32, #tpu.memory_space<vmem>>, vector<1x1x128xf32>
    %14 = vector.shape_cast %13 : vector<1x1x128xf32> to vector<1x128xf32>
    %c0_17 = arith.constant 0 : index
    %c195 = arith.constant 195 : index
    %c0_18 = arith.constant 0 : index
    %15 = vector.load %arg2[%c0_17, %c195, %c0_18] : memref<2x224x128xf32, #tpu.memory_space<vmem>>, vector<1x1x128xf32>
    %16 = vector.shape_cast %15 : vector<1x1x128xf32> to vector<1x128xf32>
    %17 = vector.extract_strided_slice %16 {offsets = [0, 0], sizes = [1, 32], strides = [1, 1]} : vector<1x128xf32> to vector<1x32xf32>
    %c0_19 = arith.constant 0 : index
    %c200 = arith.constant 200 : index
    %c0_20 = arith.constant 0 : index
    %18 = vector.load %arg2[%c0_19, %c200, %c0_20] : memref<2x224x128xf32, #tpu.memory_space<vmem>>, vector<1x8x128xf32>
    %19 = vector.shape_cast %18 : vector<1x8x128xf32> to vector<8x128xf32>
    %20 = vector.extract_strided_slice %19 {offsets = [0, 0], sizes = [8, 10], strides = [1, 1]} : vector<8x128xf32> to vector<8x10xf32>
    %c0_21 = arith.constant 0 : index
    %c208 = arith.constant 208 : index
    %c0_22 = arith.constant 0 : index
    %21 = vector.load %arg2[%c0_21, %c208, %c0_22] : memref<2x224x128xf32, #tpu.memory_space<vmem>>, vector<1x10x128xf32>
    %22 = vector.shape_cast %21 : vector<1x10x128xf32> to vector<10x128xf32>
    %23 = vector.extract_strided_slice %22 {offsets = [0, 0], sizes = [10, 8], strides = [1, 1]} : vector<10x128xf32> to vector<10x8xf32>
    %24 = vector.extract_strided_slice %3 {offsets = [0, 0], sizes = [32, 96], strides = [1, 1]} : vector<32x128xf32> to vector<32x96xf32>
    %25 = vector.extract_strided_slice %3 {offsets = [0, 96], sizes = [32, 32], strides = [1, 1]} : vector<32x128xf32> to vector<32x32xf32>
    %26 = vector.extract_strided_slice %10 {offsets = [0, 0], sizes = [1, 32], strides = [1, 1]} : vector<1x128xf32> to vector<1x32xf32>
    %27 = vector.extract_strided_slice %10 {offsets = [0, 32], sizes = [1, 32], strides = [1, 1]} : vector<1x128xf32> to vector<1x32xf32>
    %28 = vector.extract_strided_slice %10 {offsets = [0, 64], sizes = [1, 32], strides = [1, 1]} : vector<1x128xf32> to vector<1x32xf32>
    %29 = vector.extract_strided_slice %10 {offsets = [0, 96], sizes = [1, 32], strides = [1, 1]} : vector<1x128xf32> to vector<1x32xf32>
    %30 = vector.extract_strided_slice %12 {offsets = [0, 0], sizes = [1, 96], strides = [1, 1]} : vector<1x128xf32> to vector<1x96xf32>
    %31 = vector.extract_strided_slice %12 {offsets = [0, 96], sizes = [1, 32], strides = [1, 1]} : vector<1x128xf32> to vector<1x32xf32>
    %cst = arith.constant dense<0.000000e+00> : vector<8xf32>
    %32 = vector.multi_reduction <add>, %0, %cst [1] : vector<8x32xf32> to vector<8xf32>
    %33 = vector.shape_cast %32 : vector<8xf32> to vector<8x1xf32>
    %cst_23 = arith.constant 3.200000e+01 : f32
    %34 = vector.broadcast %cst_23 : f32 to vector<8x1xf32>
    %35 = arith.divf %33, %34 : vector<8x1xf32>
    %36 = vector.broadcast %35 : vector<8x1xf32> to vector<8x32xf32>
    %37 = arith.subf %0, %36 : vector<8x32xf32>
    %38 = arith.mulf %37, %37 : vector<8x32xf32>
    %cst_24 = arith.constant dense<0.000000e+00> : vector<8xf32>
    %39 = vector.multi_reduction <add>, %38, %cst_24 [1] : vector<8x32xf32> to vector<8xf32>
    %40 = vector.shape_cast %39 : vector<8xf32> to vector<8x1xf32>
    %cst_25 = arith.constant 3.200000e+01 : f32
    %41 = vector.broadcast %cst_25 : f32 to vector<8x1xf32>
    %42 = arith.divf %40, %41 : vector<8x1xf32>
    %43 = vector.broadcast %35 : vector<8x1xf32> to vector<8x32xf32>
    %44 = arith.subf %0, %43 : vector<8x32xf32>
    %cst_26 = arith.constant 9.99999974E-6 : f32
    %45 = vector.broadcast %cst_26 : f32 to vector<8x1xf32>
    %46 = arith.addf %42, %45 : vector<8x1xf32>
    %47 = math.rsqrt %46 : vector<8x1xf32>
    %48 = vector.broadcast %47 : vector<8x1xf32> to vector<8x32xf32>
    %49 = arith.mulf %44, %48 : vector<8x32xf32>
    %50 = vector.broadcast %26 : vector<1x32xf32> to vector<8x32xf32>
    %51 = arith.mulf %49, %50 : vector<8x32xf32>
    %52 = vector.broadcast %27 : vector<1x32xf32> to vector<8x32xf32>
    %53 = arith.addf %51, %52 : vector<8x32xf32>
    %cst_27 = arith.constant dense<0.000000e+00> : vector<8x96xf32>
    %54 = tpu.matmul %53, %24, %cst_27 {dimension_numbers = #tpu.dot_dimension_numbers<[1], [0], [0], [1], [0, 0, 1, 1], [], []>} : vector<8x32xf32>, vector<32x96xf32>, vector<8x96xf32> -> vector<8x96xf32>
    %55 = vector.broadcast %30 : vector<1x96xf32> to vector<8x96xf32>
    %56 = arith.addf %54, %55 : vector<8x96xf32>
    %57 = vector.extract_strided_slice %56 {offsets = [0, 0], sizes = [8, 8], strides = [1, 1]} : vector<8x96xf32> to vector<8x8xf32>
    %58 = vector.extract_strided_slice %56 {offsets = [0, 8], sizes = [8, 8], strides = [1, 1]} : vector<8x96xf32> to vector<8x8xf32>
    %59 = vector.extract_strided_slice %56 {offsets = [0, 16], sizes = [8, 8], strides = [1, 1]} : vector<8x96xf32> to vector<8x8xf32>
    %60 = vector.extract_strided_slice %56 {offsets = [0, 24], sizes = [8, 8], strides = [1, 1]} : vector<8x96xf32> to vector<8x8xf32>
    %61 = vector.shape_cast %57 : vector<8x8xf32> to vector<1x8x8xf32>
    %62 = vector.shape_cast %58 : vector<8x8xf32> to vector<1x8x8xf32>
    %63 = vector.shape_cast %59 : vector<8x8xf32> to vector<1x8x8xf32>
    %64 = vector.shape_cast %60 : vector<8x8xf32> to vector<1x8x8xf32>
    %65 = tpu.concatenate %61, %62, %63, %64 in 0 : vector<1x8x8xf32>, vector<1x8x8xf32>, vector<1x8x8xf32>, vector<1x8x8xf32> -> vector<4x8x8xf32>
    %66 = vector.extract_strided_slice %56 {offsets = [0, 32], sizes = [8, 8], strides = [1, 1]} : vector<8x96xf32> to vector<8x8xf32>
    %67 = vector.extract_strided_slice %56 {offsets = [0, 40], sizes = [8, 8], strides = [1, 1]} : vector<8x96xf32> to vector<8x8xf32>
    %68 = vector.extract_strided_slice %56 {offsets = [0, 48], sizes = [8, 8], strides = [1, 1]} : vector<8x96xf32> to vector<8x8xf32>
    %69 = vector.extract_strided_slice %56 {offsets = [0, 56], sizes = [8, 8], strides = [1, 1]} : vector<8x96xf32> to vector<8x8xf32>
    %70 = vector.shape_cast %66 : vector<8x8xf32> to vector<1x8x8xf32>
    %71 = vector.shape_cast %67 : vector<8x8xf32> to vector<1x8x8xf32>
    %72 = vector.shape_cast %68 : vector<8x8xf32> to vector<1x8x8xf32>
    %73 = vector.shape_cast %69 : vector<8x8xf32> to vector<1x8x8xf32>
    %74 = tpu.concatenate %70, %71, %72, %73 in 0 : vector<1x8x8xf32>, vector<1x8x8xf32>, vector<1x8x8xf32>, vector<1x8x8xf32> -> vector<4x8x8xf32>
    %75 = vector.extract_strided_slice %56 {offsets = [0, 64], sizes = [8, 8], strides = [1, 1]} : vector<8x96xf32> to vector<8x8xf32>
    %76 = vector.extract_strided_slice %56 {offsets = [0, 72], sizes = [8, 8], strides = [1, 1]} : vector<8x96xf32> to vector<8x8xf32>
    %77 = vector.extract_strided_slice %56 {offsets = [0, 80], sizes = [8, 8], strides = [1, 1]} : vector<8x96xf32> to vector<8x8xf32>
    %78 = vector.extract_strided_slice %56 {offsets = [0, 88], sizes = [8, 8], strides = [1, 1]} : vector<8x96xf32> to vector<8x8xf32>
    %79 = vector.shape_cast %75 : vector<8x8xf32> to vector<1x8x8xf32>
    %80 = vector.shape_cast %76 : vector<8x8xf32> to vector<1x8x8xf32>
    %81 = vector.shape_cast %77 : vector<8x8xf32> to vector<1x8x8xf32>
    %82 = vector.shape_cast %78 : vector<8x8xf32> to vector<1x8x8xf32>
    %83 = tpu.concatenate %79, %80, %81, %82 in 0 : vector<1x8x8xf32>, vector<1x8x8xf32>, vector<1x8x8xf32>, vector<1x8x8xf32> -> vector<4x8x8xf32>
    "tpu.trace_start"() <{level = 10 : i32, message = "hqd,hkd->hqk"}> : () -> ()
    %cst_28 = arith.constant dense<0.000000e+00> : vector<4x8x8xf32>
    %84 = tpu.matmul %65, %74, %cst_28 {dimension_numbers = #tpu.dot_dimension_numbers<[2], [2], [1], [1], [0, 0, 0, 1, 1, 1], [0], [0]>} : vector<4x8x8xf32>, vector<4x8x8xf32>, vector<4x8x8xf32> -> vector<4x8x8xf32>
    "tpu.trace_stop"() : () -> ()
    "tpu.trace_start"() <{level = 10 : i32, message = "hqd,dr->hqr"}> : () -> ()
    %cst_29 = arith.constant dense<0.000000e+00> : vector<4x8x10xf32>
    %85 = tpu.matmul %65, %20, %cst_29 {dimension_numbers = #tpu.dot_dimension_numbers<[2], [0], [0, 1], [1], [0, 0, 0, 1, 1, 1], [], []>} : vector<4x8x8xf32>, vector<8x10xf32>, vector<4x8x10xf32> -> vector<4x8x10xf32>
    "tpu.trace_stop"() : () -> ()
    %86 = tpu.transpose %85, [1, 0, 2] : vector<4x8x10xf32> -> vector<8x4x10xf32>
    "tpu.trace_start"() <{level = 10 : i32, message = "qhr,qrk->qhk"}> : () -> ()
    %cst_30 = arith.constant dense<0.000000e+00> : vector<8x4x8xf32>
    %87 = tpu.matmul %86, %1, %cst_30 {dimension_numbers = #tpu.dot_dimension_numbers<[2], [1], [1], [2], [0, 0, 0, 1, 1, 2], [0], [0]>} : vector<8x4x10xf32>, vector<8x10x8xf32>, vector<8x4x8xf32> -> vector<8x4x8xf32>
    "tpu.trace_stop"() : () -> ()
    %88 = tpu.transpose %87, [1, 0, 2] : vector<8x4x8xf32> -> vector<4x8x8xf32>
    %89 = arith.addf %84, %88 : vector<4x8x8xf32>
    %cst_31 = arith.constant 0.353553385 : f32
    %90 = vector.broadcast %cst_31 : f32 to vector<4x8x8xf32>
    %91 = arith.mulf %89, %90 : vector<4x8x8xf32>
    %cst_32 = arith.constant dense<0xFF800000> : vector<4x8xf32>
    %92 = vector.multi_reduction <maximumf>, %91, %cst_32 [2] : vector<4x8x8xf32> to vector<4x8xf32>
    %93 = vector.shape_cast %92 : vector<4x8xf32> to vector<4x8x1xf32>
    %94 = vector.broadcast %93 : vector<4x8x1xf32> to vector<4x8x8xf32>
    %95 = arith.subf %91, %94 : vector<4x8x8xf32>
    %96 = math.exp %95 : vector<4x8x8xf32>
    %cst_33 = arith.constant dense<0.000000e+00> : vector<4x8xf32>
    %97 = vector.multi_reduction <add>, %96, %cst_33 [2] : vector<4x8x8xf32> to vector<4x8xf32>
    %98 = vector.shape_cast %97 : vector<4x8xf32> to vector<4x8x1xf32>
    %99 = tpu.reciprocal %98 {approx = true} : vector<4x8x1xf32> -> vector<4x8x1xf32>
    %100 = vector.broadcast %99 : vector<4x8x1xf32> to vector<4x8x8xf32>
    %101 = arith.mulf %96, %100 : vector<4x8x8xf32>
    "tpu.trace_start"() <{level = 10 : i32, message = "hqk,hkd->hqd"}> : () -> ()
    %cst_34 = arith.constant dense<0.000000e+00> : vector<4x8x8xf32>
    %102 = tpu.matmul %101, %83, %cst_34 {dimension_numbers = #tpu.dot_dimension_numbers<[2], [1], [1], [2], [0, 0, 0, 1, 1, 2], [0], [0]>} : vector<4x8x8xf32>, vector<4x8x8xf32>, vector<4x8x8xf32> -> vector<4x8x8xf32>
    "tpu.trace_stop"() : () -> ()
    %103 = tpu.transpose %101, [1, 0, 2] : vector<4x8x8xf32> -> vector<8x4x8xf32>
    "tpu.trace_start"() <{level = 10 : i32, message = "qhk,qrk->qhr"}> : () -> ()
    %cst_35 = arith.constant dense<0.000000e+00> : vector<8x4x10xf32>
    %104 = tpu.matmul %103, %1, %cst_35 {dimension_numbers = #tpu.dot_dimension_numbers<[2], [2], [1], [1], [0, 0, 0, 1, 1, 1], [0], [0]>} : vector<8x4x8xf32>, vector<8x10x8xf32>, vector<8x4x10xf32> -> vector<8x4x10xf32>
    "tpu.trace_stop"() : () -> ()
    "tpu.trace_start"() <{level = 10 : i32, message = "qhr,rd->qhd"}> : () -> ()
    %cst_36 = arith.constant dense<0.000000e+00> : vector<8x4x8xf32>
    %105 = tpu.matmul %104, %23, %cst_36 {dimension_numbers = #tpu.dot_dimension_numbers<[2], [0], [0, 1], [1], [0, 0, 0, 1, 1, 1], [], []>} : vector<8x4x10xf32>, vector<10x8xf32>, vector<8x4x8xf32> -> vector<8x4x8xf32>
    "tpu.trace_stop"() : () -> ()
    %106 = tpu.transpose %105, [1, 0, 2] : vector<8x4x8xf32> -> vector<4x8x8xf32>
    %107 = arith.addf %102, %106 : vector<4x8x8xf32>
    %108 = vector.extract_strided_slice %107 {offsets = [0, 0, 0], sizes = [1, 8, 8], strides = [1, 1, 1]} : vector<4x8x8xf32> to vector<1x8x8xf32>
    %109 = vector.shape_cast %108 : vector<1x8x8xf32> to vector<8x8xf32>
    %110 = vector.extract_strided_slice %107 {offsets = [1, 0, 0], sizes = [1, 8, 8], strides = [1, 1, 1]} : vector<4x8x8xf32> to vector<1x8x8xf32>
    %111 = vector.shape_cast %110 : vector<1x8x8xf32> to vector<8x8xf32>
    %112 = vector.extract_strided_slice %107 {offsets = [2, 0, 0], sizes = [1, 8, 8], strides = [1, 1, 1]} : vector<4x8x8xf32> to vector<1x8x8xf32>
    %113 = vector.shape_cast %112 : vector<1x8x8xf32> to vector<8x8xf32>
    %114 = vector.extract_strided_slice %107 {offsets = [3, 0, 0], sizes = [1, 8, 8], strides = [1, 1, 1]} : vector<4x8x8xf32> to vector<1x8x8xf32>
    %115 = vector.shape_cast %114 : vector<1x8x8xf32> to vector<8x8xf32>
    %116 = tpu.concatenate %109, %111, %113, %115 in 1 : vector<8x8xf32>, vector<8x8xf32>, vector<8x8xf32>, vector<8x8xf32> -> vector<8x32xf32>
    %cst_37 = arith.constant dense<0.000000e+00> : vector<8x32xf32>
    %117 = tpu.matmul %116, %25, %cst_37 {dimension_numbers = #tpu.dot_dimension_numbers<[1], [0], [0], [1], [0, 0, 1, 1], [], []>} : vector<8x32xf32>, vector<32x32xf32>, vector<8x32xf32> -> vector<8x32xf32>
    %118 = vector.broadcast %31 : vector<1x32xf32> to vector<8x32xf32>
    %119 = arith.addf %117, %118 : vector<8x32xf32>
    %120 = arith.addf %0, %119 : vector<8x32xf32>
    %cst_38 = arith.constant dense<0.000000e+00> : vector<8xf32>
    %121 = vector.multi_reduction <add>, %120, %cst_38 [1] : vector<8x32xf32> to vector<8xf32>
    %122 = vector.shape_cast %121 : vector<8xf32> to vector<8x1xf32>
    %cst_39 = arith.constant 3.200000e+01 : f32
    %123 = vector.broadcast %cst_39 : f32 to vector<8x1xf32>
    %124 = arith.divf %122, %123 : vector<8x1xf32>
    %125 = vector.broadcast %124 : vector<8x1xf32> to vector<8x32xf32>
    %126 = arith.subf %120, %125 : vector<8x32xf32>
    %127 = arith.mulf %126, %126 : vector<8x32xf32>
    %cst_40 = arith.constant dense<0.000000e+00> : vector<8xf32>
    %128 = vector.multi_reduction <add>, %127, %cst_40 [1] : vector<8x32xf32> to vector<8xf32>
    %129 = vector.shape_cast %128 : vector<8xf32> to vector<8x1xf32>
    %cst_41 = arith.constant 3.200000e+01 : f32
    %130 = vector.broadcast %cst_41 : f32 to vector<8x1xf32>
    %131 = arith.divf %129, %130 : vector<8x1xf32>
    %132 = vector.broadcast %124 : vector<8x1xf32> to vector<8x32xf32>
    %133 = arith.subf %120, %132 : vector<8x32xf32>
    %cst_42 = arith.constant 9.99999974E-6 : f32
    %134 = vector.broadcast %cst_42 : f32 to vector<8x1xf32>
    %135 = arith.addf %131, %134 : vector<8x1xf32>
    %136 = math.rsqrt %135 : vector<8x1xf32>
    %137 = vector.broadcast %136 : vector<8x1xf32> to vector<8x32xf32>
    %138 = arith.mulf %133, %137 : vector<8x32xf32>
    %139 = vector.broadcast %28 : vector<1x32xf32> to vector<8x32xf32>
    %140 = arith.mulf %138, %139 : vector<8x32xf32>
    %141 = vector.broadcast %29 : vector<1x32xf32> to vector<8x32xf32>
    %142 = arith.addf %140, %141 : vector<8x32xf32>
    %cst_43 = arith.constant dense<0.000000e+00> : vector<8x128xf32>
    %143 = tpu.matmul %142, %5, %cst_43 {dimension_numbers = #tpu.dot_dimension_numbers<[1], [0], [0], [1], [0, 0, 1, 1], [], []>} : vector<8x32xf32>, vector<32x128xf32>, vector<8x128xf32> -> vector<8x128xf32>
    %144 = vector.broadcast %14 : vector<1x128xf32> to vector<8x128xf32>
    %145 = arith.addf %143, %144 : vector<8x128xf32>
    %cst_44 = arith.constant 0.000000e+00 : f32
    %146 = vector.broadcast %cst_44 : f32 to vector<8x128xf32>
    %147 = arith.maximumf %145, %146 : vector<8x128xf32>
    %cst_45 = arith.constant dense<0.000000e+00> : vector<8x32xf32>
    %148 = tpu.matmul %147, %8, %cst_45 {dimension_numbers = #tpu.dot_dimension_numbers<[1], [0], [0], [1], [0, 0, 1, 1], [], []>} : vector<8x128xf32>, vector<128x32xf32>, vector<8x32xf32> -> vector<8x32xf32>
    %149 = arith.addf %120, %148 : vector<8x32xf32>
    %150 = vector.broadcast %17 : vector<1x32xf32> to vector<8x32xf32>
    %151 = arith.addf %149, %150 : vector<8x32xf32>
    %c1 = arith.constant 1 : index
    %c0_46 = arith.constant 0 : index
    %c0_47 = arith.constant 0 : index
    %152 = vector.load %arg2[%c1, %c0_46, %c0_47] : memref<2x224x128xf32, #tpu.memory_space<vmem>>, vector<1x32x128xf32>
    %153 = vector.shape_cast %152 : vector<1x32x128xf32> to vector<32x128xf32>
    %c1_48 = arith.constant 1 : index
    %c32_49 = arith.constant 32 : index
    %c0_50 = arith.constant 0 : index
    %154 = vector.load %arg2[%c1_48, %c32_49, %c0_50] : memref<2x224x128xf32, #tpu.memory_space<vmem>>, vector<1x32x128xf32>
    %155 = vector.shape_cast %154 : vector<1x32x128xf32> to vector<32x128xf32>
    %c1_51 = arith.constant 1 : index
    %c64_52 = arith.constant 64 : index
    %c0_53 = arith.constant 0 : index
    %156 = vector.load %arg2[%c1_51, %c64_52, %c0_53] : memref<2x224x128xf32, #tpu.memory_space<vmem>>, vector<1x128x128xf32>
    %157 = vector.shape_cast %156 : vector<1x128x128xf32> to vector<128x128xf32>
    %158 = vector.extract_strided_slice %157 {offsets = [0, 0], sizes = [128, 32], strides = [1, 1]} : vector<128x128xf32> to vector<128x32xf32>
    %c1_54 = arith.constant 1 : index
    %c192_55 = arith.constant 192 : index
    %c0_56 = arith.constant 0 : index
    %159 = vector.load %arg2[%c1_54, %c192_55, %c0_56] : memref<2x224x128xf32, #tpu.memory_space<vmem>>, vector<1x1x128xf32>
    %160 = vector.shape_cast %159 : vector<1x1x128xf32> to vector<1x128xf32>
    %c1_57 = arith.constant 1 : index
    %c193_58 = arith.constant 193 : index
    %c0_59 = arith.constant 0 : index
    %161 = vector.load %arg2[%c1_57, %c193_58, %c0_59] : memref<2x224x128xf32, #tpu.memory_space<vmem>>, vector<1x1x128xf32>
    %162 = vector.shape_cast %161 : vector<1x1x128xf32> to vector<1x128xf32>
    %c1_60 = arith.constant 1 : index
    %c194_61 = arith.constant 194 : index
    %c0_62 = arith.constant 0 : index
    %163 = vector.load %arg2[%c1_60, %c194_61, %c0_62] : memref<2x224x128xf32, #tpu.memory_space<vmem>>, vector<1x1x128xf32>
    %164 = vector.shape_cast %163 : vector<1x1x128xf32> to vector<1x128xf32>
    %c1_63 = arith.constant 1 : index
    %c195_64 = arith.constant 195 : index
    %c0_65 = arith.constant 0 : index
    %165 = vector.load %arg2[%c1_63, %c195_64, %c0_65] : memref<2x224x128xf32, #tpu.memory_space<vmem>>, vector<1x1x128xf32>
    %166 = vector.shape_cast %165 : vector<1x1x128xf32> to vector<1x128xf32>
    %167 = vector.extract_strided_slice %166 {offsets = [0, 0], sizes = [1, 32], strides = [1, 1]} : vector<1x128xf32> to vector<1x32xf32>
    %c1_66 = arith.constant 1 : index
    %c200_67 = arith.constant 200 : index
    %c0_68 = arith.constant 0 : index
    %168 = vector.load %arg2[%c1_66, %c200_67, %c0_68] : memref<2x224x128xf32, #tpu.memory_space<vmem>>, vector<1x8x128xf32>
    %169 = vector.shape_cast %168 : vector<1x8x128xf32> to vector<8x128xf32>
    %170 = vector.extract_strided_slice %169 {offsets = [0, 0], sizes = [8, 10], strides = [1, 1]} : vector<8x128xf32> to vector<8x10xf32>
    %c1_69 = arith.constant 1 : index
    %c208_70 = arith.constant 208 : index
    %c0_71 = arith.constant 0 : index
    %171 = vector.load %arg2[%c1_69, %c208_70, %c0_71] : memref<2x224x128xf32, #tpu.memory_space<vmem>>, vector<1x10x128xf32>
    %172 = vector.shape_cast %171 : vector<1x10x128xf32> to vector<10x128xf32>
    %173 = vector.extract_strided_slice %172 {offsets = [0, 0], sizes = [10, 8], strides = [1, 1]} : vector<10x128xf32> to vector<10x8xf32>
    %174 = vector.extract_strided_slice %153 {offsets = [0, 0], sizes = [32, 96], strides = [1, 1]} : vector<32x128xf32> to vector<32x96xf32>
    %175 = vector.extract_strided_slice %153 {offsets = [0, 96], sizes = [32, 32], strides = [1, 1]} : vector<32x128xf32> to vector<32x32xf32>
    %176 = vector.extract_strided_slice %160 {offsets = [0, 0], sizes = [1, 32], strides = [1, 1]} : vector<1x128xf32> to vector<1x32xf32>
    %177 = vector.extract_strided_slice %160 {offsets = [0, 32], sizes = [1, 32], strides = [1, 1]} : vector<1x128xf32> to vector<1x32xf32>
    %178 = vector.extract_strided_slice %160 {offsets = [0, 64], sizes = [1, 32], strides = [1, 1]} : vector<1x128xf32> to vector<1x32xf32>
    %179 = vector.extract_strided_slice %160 {offsets = [0, 96], sizes = [1, 32], strides = [1, 1]} : vector<1x128xf32> to vector<1x32xf32>
    %180 = vector.extract_strided_slice %162 {offsets = [0, 0], sizes = [1, 96], strides = [1, 1]} : vector<1x128xf32> to vector<1x96xf32>
    %181 = vector.extract_strided_slice %162 {offsets = [0, 96], sizes = [1, 32], strides = [1, 1]} : vector<1x128xf32> to vector<1x32xf32>
    %cst_72 = arith.constant dense<0.000000e+00> : vector<8xf32>
    %182 = vector.multi_reduction <add>, %151, %cst_72 [1] : vector<8x32xf32> to vector<8xf32>
    %183 = vector.shape_cast %182 : vector<8xf32> to vector<8x1xf32>
    %cst_73 = arith.constant 3.200000e+01 : f32
    %184 = vector.broadcast %cst_73 : f32 to vector<8x1xf32>
    %185 = arith.divf %183, %184 : vector<8x1xf32>
    %186 = vector.broadcast %185 : vector<8x1xf32> to vector<8x32xf32>
    %187 = arith.subf %151, %186 : vector<8x32xf32>
    %188 = arith.mulf %187, %187 : vector<8x32xf32>
    %cst_74 = arith.constant dense<0.000000e+00> : vector<8xf32>
    %189 = vector.multi_reduction <add>, %188, %cst_74 [1] : vector<8x32xf32> to vector<8xf32>
    %190 = vector.shape_cast %189 : vector<8xf32> to vector<8x1xf32>
    %cst_75 = arith.constant 3.200000e+01 : f32
    %191 = vector.broadcast %cst_75 : f32 to vector<8x1xf32>
    %192 = arith.divf %190, %191 : vector<8x1xf32>
    %193 = vector.broadcast %185 : vector<8x1xf32> to vector<8x32xf32>
    %194 = arith.subf %151, %193 : vector<8x32xf32>
    %cst_76 = arith.constant 9.99999974E-6 : f32
    %195 = vector.broadcast %cst_76 : f32 to vector<8x1xf32>
    %196 = arith.addf %192, %195 : vector<8x1xf32>
    %197 = math.rsqrt %196 : vector<8x1xf32>
    %198 = vector.broadcast %197 : vector<8x1xf32> to vector<8x32xf32>
    %199 = arith.mulf %194, %198 : vector<8x32xf32>
    %200 = vector.broadcast %176 : vector<1x32xf32> to vector<8x32xf32>
    %201 = arith.mulf %199, %200 : vector<8x32xf32>
    %202 = vector.broadcast %177 : vector<1x32xf32> to vector<8x32xf32>
    %203 = arith.addf %201, %202 : vector<8x32xf32>
    %cst_77 = arith.constant dense<0.000000e+00> : vector<8x96xf32>
    %204 = tpu.matmul %203, %174, %cst_77 {dimension_numbers = #tpu.dot_dimension_numbers<[1], [0], [0], [1], [0, 0, 1, 1], [], []>} : vector<8x32xf32>, vector<32x96xf32>, vector<8x96xf32> -> vector<8x96xf32>
    %205 = vector.broadcast %180 : vector<1x96xf32> to vector<8x96xf32>
    %206 = arith.addf %204, %205 : vector<8x96xf32>
    %207 = vector.extract_strided_slice %206 {offsets = [0, 0], sizes = [8, 8], strides = [1, 1]} : vector<8x96xf32> to vector<8x8xf32>
    %208 = vector.extract_strided_slice %206 {offsets = [0, 8], sizes = [8, 8], strides = [1, 1]} : vector<8x96xf32> to vector<8x8xf32>
    %209 = vector.extract_strided_slice %206 {offsets = [0, 16], sizes = [8, 8], strides = [1, 1]} : vector<8x96xf32> to vector<8x8xf32>
    %210 = vector.extract_strided_slice %206 {offsets = [0, 24], sizes = [8, 8], strides = [1, 1]} : vector<8x96xf32> to vector<8x8xf32>
    %211 = vector.shape_cast %207 : vector<8x8xf32> to vector<1x8x8xf32>
    %212 = vector.shape_cast %208 : vector<8x8xf32> to vector<1x8x8xf32>
    %213 = vector.shape_cast %209 : vector<8x8xf32> to vector<1x8x8xf32>
    %214 = vector.shape_cast %210 : vector<8x8xf32> to vector<1x8x8xf32>
    %215 = tpu.concatenate %211, %212, %213, %214 in 0 : vector<1x8x8xf32>, vector<1x8x8xf32>, vector<1x8x8xf32>, vector<1x8x8xf32> -> vector<4x8x8xf32>
    %216 = vector.extract_strided_slice %206 {offsets = [0, 32], sizes = [8, 8], strides = [1, 1]} : vector<8x96xf32> to vector<8x8xf32>
    %217 = vector.extract_strided_slice %206 {offsets = [0, 40], sizes = [8, 8], strides = [1, 1]} : vector<8x96xf32> to vector<8x8xf32>
    %218 = vector.extract_strided_slice %206 {offsets = [0, 48], sizes = [8, 8], strides = [1, 1]} : vector<8x96xf32> to vector<8x8xf32>
    %219 = vector.extract_strided_slice %206 {offsets = [0, 56], sizes = [8, 8], strides = [1, 1]} : vector<8x96xf32> to vector<8x8xf32>
    %220 = vector.shape_cast %216 : vector<8x8xf32> to vector<1x8x8xf32>
    %221 = vector.shape_cast %217 : vector<8x8xf32> to vector<1x8x8xf32>
    %222 = vector.shape_cast %218 : vector<8x8xf32> to vector<1x8x8xf32>
    %223 = vector.shape_cast %219 : vector<8x8xf32> to vector<1x8x8xf32>
    %224 = tpu.concatenate %220, %221, %222, %223 in 0 : vector<1x8x8xf32>, vector<1x8x8xf32>, vector<1x8x8xf32>, vector<1x8x8xf32> -> vector<4x8x8xf32>
    %225 = vector.extract_strided_slice %206 {offsets = [0, 64], sizes = [8, 8], strides = [1, 1]} : vector<8x96xf32> to vector<8x8xf32>
    %226 = vector.extract_strided_slice %206 {offsets = [0, 72], sizes = [8, 8], strides = [1, 1]} : vector<8x96xf32> to vector<8x8xf32>
    %227 = vector.extract_strided_slice %206 {offsets = [0, 80], sizes = [8, 8], strides = [1, 1]} : vector<8x96xf32> to vector<8x8xf32>
    %228 = vector.extract_strided_slice %206 {offsets = [0, 88], sizes = [8, 8], strides = [1, 1]} : vector<8x96xf32> to vector<8x8xf32>
    %229 = vector.shape_cast %225 : vector<8x8xf32> to vector<1x8x8xf32>
    %230 = vector.shape_cast %226 : vector<8x8xf32> to vector<1x8x8xf32>
    %231 = vector.shape_cast %227 : vector<8x8xf32> to vector<1x8x8xf32>
    %232 = vector.shape_cast %228 : vector<8x8xf32> to vector<1x8x8xf32>
    %233 = tpu.concatenate %229, %230, %231, %232 in 0 : vector<1x8x8xf32>, vector<1x8x8xf32>, vector<1x8x8xf32>, vector<1x8x8xf32> -> vector<4x8x8xf32>
    "tpu.trace_start"() <{level = 10 : i32, message = "hqd,hkd->hqk"}> : () -> ()
    %cst_78 = arith.constant dense<0.000000e+00> : vector<4x8x8xf32>
    %234 = tpu.matmul %215, %224, %cst_78 {dimension_numbers = #tpu.dot_dimension_numbers<[2], [2], [1], [1], [0, 0, 0, 1, 1, 1], [0], [0]>} : vector<4x8x8xf32>, vector<4x8x8xf32>, vector<4x8x8xf32> -> vector<4x8x8xf32>
    "tpu.trace_stop"() : () -> ()
    "tpu.trace_start"() <{level = 10 : i32, message = "hqd,dr->hqr"}> : () -> ()
    %cst_79 = arith.constant dense<0.000000e+00> : vector<4x8x10xf32>
    %235 = tpu.matmul %215, %170, %cst_79 {dimension_numbers = #tpu.dot_dimension_numbers<[2], [0], [0, 1], [1], [0, 0, 0, 1, 1, 1], [], []>} : vector<4x8x8xf32>, vector<8x10xf32>, vector<4x8x10xf32> -> vector<4x8x10xf32>
    "tpu.trace_stop"() : () -> ()
    %236 = tpu.transpose %235, [1, 0, 2] : vector<4x8x10xf32> -> vector<8x4x10xf32>
    "tpu.trace_start"() <{level = 10 : i32, message = "qhr,qrk->qhk"}> : () -> ()
    %cst_80 = arith.constant dense<0.000000e+00> : vector<8x4x8xf32>
    %237 = tpu.matmul %236, %1, %cst_80 {dimension_numbers = #tpu.dot_dimension_numbers<[2], [1], [1], [2], [0, 0, 0, 1, 1, 2], [0], [0]>} : vector<8x4x10xf32>, vector<8x10x8xf32>, vector<8x4x8xf32> -> vector<8x4x8xf32>
    "tpu.trace_stop"() : () -> ()
    %238 = tpu.transpose %237, [1, 0, 2] : vector<8x4x8xf32> -> vector<4x8x8xf32>
    %239 = arith.addf %234, %238 : vector<4x8x8xf32>
    %cst_81 = arith.constant 0.353553385 : f32
    %240 = vector.broadcast %cst_81 : f32 to vector<4x8x8xf32>
    %241 = arith.mulf %239, %240 : vector<4x8x8xf32>
    %cst_82 = arith.constant dense<0xFF800000> : vector<4x8xf32>
    %242 = vector.multi_reduction <maximumf>, %241, %cst_82 [2] : vector<4x8x8xf32> to vector<4x8xf32>
    %243 = vector.shape_cast %242 : vector<4x8xf32> to vector<4x8x1xf32>
    %244 = vector.broadcast %243 : vector<4x8x1xf32> to vector<4x8x8xf32>
    %245 = arith.subf %241, %244 : vector<4x8x8xf32>
    %246 = math.exp %245 : vector<4x8x8xf32>
    %cst_83 = arith.constant dense<0.000000e+00> : vector<4x8xf32>
    %247 = vector.multi_reduction <add>, %246, %cst_83 [2] : vector<4x8x8xf32> to vector<4x8xf32>
    %248 = vector.shape_cast %247 : vector<4x8xf32> to vector<4x8x1xf32>
    %249 = tpu.reciprocal %248 {approx = true} : vector<4x8x1xf32> -> vector<4x8x1xf32>
    %250 = vector.broadcast %249 : vector<4x8x1xf32> to vector<4x8x8xf32>
    %251 = arith.mulf %246, %250 : vector<4x8x8xf32>
    "tpu.trace_start"() <{level = 10 : i32, message = "hqk,hkd->hqd"}> : () -> ()
    %cst_84 = arith.constant dense<0.000000e+00> : vector<4x8x8xf32>
    %252 = tpu.matmul %251, %233, %cst_84 {dimension_numbers = #tpu.dot_dimension_numbers<[2], [1], [1], [2], [0, 0, 0, 1, 1, 2], [0], [0]>} : vector<4x8x8xf32>, vector<4x8x8xf32>, vector<4x8x8xf32> -> vector<4x8x8xf32>
    "tpu.trace_stop"() : () -> ()
    %253 = tpu.transpose %251, [1, 0, 2] : vector<4x8x8xf32> -> vector<8x4x8xf32>
    "tpu.trace_start"() <{level = 10 : i32, message = "qhk,qrk->qhr"}> : () -> ()
    %cst_85 = arith.constant dense<0.000000e+00> : vector<8x4x10xf32>
    %254 = tpu.matmul %253, %1, %cst_85 {dimension_numbers = #tpu.dot_dimension_numbers<[2], [2], [1], [1], [0, 0, 0, 1, 1, 1], [0], [0]>} : vector<8x4x8xf32>, vector<8x10x8xf32>, vector<8x4x10xf32> -> vector<8x4x10xf32>
    "tpu.trace_stop"() : () -> ()
    "tpu.trace_start"() <{level = 10 : i32, message = "qhr,rd->qhd"}> : () -> ()
    %cst_86 = arith.constant dense<0.000000e+00> : vector<8x4x8xf32>
    %255 = tpu.matmul %254, %173, %cst_86 {dimension_numbers = #tpu.dot_dimension_numbers<[2], [0], [0, 1], [1], [0, 0, 0, 1, 1, 1], [], []>} : vector<8x4x10xf32>, vector<10x8xf32>, vector<8x4x8xf32> -> vector<8x4x8xf32>
    "tpu.trace_stop"() : () -> ()
    %256 = tpu.transpose %255, [1, 0, 2] : vector<8x4x8xf32> -> vector<4x8x8xf32>
    %257 = arith.addf %252, %256 : vector<4x8x8xf32>
    %258 = vector.extract_strided_slice %257 {offsets = [0, 0, 0], sizes = [1, 8, 8], strides = [1, 1, 1]} : vector<4x8x8xf32> to vector<1x8x8xf32>
    %259 = vector.shape_cast %258 : vector<1x8x8xf32> to vector<8x8xf32>
    %260 = vector.extract_strided_slice %257 {offsets = [1, 0, 0], sizes = [1, 8, 8], strides = [1, 1, 1]} : vector<4x8x8xf32> to vector<1x8x8xf32>
    %261 = vector.shape_cast %260 : vector<1x8x8xf32> to vector<8x8xf32>
    %262 = vector.extract_strided_slice %257 {offsets = [2, 0, 0], sizes = [1, 8, 8], strides = [1, 1, 1]} : vector<4x8x8xf32> to vector<1x8x8xf32>
    %263 = vector.shape_cast %262 : vector<1x8x8xf32> to vector<8x8xf32>
    %264 = vector.extract_strided_slice %257 {offsets = [3, 0, 0], sizes = [1, 8, 8], strides = [1, 1, 1]} : vector<4x8x8xf32> to vector<1x8x8xf32>
    %265 = vector.shape_cast %264 : vector<1x8x8xf32> to vector<8x8xf32>
    %266 = tpu.concatenate %259, %261, %263, %265 in 1 : vector<8x8xf32>, vector<8x8xf32>, vector<8x8xf32>, vector<8x8xf32> -> vector<8x32xf32>
    %cst_87 = arith.constant dense<0.000000e+00> : vector<8x32xf32>
    %267 = tpu.matmul %266, %175, %cst_87 {dimension_numbers = #tpu.dot_dimension_numbers<[1], [0], [0], [1], [0, 0, 1, 1], [], []>} : vector<8x32xf32>, vector<32x32xf32>, vector<8x32xf32> -> vector<8x32xf32>
    %268 = vector.broadcast %181 : vector<1x32xf32> to vector<8x32xf32>
    %269 = arith.addf %267, %268 : vector<8x32xf32>
    %270 = arith.addf %151, %269 : vector<8x32xf32>
    %cst_88 = arith.constant dense<0.000000e+00> : vector<8xf32>
    %271 = vector.multi_reduction <add>, %270, %cst_88 [1] : vector<8x32xf32> to vector<8xf32>
    %272 = vector.shape_cast %271 : vector<8xf32> to vector<8x1xf32>
    %cst_89 = arith.constant 3.200000e+01 : f32
    %273 = vector.broadcast %cst_89 : f32 to vector<8x1xf32>
    %274 = arith.divf %272, %273 : vector<8x1xf32>
    %275 = vector.broadcast %274 : vector<8x1xf32> to vector<8x32xf32>
    %276 = arith.subf %270, %275 : vector<8x32xf32>
    %277 = arith.mulf %276, %276 : vector<8x32xf32>
    %cst_90 = arith.constant dense<0.000000e+00> : vector<8xf32>
    %278 = vector.multi_reduction <add>, %277, %cst_90 [1] : vector<8x32xf32> to vector<8xf32>
    %279 = vector.shape_cast %278 : vector<8xf32> to vector<8x1xf32>
    %cst_91 = arith.constant 3.200000e+01 : f32
    %280 = vector.broadcast %cst_91 : f32 to vector<8x1xf32>
    %281 = arith.divf %279, %280 : vector<8x1xf32>
    %282 = vector.broadcast %274 : vector<8x1xf32> to vector<8x32xf32>
    %283 = arith.subf %270, %282 : vector<8x32xf32>
    %cst_92 = arith.constant 9.99999974E-6 : f32
    %284 = vector.broadcast %cst_92 : f32 to vector<8x1xf32>
    %285 = arith.addf %281, %284 : vector<8x1xf32>
    %286 = math.rsqrt %285 : vector<8x1xf32>
    %287 = vector.broadcast %286 : vector<8x1xf32> to vector<8x32xf32>
    %288 = arith.mulf %283, %287 : vector<8x32xf32>
    %289 = vector.broadcast %178 : vector<1x32xf32> to vector<8x32xf32>
    %290 = arith.mulf %288, %289 : vector<8x32xf32>
    %291 = vector.broadcast %179 : vector<1x32xf32> to vector<8x32xf32>
    %292 = arith.addf %290, %291 : vector<8x32xf32>
    %cst_93 = arith.constant dense<0.000000e+00> : vector<8x128xf32>
    %293 = tpu.matmul %292, %155, %cst_93 {dimension_numbers = #tpu.dot_dimension_numbers<[1], [0], [0], [1], [0, 0, 1, 1], [], []>} : vector<8x32xf32>, vector<32x128xf32>, vector<8x128xf32> -> vector<8x128xf32>
    %294 = vector.broadcast %164 : vector<1x128xf32> to vector<8x128xf32>
    %295 = arith.addf %293, %294 : vector<8x128xf32>
    %cst_94 = arith.constant 0.000000e+00 : f32
    %296 = vector.broadcast %cst_94 : f32 to vector<8x128xf32>
    %297 = arith.maximumf %295, %296 : vector<8x128xf32>
    %cst_95 = arith.constant dense<0.000000e+00> : vector<8x32xf32>
    %298 = tpu.matmul %297, %158, %cst_95 {dimension_numbers = #tpu.dot_dimension_numbers<[1], [0], [0], [1], [0, 0, 1, 1], [], []>} : vector<8x128xf32>, vector<128x32xf32>, vector<8x32xf32> -> vector<8x32xf32>
    %299 = arith.addf %270, %298 : vector<8x32xf32>
    %300 = vector.broadcast %167 : vector<1x32xf32> to vector<8x32xf32>
    %301 = arith.addf %299, %300 : vector<8x32xf32>
    %c0_96 = arith.constant 0 : index
    %c195_97 = arith.constant 195 : index
    %c0_98 = arith.constant 0 : index
    %302 = vector.load %arg2[%c0_96, %c195_97, %c0_98] : memref<2x224x128xf32, #tpu.memory_space<vmem>>, vector<1x1x128xf32>
    %303 = vector.shape_cast %302 : vector<1x1x128xf32> to vector<1x128xf32>
    %304 = vector.extract_strided_slice %303 {offsets = [0, 32], sizes = [1, 32], strides = [1, 1]} : vector<1x128xf32> to vector<1x32xf32>
    %305 = vector.extract_strided_slice %303 {offsets = [0, 64], sizes = [1, 32], strides = [1, 1]} : vector<1x128xf32> to vector<1x32xf32>
    %cst_99 = arith.constant dense<0.000000e+00> : vector<8xf32>
    %306 = vector.multi_reduction <add>, %301, %cst_99 [1] : vector<8x32xf32> to vector<8xf32>
    %307 = vector.shape_cast %306 : vector<8xf32> to vector<8x1xf32>
    %cst_100 = arith.constant 3.200000e+01 : f32
    %308 = vector.broadcast %cst_100 : f32 to vector<8x1xf32>
    %309 = arith.divf %307, %308 : vector<8x1xf32>
    %310 = vector.broadcast %309 : vector<8x1xf32> to vector<8x32xf32>
    %311 = arith.subf %301, %310 : vector<8x32xf32>
    %312 = arith.mulf %311, %311 : vector<8x32xf32>
    %cst_101 = arith.constant dense<0.000000e+00> : vector<8xf32>
    %313 = vector.multi_reduction <add>, %312, %cst_101 [1] : vector<8x32xf32> to vector<8xf32>
    %314 = vector.shape_cast %313 : vector<8xf32> to vector<8x1xf32>
    %cst_102 = arith.constant 3.200000e+01 : f32
    %315 = vector.broadcast %cst_102 : f32 to vector<8x1xf32>
    %316 = arith.divf %314, %315 : vector<8x1xf32>
    %317 = vector.broadcast %309 : vector<8x1xf32> to vector<8x32xf32>
    %318 = arith.subf %301, %317 : vector<8x32xf32>
    %cst_103 = arith.constant 9.99999974E-6 : f32
    %319 = vector.broadcast %cst_103 : f32 to vector<8x1xf32>
    %320 = arith.addf %316, %319 : vector<8x1xf32>
    %321 = math.rsqrt %320 : vector<8x1xf32>
    %322 = vector.broadcast %321 : vector<8x1xf32> to vector<8x32xf32>
    %323 = arith.mulf %318, %322 : vector<8x32xf32>
    %324 = vector.broadcast %304 : vector<1x32xf32> to vector<8x32xf32>
    %325 = arith.mulf %323, %324 : vector<8x32xf32>
    %326 = vector.broadcast %305 : vector<1x32xf32> to vector<8x32xf32>
    %327 = arith.addf %325, %326 : vector<8x32xf32>
    %c0_104 = arith.constant 0 : index
    %c0_105 = arith.constant 0 : index
    %328 = vector.load %arg3[%c0_104, %c0_105] : memref<8x32xf32, #tpu.memory_space<vmem>>, vector<8x32xf32>
    tpu.vector_store %arg3[%c0_104, %c0_105], %327 {strides = array<i32>} : memref<8x32xf32, #tpu.memory_space<vmem>>, vector<8x32xf32>,
    return
  }
}

</mosaic_0001>

<llo_original>
// kernel: tpu_custom_call.1
$region0: #{tpu_custom_call.1}
  #allocation0 [shape = 'u32[]', space=smem, size = 0x4, offset = 0x4, fixed_abs, tag = 'smem constant byte address 0x4 - core index']
  #allocation1 [shape = 'u32[144,128]{1,0:T(1,128)}', space=vmem, size = 0x12000, scoped, tag = 'internal scratch']
  %s0 = inlined_call_operand.vmem [shape: f32[8,10,8], index: 0, kind: input, shape index: {}]
  %s1 = inlined_call_operand.vmem [shape: f32[8,32], index: 1, kind: input, shape index: {}]
  %s2 = inlined_call_operand.hbm [shape: f32[2,224,128], index: 2, kind: input, shape index: {}]
  %s3 = inlined_call_operand.hbm [shape: f32[8,32], index: 3, kind: output, shape index: {}]
  %s4 = sld [smem:[#allocation0]]
  $region26: #{tpu_custom_call.1} parent=0
    _
  %s6 = ssub.s32 1, %s4
  %s7 = scalar_select 0, %s6, %s4
  $region1: #{tpu_custom_call.1} parent=0
    #allocation2 [shape = 'u8[229376]{0}', space=vmem, size = 0x38000, scoped, tag = 'input window, operand 2, single buffered']
    #allocation3 [shape = 's32[1]{0}', space=sflag, size = 0x4, scoped, tag = 'scoped memory for tpu_custom_call.1']
    #allocation4 [shape = 's32[1]{0}', space=sflag, size = 0x4, scoped, tag = 'scoped memory for tpu_custom_call.1']
    #allocation5 [shape = 'u8[4096]{0}', space=vmem, size = 0x1000, scoped, tag = 'output window, operand 0, single buffered']
    %8 = vsyncpa [#allocation3], 0
    %9 = vsyncpa [#allocation4], 0
    // Predicated region
    $region2: #{tpu_custom_call.1} parent=1 // pred_check
      _
    $region3: #{tpu_custom_call.1} parent=1 // pred_check_branch
      %11 = sbr.rel (0) target = $region5
    $region4: #{tpu_custom_call.1} parent=1 // pred_region
      _
    $region5: #{tpu_custom_call.1} parent=1 // pred_fallthru
      _
    // Predicated region
    $region6: #{tpu_custom_call.1} parent=1 // pred_check
      _
    $region7: #{tpu_custom_call.1} parent=1 // pred_check_branch
      %13 = sbr.rel (0) target = $region9
    $region8: #{tpu_custom_call.1} parent=1 // pred_region
      _
    $region9: #{tpu_custom_call.1} parent=1 // pred_fallthru
      _
    // Predicated region
    $region10: #{tpu_custom_call.1} parent=1 // pred_check
      _
    $region11: #{tpu_custom_call.1} parent=1 // pred_check_branch
      %15 = sbr.rel (0) target = $region13
    $region12: #{tpu_custom_call.1} parent=1 // pred_region
      %s17 = ssub.s32 7168, 7168
      %18 = vsyncadd [#allocation3], %s17
      %s19 = sshll.u32 [#allocation2], 4
      %s20 = int_to_ptr.vmem [resolvable:$true] %s19
      %25 = dma.hbm_to_vmem [thread:$0]  %s2, 7168, %s20, [#allocation3], 128, 128, 8
    $region13: #{tpu_custom_call.1} parent=1 // pred_fallthru
      _
    // Predicated region
    $region14: #{tpu_custom_call.1} parent=1 // pred_check
      _
    $region15: #{tpu_custom_call.1} parent=1 // pred_check_branch
      %27 = sbr.rel (0) target = $region17
    $region16: #{tpu_custom_call.1} parent=1 // pred_region
      %28 = dma.done [#allocation3], 7168
    $region17: #{tpu_custom_call.1} parent=1 // pred_fallthru
      _
    %v29 = vld [vmem:[%s1] sm:$0xff]
    %v30 = vld [vmem:[%s0] sm:$0xff]
    %v31 = vld [vmem:[%s0 + $0x8] sm:$0x3]
    %v32 = vld [vmem:[%s0 + $0x10] sm:$0xff]
    %v33 = vld [vmem:[%s0 + $0x18] sm:$0x3]
    %v34 = vld [vmem:[%s0 + $0x20] sm:$0xff]
    %v35 = vld [vmem:[%s0 + $0x28] sm:$0x3]
    %v36 = vld [vmem:[%s0 + $0x30] sm:$0xff]
    %v37 = vld [vmem:[%s0 + $0x38] sm:$0x3]
    %v38 = vld [vmem:[%s0 + $0x40] sm:$0xff]
    %v39 = vld [vmem:[%s0 + $0x48] sm:$0x3]
    %v40 = vld [vmem:[%s0 + $0x50] sm:$0xff]
    %v41 = vld [vmem:[%s0 + $0x58] sm:$0x3]
    %v42 = vld [vmem:[%s0 + $0x60] sm:$0xff]
    %v43 = vld [vmem:[%s0 + $0x68] sm:$0x3]
    %v44 = vld [vmem:[%s0 + $0x70] sm:$0xff]
    %v45 = vld [vmem:[%s0 + $0x78] sm:$0x3]
    %v46 = vld [vmem:[#allocation2] sm:$0xff]
    %v47 = vld [vmem:[#allocation2 + $0x8] sm:$0xff]
    %v48 = vld [vmem:[#allocation2 + $0x10] sm:$0xff]
    %v49 = vld [vmem:[#allocation2 + $0x18] sm:$0xff]
    %v50 = vld [vmem:[#allocation2 + $0x20] sm:$0xff]
    %v51 = vld [vmem:[#allocation2 + $0x28] sm:$0xff]
    %v52 = vld [vmem:[#allocation2 + $0x30] sm:$0xff]
    %v53 = vld [vmem:[#allocation2 + $0x38] sm:$0xff]
    %v54 = vld [vmem:[#allocation2 + $0x40] sm:$0xff]
    %v55 = vld [vmem:[#allocation2 + $0x48] sm:$0xff]
    %v56 = vld [vmem:[#allocation2 + $0x50] sm:$0xff]
    %v57 = vld [vmem:[#allocation2 + $0x58] sm:$0xff]
    %v58 = vld [vmem:[#allocation2 + $0x60] sm:$0xff]
    %v59 = vld [vmem:[#allocation2 + $0x68] sm:$0xff]
    %v60 = vld [vmem:[#allocation2 + $0x70] sm:$0xff]
    %v61 = vld [vmem:[#allocation2 + $0x78] sm:$0xff]
    %v62 = vld [vmem:[#allocation2 + $0x80] sm:$0xff]
    %v63 = vld [vmem:[#allocation2 + $0x88] sm:$0xff]
    %v64 = vld [vmem:[#allocation2 + $0x90] sm:$0xff]
    %v65 = vld [vmem:[#allocation2 + $0x98] sm:$0xff]
    %v66 = vld [vmem:[#allocation2 + $0xa0] sm:$0xff]
    %v67 = vld [vmem:[#allocation2 + $0xa8] sm:$0xff]
    %v68 = vld [vmem:[#allocation2 + $0xb0] sm:$0xff]
    %v69 = vld [vmem:[#allocation2 + $0xb8] sm:$0xff]
    %v70 = vld [vmem:[#allocation2 + $0xc0] sm:$0x1]
    %v71 = vld [vmem:[#allocation2 + $0xc1] sm:$0x1]
    %v72 = vld [vmem:[#allocation2 + $0xc2] sm:$0x1]
    %v73 = vld [vmem:[#allocation2 + $0xc3] sm:$0x1]
    %v74 = vld [vmem:[#allocation2 + $0xc8] sm:$0xff]
    %v75 = vld [vmem:[#allocation2 + $0xd0] sm:$0xff]
    %v76 = vld [vmem:[#allocation2 + $0xd8] sm:$0x3]
    %vm77 = vcmask 261120
    %v78 = vsel %vm77, %v29, 0.0
    %79 = vadd.xlane.f32.xlu0 %v78
    %v80 = vpop.xlane.xlu0 %79
    %v81 = vrcp.pop 32.0
    %v82 = vmul.f32 %v80, %v81
    %v83 = vsub.f32 %v29, %v82
    %v84 = vmul.f32 %v83, %v83
    %v85 = vsel %vm77, %v84, 0.0
    %86 = vadd.xlane.f32.xlu0 %v85
    %v87 = vpop.xlane.xlu0 %86
    %v88 = vmul.f32 %v87, %v81
    %v89 = vadd.f32 %v88, 1e-05
    %v90 = vrsqrt.pop %v89
    %v91 = vmul.f32 %v83, %v90
    %v92 = vlaneseq
    %v93 = vshrl.u32 %v92, 7
    %v94 = vsub.s32 0, %v93
    %v95 = vrot.slane %v70, %v94
    %v96 = vmul.f32 %v91, %v95
    %98 = vrot.lane.b32.xlu0 %v95, 96
    %v99 = vpop.permute.xlu0 %98
    %v101 = vadd.f32 %v96, %v99
    %v102 = vlaneseq
    %v103 = vshrl.u32 %v102, 7
    %v104 = vsub.s32 0, %v103
    %v105 = vrot.slane %v71, %v104
    %v107 = vsel %vm77, %v101, 0
    %109 = vmatprep.subr.mxu0 0.0
    %110 = vmatpush1.msra.mxu0 %v46
    %111 = vmatprep.subr.mxu0 0.0
    %112 = vmatpush1.msra.mxu0 %v47
    %113 = vmatprep.subr.mxu0 0.0
    %114 = vmatpush1.msra.mxu0 %v48
    %115 = vmatprep.subr.mxu0 0.0
    %116 = vmatpush1.msra.mxu0 %v49
    %117 = vmatprep.subr.mxu0 0.0
    %118 = vmatpush1.msra.mxu0 0.0
    %119 = vmatprep.subr.mxu0 0.0
    %120 = vmatpush1.msra.mxu0 0.0
    %121 = vmatprep.subr.mxu0 0.0
    %122 = vmatpush1.msra.mxu0 0.0
    %123 = vmatprep.subr.mxu0 0.0
    %124 = vmatpush1.msra.mxu0 0.0
    %125 = vmatprep.subr.mxu0 0.0
    %126 = vmatpush1.msra.mxu0 0.0
    %127 = vmatprep.subr.mxu0 0.0
    %128 = vmatpush1.msra.mxu0 0.0
    %129 = vmatprep.subr.mxu0 0.0
    %130 = vmatpush1.msra.mxu0 0.0
    %131 = vmatprep.subr.mxu0 0.0
    %132 = vmatpush1.msra.mxu0 0.0
    %133 = vmatprep.subr.mxu0 0.0
    %134 = vmatpush1.msra.mxu0 0.0
    %135 = vmatprep.subr.mxu0 0.0
    %136 = vmatpush1.msra.mxu0 0.0
    %137 = vmatprep.subr.mxu0 0.0
    %138 = vmatpush1.msra.mxu0 0.0
    %139 = vmatprep.subr.mxu0 0.0
    %140 = vmatpush1.msra.mxu0 0.0
    %141 = vmatprep.subr.mxu0 0.0
    %142 = vmatpush1.msra.mxu0 0.0
    %143 = vmatprep.subr.mxu0 0.0
    %144 = vmatpush1.msra.mxu0 0.0
    %145 = vmatprep.subr.mxu0 0.0
    %146 = vmatpush1.msra.mxu0 0.0
    %147 = vmatprep.subr.mxu0 0.0
    %148 = vmatpush1.msra.mxu0 0.0
    %149 = vmatprep.subr.mxu0 0.0
    %150 = vmatpush1.msra.mxu0 0.0
    %151 = vmatprep.subr.mxu0 0.0
    %152 = vmatpush1.msra.mxu0 0.0
    %153 = vmatprep.subr.mxu0 0.0
    %154 = vmatpush1.msra.mxu0 0.0
    %155 = vmatprep.subr.mxu0 0.0
    %156 = vmatpush1.msra.mxu0 0.0
    %157 = vmatprep.subr.mxu0 0.0
    %158 = vmatpush1.msra.mxu0 0.0
    %159 = vmatprep.subr.mxu0 0.0
    %160 = vmatpush1.msra.mxu0 0.0
    %161 = vmatprep.subr.mxu0 0.0
    %162 = vmatpush1.msra.mxu0 0.0
    %163 = vmatprep.subr.mxu0 0.0
    %164 = vmatpush1.msra.mxu0 0.0
    %165 = vmatprep.subr.mxu0 0.0
    %166 = vmatpush1.msra.mxu0 0.0
    %167 = vmatprep.subr.mxu0 0.0
    %168 = vmatpush1.msra.mxu0 0.0
    %169 = vmatprep.subr.mxu0 0.0
    %170 = vmatpush1.msra.mxu0 0.0
    %171 = vmatprep.subr.mxu0 0.0
    %172 = vmatpush1.msra.mxu0 0.0
    %173 = vmatprep.mubr.f32.mxu0 0.0
    %174 = vmatmul.mubr.f32.gmra.mrb[0].mxu0 %v107
    %v175 = vpop.f32.mrb[0].mxu0
    %v176 = vadd.f32 %v105, %v175
    %v177 = vpop.f32.mrb[0].mxu0
    %178 = vdwg.mxu0
    %180 = vrot.lane.b32.xlu0 %v176, 120
    %v181 = vpop.permute.xlu0 %180
    %182 = vrot.lane.b32.xlu0 %v176, 112
    %v183 = vpop.permute.xlu0 %182
    %184 = vrot.lane.b32.xlu0 %v176, 104
    %v185 = vpop.permute.xlu0 %184
    %vm186 = vcmask 64512
    %v187 = vsel %vm186, %v176, 0
    %v189 = vsel %vm186, %v181, 0
    %v191 = vsel %vm186, %v183, 0
    %v193 = vsel %vm186, %v185, 0
    %195 = vmatprep.subr.mxu0 0.0
    %196 = vmatpush1.msra.mxu0 %v74
    %197 = vmatprep.subr.mxu0 0.0
    %198 = vmatpush1.msra.mxu0 0.0
    %199 = vmatprep.subr.mxu0 0.0
    %200 = vmatpush1.msra.mxu0 0.0
    %201 = vmatprep.subr.mxu0 0.0
    %202 = vmatpush1.msra.mxu0 0.0
    %203 = vmatprep.subr.mxu0 0.0
    %204 = vmatpush1.msra.mxu0 0.0
    %205 = vmatprep.subr.mxu0 0.0
    %206 = vmatpush1.msra.mxu0 0.0
    %207 = vmatprep.subr.mxu0 0.0
    %208 = vmatpush1.msra.mxu0 0.0
    %209 = vmatprep.subr.mxu0 0.0
    %210 = vmatpush1.msra.mxu0 0.0
    %211 = vmatprep.subr.mxu0 0.0
    %212 = vmatpush1.msra.mxu0 0.0
    %213 = vmatprep.subr.mxu0 0.0
    %214 = vmatpush1.msra.mxu0 0.0
    %215 = vmatprep.subr.mxu0 0.0
    %216 = vmatpush1.msra.mxu0 0.0
    %217 = vmatprep.subr.mxu0 0.0
    %218 = vmatpush1.msra.mxu0 0.0
    %219 = vmatprep.subr.mxu0 0.0
    %220 = vmatpush1.msra.mxu0 0.0
    %221 = vmatprep.subr.mxu0 0.0
    %222 = vmatpush1.msra.mxu0 0.0
    %223 = vmatprep.subr.mxu0 0.0
    %224 = vmatpush1.msra.mxu0 0.0
    %225 = vmatprep.subr.mxu0 0.0
    %226 = vmatpush1.msra.mxu0 0.0
    %227 = vmatprep.subr.mxu0 0.0
    %228 = vmatpush1.msra.mxu0 0.0
    %229 = vmatprep.subr.mxu0 0.0
    %230 = vmatpush1.msra.mxu0 0.0
    %231 = vmatprep.subr.mxu0 0.0
    %232 = vmatpush1.msra.mxu0 0.0
    %233 = vmatprep.subr.mxu0 0.0
    %234 = vmatpush1.msra.mxu0 0.0
    %235 = vmatprep.subr.mxu0 0.0
    %236 = vmatpush1.msra.mxu0 0.0
    %237 = vmatprep.subr.mxu0 0.0
    %238 = vmatpush1.msra.mxu0 0.0
    %239 = vmatprep.subr.mxu0 0.0
    %240 = vmatpush1.msra.mxu0 0.0
    %241 = vmatprep.subr.mxu0 0.0
    %242 = vmatpush1.msra.mxu0 0.0
    %243 = vmatprep.subr.mxu0 0.0
    %244 = vmatpush1.msra.mxu0 0.0
    %245 = vmatprep.subr.mxu0 0.0
    %246 = vmatpush1.msra.mxu0 0.0
    %247 = vmatprep.subr.mxu0 0.0
    %248 = vmatpush1.msra.mxu0 0.0
    %249 = vmatprep.subr.mxu0 0.0
    %250 = vmatpush1.msra.mxu0 0.0
    %251 = vmatprep.subr.mxu0 0.0
    %252 = vmatpush1.msra.mxu0 0.0
    %253 = vmatprep.subr.mxu0 0.0
    %254 = vmatpush1.msra.mxu0 0.0
    %255 = vmatprep.subr.mxu0 0.0
    %256 = vmatpush1.msra.mxu0 0.0
    %257 = vmatprep.subr.mxu0 0.0
    %258 = vmatpush1.msra.mxu0 0.0
    %259 = vmatprep.mubr.f32.mxu0 0.0
    %260 = vmatmul.mubr.f32.gmra.mrb[0].mxu0 %v187
    %v261 = vpop.f32.mrb[0].mxu0
    %v262 = vadd.f32 0.0, %v261
    %v263 = vpop.f32.mrb[0].mxu0
    %264 = vmatprep.mubr.f32.mxu0 0.0
    %265 = vmatmul.mubr.f32.gmra.mrb[0].mxu0 %v189
    %v266 = vpop.f32.mrb[0].mxu0
    %v267 = vadd.f32 0.0, %v266
    %v268 = vpop.f32.mrb[0].mxu0
    %269 = vmatprep.mubr.f32.mxu0 0.0
    %270 = vmatmul.mubr.f32.gmra.mrb[0].mxu0 %v191
    %v271 = vpop.f32.mrb[0].mxu0
    %v272 = vadd.f32 0.0, %v271
    %v273 = vpop.f32.mrb[0].mxu0
    %274 = vmatprep.mubr.f32.mxu0 0.0
    %275 = vmatmul.mubr.f32.gmra.mrb[0].mxu0 %v193
    %v276 = vpop.f32.mrb[0].mxu0
    %v277 = vadd.f32 0.0, %v276
    %v278 = vpop.f32.mrb[0].mxu0
    %279 = vdwg.mxu0
    %v280 = vcombine.low %v262, %v272
    %v281 = vcombine.high %v262, %v272
    %v283 = vunpack.c.l.s4 1983009808
    %v284 = vunpack.c.0.s8 %v283
    %v285 = vlaneseq
    %v286 = vshrl.u32 %v285, 7
    %v287 = vsub.s32 %v284, %v286
    %v288 = vrot.slane %v280, %v287
    %v290 = vunpack.c.l.s4 1983009808
    %v291 = vunpack.c.0.s8 %v290
    %v292 = vlaneseq
    %v293 = vshrl.u32 %v292, 7
    %v294 = vsub.s32 %v291, %v293
    %v295 = vrot.slane %v281, %v294
    %v296 = vcombine.low %v267, %v277
    %v297 = vcombine.high %v267, %v277
    %v299 = vunpack.c.l.s4 1983009808
    %v300 = vunpack.c.0.s8 %v299
    %v301 = vlaneseq
    %v302 = vshrl.u32 %v301, 7
    %v303 = vsub.s32 %v300, %v302
    %v304 = vrot.slane %v296, %v303
    %v306 = vunpack.c.l.s4 1983009808
    %v307 = vunpack.c.0.s8 %v306
    %v308 = vlaneseq
    %v309 = vshrl.u32 %v308, 7
    %v310 = vsub.s32 %v307, %v309
    %v311 = vrot.slane %v297, %v310
    %v312 = vcombine.low %v288, %v304
    %v313 = vcombine.high %v288, %v304
    %v315 = vunpack.c.l.s4 1934713408
    %v316 = vunpack.c.0.s8 %v315
    %v317 = vlaneseq
    %v318 = vshrl.u32 %v317, 7
    %v319 = vsub.s32 %v316, %v318
    %v320 = vrot.slane %v312, %v319
    %v322 = vunpack.c.l.s4 1934713408
    %v323 = vunpack.c.0.s8 %v322
    %v324 = vlaneseq
    %v325 = vshrl.u32 %v324, 7
    %v326 = vsub.s32 %v323, %v325
    %v327 = vrot.slane %v313, %v326
    %v328 = vcombine.low %v295, %v311
    %v329 = vcombine.high %v295, %v311
    %v331 = vunpack.c.l.s4 1934713408
    %v332 = vunpack.c.0.s8 %v331
    %v333 = vlaneseq
    %v334 = vshrl.u32 %v333, 7
    %v335 = vsub.s32 %v332, %v334
    %v336 = vrot.slane %v328, %v335
    %v338 = vunpack.c.l.s4 1934713408
    %v339 = vunpack.c.0.s8 %v338
    %v340 = vlaneseq
    %v341 = vshrl.u32 %v340, 7
    %v342 = vsub.s32 %v339, %v341
    %v343 = vrot.slane %v329, %v342
    %v344 = vcombine.high %v320, 0.0
    %v345 = vcombine.high %v327, 0.0
    %v346 = vcombine.high %v336, 0.0
    %v347 = vcombine.high %v343, 0.0
    %vm348 = vcmask 80896
    %v350 = vsel %vm348, %v320, 0
    %vm352 = vcmask 1041408
    %v354 = vsel %vm352, %v31, 0
    %356 = vmatprep.subr.mxu0 0.0
    %357 = vmatpush1.msra.mxu0 %v30
    %358 = vmatprep.subr.mxu0 0.0
    %359 = vmatpush1.msra.mxu0 %v354
    %360 = vmatprep.subr.mxu0 0.0
    %361 = vmatpush1.msra.mxu0 0.0
    %362 = vmatprep.subr.mxu0 0.0
    %363 = vmatpush1.msra.mxu0 0.0
    %364 = vmatprep.subr.mxu0 0.0
    %365 = vmatpush1.msra.mxu0 0.0
    %366 = vmatprep.subr.mxu0 0.0
    %367 = vmatpush1.msra.mxu0 0.0
    %368 = vmatprep.subr.mxu0 0.0
    %369 = vmatpush1.msra.mxu0 0.0
    %370 = vmatprep.subr.mxu0 0.0
    %371 = vmatpush1.msra.mxu0 0.0
    %372 = vmatprep.subr.mxu0 0.0
    %373 = vmatpush1.msra.mxu0 0.0
    %374 = vmatprep.subr.mxu0 0.0
    %375 = vmatpush1.msra.mxu0 0.0
    %376 = vmatprep.subr.mxu0 0.0
    %377 = vmatpush1.msra.mxu0 0.0
    %378 = vmatprep.subr.mxu0 0.0
    %379 = vmatpush1.msra.mxu0 0.0
    %380 = vmatprep.subr.mxu0 0.0
    %381 = vmatpush1.msra.mxu0 0.0
    %382 = vmatprep.subr.mxu0 0.0
    %383 = vmatpush1.msra.mxu0 0.0
    %384 = vmatprep.subr.mxu0 0.0
    %385 = vmatpush1.msra.mxu0 0.0
    %386 = vmatprep.subr.mxu0 0.0
    %387 = vmatpush1.msra.mxu0 0.0
    %388 = vmatprep.subr.mxu0 0.0
    %389 = vmatpush1.msra.mxu0 0.0
    %390 = vmatprep.subr.mxu0 0.0
    %391 = vmatpush1.msra.mxu0 0.0
    %392 = vmatprep.subr.mxu0 0.0
    %393 = vmatpush1.msra.mxu0 0.0
    %394 = vmatprep.subr.mxu0 0.0
    %395 = vmatpush1.msra.mxu0 0.0
    %396 = vmatprep.subr.mxu0 0.0
    %397 = vmatpush1.msra.mxu0 0.0
    %398 = vmatprep.subr.mxu0 0.0
    %399 = vmatpush1.msra.mxu0 0.0
    %400 = vmatprep.subr.mxu0 0.0
    %401 = vmatpush1.msra.mxu0 0.0
    %402 = vmatprep.subr.mxu0 0.0
    %403 = vmatpush1.msra.mxu0 0.0
    %404 = vmatprep.subr.mxu0 0.0
    %405 = vmatpush1.msra.mxu0 0.0
    %406 = vmatprep.subr.mxu0 0.0
    %407 = vmatpush1.msra.mxu0 0.0
    %408 = vmatprep.subr.mxu0 0.0
    %409 = vmatpush1.msra.mxu0 0.0
    %410 = vmatprep.subr.mxu0 0.0
    %411 = vmatpush1.msra.mxu0 0.0
    %412 = vmatprep.subr.mxu0 0.0
    %413 = vmatpush1.msra.mxu0 0.0
    %414 = vmatprep.subr.mxu0 0.0
    %415 = vmatpush1.msra.mxu0 0.0
    %416 = vmatprep.subr.mxu0 0.0
    %417 = vmatpush1.msra.mxu0 0.0
    %418 = vmatprep.subr.mxu0 0.0
    %419 = vmatpush1.msra.mxu0 0.0
    %420 = vmatprep.mubr.f32.mxu0 0.0
    %421 = vmatmul.mubr.f32.gmra.mrb[0].mxu0 %v350
    %v422 = vpop.f32.mrb[0].mxu0
    %v423 = vadd.f32 0.0, %v422
    %v424 = vpop.f32.mrb[0].mxu0
    %425 = vdwg.mxu0
    %v427 = vsel %vm348, %v344, 0
    %v430 = vsel %vm352, %v33, 0
    %432 = vmatprep.subr.mxu0 0.0
    %433 = vmatpush1.msra.mxu0 %v32
    %434 = vmatprep.subr.mxu0 0.0
    %435 = vmatpush1.msra.mxu0 %v430
    %436 = vmatprep.subr.mxu0 0.0
    %437 = vmatpush1.msra.mxu0 0.0
    %438 = vmatprep.subr.mxu0 0.0
    %439 = vmatpush1.msra.mxu0 0.0
    %440 = vmatprep.subr.mxu0 0.0
    %441 = vmatpush1.msra.mxu0 0.0
    %442 = vmatprep.subr.mxu0 0.0
    %443 = vmatpush1.msra.mxu0 0.0
    %444 = vmatprep.subr.mxu0 0.0
    %445 = vmatpush1.msra.mxu0 0.0
    %446 = vmatprep.subr.mxu0 0.0
    %447 = vmatpush1.msra.mxu0 0.0
    %448 = vmatprep.subr.mxu0 0.0
    %449 = vmatpush1.msra.mxu0 0.0
    %450 = vmatprep.subr.mxu0 0.0
    %451 = vmatpush1.msra.mxu0 0.0
    %452 = vmatprep.subr.mxu0 0.0
    %453 = vmatpush1.msra.mxu0 0.0
    %454 = vmatprep.subr.mxu0 0.0
    %455 = vmatpush1.msra.mxu0 0.0
    %456 = vmatprep.subr.mxu0 0.0
    %457 = vmatpush1.msra.mxu0 0.0
    %458 = vmatprep.subr.mxu0 0.0
    %459 = vmatpush1.msra.mxu0 0.0
    %460 = vmatprep.subr.mxu0 0.0
    %461 = vmatpush1.msra.mxu0 0.0
    %462 = vmatprep.subr.mxu0 0.0
    %463 = vmatpush1.msra.mxu0 0.0
    %464 = vmatprep.subr.mxu0 0.0
    %465 = vmatpush1.msra.mxu0 0.0
    %466 = vmatprep.subr.mxu0 0.0
    %467 = vmatpush1.msra.mxu0 0.0
    %468 = vmatprep.subr.mxu0 0.0
    %469 = vmatpush1.msra.mxu0 0.0
    %470 = vmatprep.subr.mxu0 0.0
    %471 = vmatpush1.msra.mxu0 0.0
    %472 = vmatprep.subr.mxu0 0.0
    %473 = vmatpush1.msra.mxu0 0.0
    %474 = vmatprep.subr.mxu0 0.0
    %475 = vmatpush1.msra.mxu0 0.0
    %476 = vmatprep.subr.mxu0 0.0
    %477 = vmatpush1.msra.mxu0 0.0
    %478 = vmatprep.subr.mxu0 0.0
    %479 = vmatpush1.msra.mxu0 0.0
    %480 = vmatprep.subr.mxu0 0.0
    %481 = vmatpush1.msra.mxu0 0.0
    %482 = vmatprep.subr.mxu0 0.0
    %483 = vmatpush1.msra.mxu0 0.0
    %484 = vmatprep.subr.mxu0 0.0
    %485 = vmatpush1.msra.mxu0 0.0
    %486 = vmatprep.subr.mxu0 0.0
    %487 = vmatpush1.msra.mxu0 0.0
    %488 = vmatprep.subr.mxu0 0.0
    %489 = vmatpush1.msra.mxu0 0.0
    %490 = vmatprep.subr.mxu0 0.0
    %491 = vmatpush1.msra.mxu0 0.0
    %492 = vmatprep.subr.mxu0 0.0
    %493 = vmatpush1.msra.mxu0 0.0
    %494 = vmatprep.subr.mxu0 0.0
    %495 = vmatpush1.msra.mxu0 0.0
    %496 = vmatprep.mubr.f32.mxu0 0.0
    %497 = vmatmul.mubr.f32.gmra.mrb[0].mxu0 %v427
    %v498 = vpop.f32.mrb[0].mxu0
    %v499 = vadd.f32 0.0, %v498
    %v500 = vpop.f32.mrb[0].mxu0
    %501 = vdwg.mxu0
    %v503 = vsel %vm348, %v327, 0
    %v506 = vsel %vm352, %v35, 0
    %508 = vmatprep.subr.mxu0 0.0
    %509 = vmatpush1.msra.mxu0 %v34
    %510 = vmatprep.subr.mxu0 0.0
    %511 = vmatpush1.msra.mxu0 %v506
    %512 = vmatprep.subr.mxu0 0.0
    %513 = vmatpush1.msra.mxu0 0.0
    %514 = vmatprep.subr.mxu0 0.0
    %515 = vmatpush1.msra.mxu0 0.0
    %516 = vmatprep.subr.mxu0 0.0
    %517 = vmatpush1.msra.mxu0 0.0
    %518 = vmatprep.subr.mxu0 0.0
    %519 = vmatpush1.msra.mxu0 0.0
    %520 = vmatprep.subr.mxu0 0.0
    %521 = vmatpush1.msra.mxu0 0.0
    %522 = vmatprep.subr.mxu0 0.0
    %523 = vmatpush1.msra.mxu0 0.0
    %524 = vmatprep.subr.mxu0 0.0
    %525 = vmatpush1.msra.mxu0 0.0
    %526 = vmatprep.subr.mxu0 0.0
    %527 = vmatpush1.msra.mxu0 0.0
    %528 = vmatprep.subr.mxu0 0.0
    %529 = vmatpush1.msra.mxu0 0.0
    %530 = vmatprep.subr.mxu0 0.0
    %531 = vmatpush1.msra.mxu0 0.0
    %532 = vmatprep.subr.mxu0 0.0
    %533 = vmatpush1.msra.mxu0 0.0
    %534 = vmatprep.subr.mxu0 0.0
    %535 = vmatpush1.msra.mxu0 0.0
    %536 = vmatprep.subr.mxu0 0.0
    %537 = vmatpush1.msra.mxu0 0.0
    %538 = vmatprep.subr.mxu0 0.0
    %539 = vmatpush1.msra.mxu0 0.0
    %540 = vmatprep.subr.mxu0 0.0
    %541 = vmatpush1.msra.mxu0 0.0
    %542 = vmatprep.subr.mxu0 0.0
    %543 = vmatpush1.msra.mxu0 0.0
    %544 = vmatprep.subr.mxu0 0.0
    %545 = vmatpush1.msra.mxu0 0.0
    %546 = vmatprep.subr.mxu0 0.0
    %547 = vmatpush1.msra.mxu0 0.0
    %548 = vmatprep.subr.mxu0 0.0
    %549 = vmatpush1.msra.mxu0 0.0
    %550 = vmatprep.subr.mxu0 0.0
    %551 = vmatpush1.msra.mxu0 0.0
    %552 = vmatprep.subr.mxu0 0.0
    %553 = vmatpush1.msra.mxu0 0.0
    %554 = vmatprep.subr.mxu0 0.0
    %555 = vmatpush1.msra.mxu0 0.0
    %556 = vmatprep.subr.mxu0 0.0
    %557 = vmatpush1.msra.mxu0 0.0
    %558 = vmatprep.subr.mxu0 0.0
    %559 = vmatpush1.msra.mxu0 0.0
    %560 = vmatprep.subr.mxu0 0.0
    %561 = vmatpush1.msra.mxu0 0.0
    %562 = vmatprep.subr.mxu0 0.0
    %563 = vmatpush1.msra.mxu0 0.0
    %564 = vmatprep.subr.mxu0 0.0
    %565 = vmatpush1.msra.mxu0 0.0
    %566 = vmatprep.subr.mxu0 0.0
    %567 = vmatpush1.msra.mxu0 0.0
    %568 = vmatprep.subr.mxu0 0.0
    %569 = vmatpush1.msra.mxu0 0.0
    %570 = vmatprep.subr.mxu0 0.0
    %571 = vmatpush1.msra.mxu0 0.0
    %572 = vmatprep.mubr.f32.mxu0 0.0
    %573 = vmatmul.mubr.f32.gmra.mrb[0].mxu0 %v503
    %v574 = vpop.f32.mrb[0].mxu0
    %v575 = vadd.f32 0.0, %v574
    %v576 = vpop.f32.mrb[0].mxu0
    %577 = vdwg.mxu0
    %v579 = vsel %vm348, %v345, 0
    %v582 = vsel %vm352, %v37, 0
    %584 = vmatprep.subr.mxu0 0.0
    %585 = vmatpush1.msra.mxu0 %v36
    %586 = vmatprep.subr.mxu0 0.0
    %587 = vmatpush1.msra.mxu0 %v582
    %588 = vmatprep.subr.mxu0 0.0
    %589 = vmatpush1.msra.mxu0 0.0
    %590 = vmatprep.subr.mxu0 0.0
    %591 = vmatpush1.msra.mxu0 0.0
    %592 = vmatprep.subr.mxu0 0.0
    %593 = vmatpush1.msra.mxu0 0.0
    %594 = vmatprep.subr.mxu0 0.0
    %595 = vmatpush1.msra.mxu0 0.0
    %596 = vmatprep.subr.mxu0 0.0
    %597 = vmatpush1.msra.mxu0 0.0
    %598 = vmatprep.subr.mxu0 0.0
    %599 = vmatpush1.msra.mxu0 0.0
    %600 = vmatprep.subr.mxu0 0.0
    %601 = vmatpush1.msra.mxu0 0.0
    %602 = vmatprep.subr.mxu0 0.0
    %603 = vmatpush1.msra.mxu0 0.0
    %604 = vmatprep.subr.mxu0 0.0
    %605 = vmatpush1.msra.mxu0 0.0
    %606 = vmatprep.subr.mxu0 0.0
    %607 = vmatpush1.msra.mxu0 0.0
    %608 = vmatprep.subr.mxu0 0.0
    %609 = vmatpush1.msra.mxu0 0.0
    %610 = vmatprep.subr.mxu0 0.0
    %611 = vmatpush1.msra.mxu0 0.0
    %612 = vmatprep.subr.mxu0 0.0
    %613 = vmatpush1.msra.mxu0 0.0
    %614 = vmatprep.subr.mxu0 0.0
    %615 = vmatpush1.msra.mxu0 0.0
    %616 = vmatprep.subr.mxu0 0.0
    %617 = vmatpush1.msra.mxu0 0.0
    %618 = vmatprep.subr.mxu0 0.0
    %619 = vmatpush1.msra.mxu0 0.0
    %620 = vmatprep.subr.mxu0 0.0
    %621 = vmatpush1.msra.mxu0 0.0
    %622 = vmatprep.subr.mxu0 0.0
    %623 = vmatpush1.msra.mxu0 0.0
    %624 = vmatprep.subr.mxu0 0.0
    %625 = vmatpush1.msra.mxu0 0.0
    %626 = vmatprep.subr.mxu0 0.0
    %627 = vmatpush1.msra.mxu0 0.0
    %628 = vmatprep.subr.mxu0 0.0
    %629 = vmatpush1.msra.mxu0 0.0
    %630 = vmatprep.subr.mxu0 0.0
    %631 = vmatpush1.msra.mxu0 0.0
    %632 = vmatprep.subr.mxu0 0.0
    %633 = vmatpush1.msra.mxu0 0.0
    %634 = vmatprep.subr.mxu0 0.0
    %635 = vmatpush1.msra.mxu0 0.0
    %636 = vmatprep.subr.mxu0 0.0
    %637 = vmatpush1.msra.mxu0 0.0
    %638 = vmatprep.subr.mxu0 0.0
    %639 = vmatpush1.msra.mxu0 0.0
    %640 = vmatprep.subr.mxu0 0.0
    %641 = vmatpush1.msra.mxu0 0.0
    %642 = vmatprep.subr.mxu0 0.0
    %643 = vmatpush1.msra.mxu0 0.0
    %644 = vmatprep.subr.mxu0 0.0
    %645 = vmatpush1.msra.mxu0 0.0
    %646 = vmatprep.subr.mxu0 0.0
    %647 = vmatpush1.msra.mxu0 0.0
    %648 = vmatprep.mubr.f32.mxu0 0.0
    %649 = vmatmul.mubr.f32.gmra.mrb[0].mxu0 %v579
    %v650 = vpop.f32.mrb[0].mxu0
    %v651 = vadd.f32 0.0, %v650
    %v652 = vpop.f32.mrb[0].mxu0
    %653 = vdwg.mxu0
    %v655 = vsel %vm348, %v336, 0
    %v658 = vsel %vm352, %v39, 0
    %660 = vmatprep.subr.mxu0 0.0
    %661 = vmatpush1.msra.mxu0 %v38
    %662 = vmatprep.subr.mxu0 0.0
    %663 = vmatpush1.msra.mxu0 %v658
    %664 = vmatprep.subr.mxu0 0.0
    %665 = vmatpush1.msra.mxu0 0.0
    %666 = vmatprep.subr.mxu0 0.0
    %667 = vmatpush1.msra.mxu0 0.0
    %668 = vmatprep.subr.mxu0 0.0
    %669 = vmatpush1.msra.mxu0 0.0
    %670 = vmatprep.subr.mxu0 0.0
    %671 = vmatpush1.msra.mxu0 0.0
    %672 = vmatprep.subr.mxu0 0.0
    %673 = vmatpush1.msra.mxu0 0.0
    %674 = vmatprep.subr.mxu0 0.0
    %675 = vmatpush1.msra.mxu0 0.0
    %676 = vmatprep.subr.mxu0 0.0
    %677 = vmatpush1.msra.mxu0 0.0
    %678 = vmatprep.subr.mxu0 0.0
    %679 = vmatpush1.msra.mxu0 0.0
    %680 = vmatprep.subr.mxu0 0.0
    %681 = vmatpush1.msra.mxu0 0.0
    %682 = vmatprep.subr.mxu0 0.0
    %683 = vmatpush1.msra.mxu0 0.0
    %684 = vmatprep.subr.mxu0 0.0
    %685 = vmatpush1.msra.mxu0 0.0
    %686 = vmatprep.subr.mxu0 0.0
    %687 = vmatpush1.msra.mxu0 0.0
    %688 = vmatprep.subr.mxu0 0.0
    %689 = vmatpush1.msra.mxu0 0.0
    %690 = vmatprep.subr.mxu0 0.0
    %691 = vmatpush1.msra.mxu0 0.0
    %692 = vmatprep.subr.mxu0 0.0
    %693 = vmatpush1.msra.mxu0 0.0
    %694 = vmatprep.subr.mxu0 0.0
    %695 = vmatpush1.msra.mxu0 0.0
    %696 = vmatprep.subr.mxu0 0.0
    %697 = vmatpush1.msra.mxu0 0.0
    %698 = vmatprep.subr.mxu0 0.0
    %699 = vmatpush1.msra.mxu0 0.0
    %700 = vmatprep.subr.mxu0 0.0
    %701 = vmatpush1.msra.mxu0 0.0
    %702 = vmatprep.subr.mxu0 0.0
    %703 = vmatpush1.msra.mxu0 0.0
    %704 = vmatprep.subr.mxu0 0.0
    %705 = vmatpush1.msra.mxu0 0.0
    %706 = vmatprep.subr.mxu0 0.0
    %707 = vmatpush1.msra.mxu0 0.0
    %708 = vmatprep.subr.mxu0 0.0
    %709 = vmatpush1.msra.mxu0 0.0
    %710 = vmatprep.subr.mxu0 0.0
    %711 = vmatpush1.msra.mxu0 0.0
    %712 = vmatprep.subr.mxu0 0.0
    %713 = vmatpush1.msra.mxu0 0.0
    %714 = vmatprep.subr.mxu0 0.0
    %715 = vmatpush1.msra.mxu0 0.0
    %716 = vmatprep.subr.mxu0 0.0
    %717 = vmatpush1.msra.mxu0 0.0
    %718 = vmatprep.subr.mxu0 0.0
    %719 = vmatpush1.msra.mxu0 0.0
    %720 = vmatprep.subr.mxu0 0.0
    %721 = vmatpush1.msra.mxu0 0.0
    %722 = vmatprep.subr.mxu0 0.0
    %723 = vmatpush1.msra.mxu0 0.0
    %724 = vmatprep.mubr.f32.mxu0 0.0
    %725 = vmatmul.mubr.f32.gmra.mrb[0].mxu0 %v655
    %v726 = vpop.f32.mrb[0].mxu0
    %v727 = vadd.f32 0.0, %v726
    %v728 = vpop.f32.mrb[0].mxu0
    %729 = vdwg.mxu0
    %v731 = vsel %vm348, %v346, 0
    %v734 = vsel %vm352, %v41, 0
    %736 = vmatprep.subr.mxu0 0.0
    %737 = vmatpush1.msra.mxu0 %v40
    %738 = vmatprep.subr.mxu0 0.0
    %739 = vmatpush1.msra.mxu0 %v734
    %740 = vmatprep.subr.mxu0 0.0
    %741 = vmatpush1.msra.mxu0 0.0
    %742 = vmatprep.subr.mxu0 0.0
    %743 = vmatpush1.msra.mxu0 0.0
    %744 = vmatprep.subr.mxu0 0.0
    %745 = vmatpush1.msra.mxu0 0.0
    %746 = vmatprep.subr.mxu0 0.0
    %747 = vmatpush1.msra.mxu0 0.0
    %748 = vmatprep.subr.mxu0 0.0
    %749 = vmatpush1.msra.mxu0 0.0
    %750 = vmatprep.subr.mxu0 0.0
    %751 = vmatpush1.msra.mxu0 0.0
    %752 = vmatprep.subr.mxu0 0.0
    %753 = vmatpush1.msra.mxu0 0.0
    %754 = vmatprep.subr.mxu0 0.0
    %755 = vmatpush1.msra.mxu0 0.0
    %756 = vmatprep.subr.mxu0 0.0
    %757 = vmatpush1.msra.mxu0 0.0
    %758 = vmatprep.subr.mxu0 0.0
    %759 = vmatpush1.msra.mxu0 0.0
    %760 = vmatprep.subr.mxu0 0.0
    %761 = vmatpush1.msra.mxu0 0.0
    %762 = vmatprep.subr.mxu0 0.0
    %763 = vmatpush1.msra.mxu0 0.0
    %764 = vmatprep.subr.mxu0 0.0
    %765 = vmatpush1.msra.mxu0 0.0
    %766 = vmatprep.subr.mxu0 0.0
    %767 = vmatpush1.msra.mxu0 0.0
    %768 = vmatprep.subr.mxu0 0.0
    %769 = vmatpush1.msra.mxu0 0.0
    %770 = vmatprep.subr.mxu0 0.0
    %771 = vmatpush1.msra.mxu0 0.0
    %772 = vmatprep.subr.mxu0 0.0
    %773 = vmatpush1.msra.mxu0 0.0
    %774 = vmatprep.subr.mxu0 0.0
    %775 = vmatpush1.msra.mxu0 0.0
    %776 = vmatprep.subr.mxu0 0.0
    %777 = vmatpush1.msra.mxu0 0.0
    %778 = vmatprep.subr.mxu0 0.0
    %779 = vmatpush1.msra.mxu0 0.0
    %780 = vmatprep.subr.mxu0 0.0
    %781 = vmatpush1.msra.mxu0 0.0
    %782 = vmatprep.subr.mxu0 0.0
    %783 = vmatpush1.msra.mxu0 0.0
    %784 = vmatprep.subr.mxu0 0.0
    %785 = vmatpush1.msra.mxu0 0.0
    %786 = vmatprep.subr.mxu0 0.0
    %787 = vmatpush1.msra.mxu0 0.0
    %788 = vmatprep.subr.mxu0 0.0
    %789 = vmatpush1.msra.mxu0 0.0
    %790 = vmatprep.subr.mxu0 0.0
    %791 = vmatpush1.msra.mxu0 0.0
    %792 = vmatprep.subr.mxu0 0.0
    %793 = vmatpush1.msra.mxu0 0.0
    %794 = vmatprep.subr.mxu0 0.0
    %795 = vmatpush1.msra.mxu0 0.0
    %796 = vmatprep.subr.mxu0 0.0
    %797 = vmatpush1.msra.mxu0 0.0
    %798 = vmatprep.subr.mxu0 0.0
    %799 = vmatpush1.msra.mxu0 0.0
    %800 = vmatprep.mubr.f32.mxu0 0.0
    %801 = vmatmul.mubr.f32.gmra.mrb[0].mxu0 %v731
    %v802 = vpop.f32.mrb[0].mxu0
    %v803 = vadd.f32 0.0, %v802
    %v804 = vpop.f32.mrb[0].mxu0
    %805 = vdwg.mxu0
    %v807 = vsel %vm348, %v343, 0
    %v810 = vsel %vm352, %v43, 0
    %812 = vmatprep.subr.mxu0 0.0
    %813 = vmatpush1.msra.mxu0 %v42
    %814 = vmatprep.subr.mxu0 0.0
    %815 = vmatpush1.msra.mxu0 %v810
    %816 = vmatprep.subr.mxu0 0.0
    %817 = vmatpush1.msra.mxu0 0.0
    %818 = vmatprep.subr.mxu0 0.0
    %819 = vmatpush1.msra.mxu0 0.0
    %820 = vmatprep.subr.mxu0 0.0
    %821 = vmatpush1.msra.mxu0 0.0
    %822 = vmatprep.subr.mxu0 0.0
    %823 = vmatpush1.msra.mxu0 0.0
    %824 = vmatprep.subr.mxu0 0.0
    %825 = vmatpush1.msra.mxu0 0.0
    %826 = vmatprep.subr.mxu0 0.0
    %827 = vmatpush1.msra.mxu0 0.0
    %828 = vmatprep.subr.mxu0 0.0
    %829 = vmatpush1.msra.mxu0 0.0
    %830 = vmatprep.subr.mxu0 0.0
    %831 = vmatpush1.msra.mxu0 0.0
    %832 = vmatprep.subr.mxu0 0.0
    %833 = vmatpush1.msra.mxu0 0.0
    %834 = vmatprep.subr.mxu0 0.0
    %835 = vmatpush1.msra.mxu0 0.0
    %836 = vmatprep.subr.mxu0 0.0
    %837 = vmatpush1.msra.mxu0 0.0
    %838 = vmatprep.subr.mxu0 0.0
    %839 = vmatpush1.msra.mxu0 0.0
    %840 = vmatprep.subr.mxu0 0.0
    %841 = vmatpush1.msra.mxu0 0.0
    %842 = vmatprep.subr.mxu0 0.0
    %843 = vmatpush1.msra.mxu0 0.0
    %844 = vmatprep.subr.mxu0 0.0
    %845 = vmatpush1.msra.mxu0 0.0
    %846 = vmatprep.subr.mxu0 0.0
    %847 = vmatpush1.msra.mxu0 0.0
    %848 = vmatprep.subr.mxu0 0.0
    %849 = vmatpush1.msra.mxu0 0.0
    %850 = vmatprep.subr.mxu0 0.0
    %851 = vmatpush1.msra.mxu0 0.0
    %852 = vmatprep.subr.mxu0 0.0
    %853 = vmatpush1.msra.mxu0 0.0
    %854 = vmatprep.subr.mxu0 0.0
    %855 = vmatpush1.msra.mxu0 0.0
    %856 = vmatprep.subr.mxu0 0.0
    %857 = vmatpush1.msra.mxu0 0.0
    %858 = vmatprep.subr.mxu0 0.0
    %859 = vmatpush1.msra.mxu0 0.0
    %860 = vmatprep.subr.mxu0 0.0
    %861 = vmatpush1.msra.mxu0 0.0
    %862 = vmatprep.subr.mxu0 0.0
    %863 = vmatpush1.msra.mxu0 0.0
    %864 = vmatprep.subr.mxu0 0.0
    %865 = vmatpush1.msra.mxu0 0.0
    %866 = vmatprep.subr.mxu0 0.0
    %867 = vmatpush1.msra.mxu0 0.0
    %868 = vmatprep.subr.mxu0 0.0
    %869 = vmatpush1.msra.mxu0 0.0
    %870 = vmatprep.subr.mxu0 0.0
    %871 = vmatpush1.msra.mxu0 0.0
    %872 = vmatprep.subr.mxu0 0.0
    %873 = vmatpush1.msra.mxu0 0.0
    %874 = vmatprep.subr.mxu0 0.0
    %875 = vmatpush1.msra.mxu0 0.0
    %876 = vmatprep.mubr.f32.mxu0 0.0
    %877 = vmatmul.mubr.f32.gmra.mrb[0].mxu0 %v807
    %v878 = vpop.f32.mrb[0].mxu0
    %v879 = vadd.f32 0.0, %v878
    %v880 = vpop.f32.mrb[0].mxu0
    %881 = vdwg.mxu0
    %v883 = vsel %vm348, %v347, 0
    %v886 = vsel %vm352, %v45, 0
    %888 = vmatprep.subr.mxu0 0.0
    %889 = vmatpush1.msra.mxu0 %v44
    %890 = vmatprep.subr.mxu0 0.0
    %891 = vmatpush1.msra.mxu0 %v886
    %892 = vmatprep.subr.mxu0 0.0
    %893 = vmatpush1.msra.mxu0 0.0
    %894 = vmatprep.subr.mxu0 0.0
    %895 = vmatpush1.msra.mxu0 0.0
    %896 = vmatprep.subr.mxu0 0.0
    %897 = vmatpush1.msra.mxu0 0.0
    %898 = vmatprep.subr.mxu0 0.0
    %899 = vmatpush1.msra.mxu0 0.0
    %900 = vmatprep.subr.mxu0 0.0
    %901 = vmatpush1.msra.mxu0 0.0
    %902 = vmatprep.subr.mxu0 0.0
    %903 = vmatpush1.msra.mxu0 0.0
    %904 = vmatprep.subr.mxu0 0.0
    %905 = vmatpush1.msra.mxu0 0.0
    %906 = vmatprep.subr.mxu0 0.0
    %907 = vmatpush1.msra.mxu0 0.0
    %908 = vmatprep.subr.mxu0 0.0
    %909 = vmatpush1.msra.mxu0 0.0
    %910 = vmatprep.subr.mxu0 0.0
    %911 = vmatpush1.msra.mxu0 0.0
    %912 = vmatprep.subr.mxu0 0.0
    %913 = vmatpush1.msra.mxu0 0.0
    %914 = vmatprep.subr.mxu0 0.0
    %915 = vmatpush1.msra.mxu0 0.0
    %916 = vmatprep.subr.mxu0 0.0
    %917 = vmatpush1.msra.mxu0 0.0
    %918 = vmatprep.subr.mxu0 0.0
    %919 = vmatpush1.msra.mxu0 0.0
    %920 = vmatprep.subr.mxu0 0.0
    %921 = vmatpush1.msra.mxu0 0.0
    %922 = vmatprep.subr.mxu0 0.0
    %923 = vmatpush1.msra.mxu0 0.0
    %924 = vmatprep.subr.mxu0 0.0
    %925 = vmatpush1.msra.mxu0 0.0
    %926 = vmatprep.subr.mxu0 0.0
    %927 = vmatpush1.msra.mxu0 0.0
    %928 = vmatprep.subr.mxu0 0.0
    %929 = vmatpush1.msra.mxu0 0.0
    %930 = vmatprep.subr.mxu0 0.0
    %931 = vmatpush1.msra.mxu0 0.0
    %932 = vmatprep.subr.mxu0 0.0
    %933 = vmatpush1.msra.mxu0 0.0
    %934 = vmatprep.subr.mxu0 0.0
    %935 = vmatpush1.msra.mxu0 0.0
    %936 = vmatprep.subr.mxu0 0.0
    %937 = vmatpush1.msra.mxu0 0.0
    %938 = vmatprep.subr.mxu0 0.0
    %939 = vmatpush1.msra.mxu0 0.0
    %940 = vmatprep.subr.mxu0 0.0
    %941 = vmatpush1.msra.mxu0 0.0
    %942 = vmatprep.subr.mxu0 0.0
    %943 = vmatpush1.msra.mxu0 0.0
    %944 = vmatprep.subr.mxu0 0.0
    %945 = vmatpush1.msra.mxu0 0.0
    %946 = vmatprep.subr.mxu0 0.0
    %947 = vmatpush1.msra.mxu0 0.0
    %948 = vmatprep.subr.mxu0 0.0
    %949 = vmatpush1.msra.mxu0 0.0
    %950 = vmatprep.subr.mxu0 0.0
    %951 = vmatpush1.msra.mxu0 0.0
    %952 = vmatprep.mubr.f32.mxu0 0.0
    %953 = vmatmul.mubr.f32.gmra.mrb[0].mxu0 %v883
    %v954 = vpop.f32.mrb[0].mxu0
    %v955 = vadd.f32 0.0, %v954
    %v956 = vpop.f32.mrb[0].mxu0
    %957 = vdwg.mxu0
    %v958 = vcombine.low %v423, %v575
    %v960 = vunpack.c.l.s4 1983009808
    %v961 = vunpack.c.0.s8 %v960
    %v962 = vlaneseq
    %v963 = vshrl.u32 %v962, 7
    %v964 = vsub.s32 %v961, %v963
    %v965 = vrot.slane %v958, %v964
    %v966 = vcombine.low %v499, %v651
    %v968 = vunpack.c.l.s4 1983009808
    %v969 = vunpack.c.0.s8 %v968
    %v970 = vlaneseq
    %v971 = vshrl.u32 %v970, 7
    %v972 = vsub.s32 %v969, %v971
    %v973 = vrot.slane %v966, %v972
    %v974 = vcombine.low %v727, %v879
    %v976 = vunpack.c.l.s4 1983009808
    %v977 = vunpack.c.0.s8 %v976
    %v978 = vlaneseq
    %v979 = vshrl.u32 %v978, 7
    %v980 = vsub.s32 %v977, %v979
    %v981 = vrot.slane %v974, %v980
    %v982 = vcombine.low %v803, %v955
    %v984 = vunpack.c.l.s4 1983009808
    %v985 = vunpack.c.0.s8 %v984
    %v986 = vlaneseq
    %v987 = vshrl.u32 %v986, 7
    %v988 = vsub.s32 %v985, %v987
    %v989 = vrot.slane %v982, %v988
    %v990 = vcombine.low %v965, %v973
    %v991 = vcombine.high %v965, %v973
    %v993 = vunpack.c.l.s4 1934713408
    %v994 = vunpack.c.0.s8 %v993
    %v995 = vlaneseq
    %v996 = vshrl.u32 %v995, 7
    %v997 = vsub.s32 %v994, %v996
    %v998 = vrot.slane %v990, %v997
    %v1000 = vunpack.c.l.s4 1934713408
    %v1001 = vunpack.c.0.s8 %v1000
    %v1002 = vlaneseq
    %v1003 = vshrl.u32 %v1002, 7
    %v1004 = vsub.s32 %v1001, %v1003
    %v1005 = vrot.slane %v991, %v1004
    %v1006 = vcombine.low %v981, %v989
    %v1007 = vcombine.high %v981, %v989
    %v1009 = vunpack.c.l.s4 1934713408
    %v1010 = vunpack.c.0.s8 %v1009
    %v1011 = vlaneseq
    %v1012 = vshrl.u32 %v1011, 7
    %v1013 = vsub.s32 %v1010, %v1012
    %v1014 = vrot.slane %v1006, %v1013
    %v1016 = vunpack.c.l.s4 1934713408
    %v1017 = vunpack.c.0.s8 %v1016
    %v1018 = vlaneseq
    %v1019 = vshrl.u32 %v1018, 7
    %v1020 = vsub.s32 %v1017, %v1019
    %v1021 = vrot.slane %v1007, %v1020
    %v1022 = vcombine.low %v998, %v1014
    %v1023 = vcombine.high %v998, %v1014
    %v1024 = vcombine.low %v1005, %v1021
    %v1025 = vcombine.high %v1005, %v1021
    %1026 = vrot.lane.b32.xlu0 %v176, 96
    %v1027 = vpop.permute.xlu0 %1026
    %v1028 = vsel %vm186, %v1027, 0
    %1030 = vmatprep.subr.mxu0 0.0
    %1031 = vmatpush1.xpose.msra.mxu0 %v1028
    %1032 = vmatprep.subr.mxu0 0.0
    %1033 = vmatpush1.xpose.msra.mxu0 0.0
    %1034 = vmatprep.subr.mxu0 0.0
    %1035 = vmatpush1.xpose.msra.mxu0 0.0
    %1036 = vmatprep.subr.mxu0 0.0
    %1037 = vmatpush1.xpose.msra.mxu0 0.0
    %1038 = vmatprep.subr.mxu0 0.0
    %1039 = vmatpush1.xpose.msra.mxu0 0.0
    %1040 = vmatprep.subr.mxu0 0.0
    %1041 = vmatpush1.xpose.msra.mxu0 0.0
    %1042 = vmatprep.subr.mxu0 0.0
    %1043 = vmatpush1.xpose.msra.mxu0 0.0
    %1044 = vmatprep.subr.mxu0 0.0
    %1045 = vmatpush1.xpose.msra.mxu0 0.0
    %1046 = vmatprep.subr.mxu0 0.0
    %1047 = vmatpush1.xpose.msra.mxu0 0.0
    %1048 = vmatprep.subr.mxu0 0.0
    %1049 = vmatpush1.xpose.msra.mxu0 0.0
    %1050 = vmatprep.subr.mxu0 0.0
    %1051 = vmatpush1.xpose.msra.mxu0 0.0
    %1052 = vmatprep.subr.mxu0 0.0
    %1053 = vmatpush1.xpose.msra.mxu0 0.0
    %1054 = vmatprep.subr.mxu0 0.0
    %1055 = vmatpush1.xpose.msra.mxu0 0.0
    %1056 = vmatprep.subr.mxu0 0.0
    %1057 = vmatpush1.xpose.msra.mxu0 0.0
    %1058 = vmatprep.subr.mxu0 0.0
    %1059 = vmatpush1.xpose.msra.mxu0 0.0
    %1060 = vmatprep.subr.mxu0 0.0
    %1061 = vmatpush1.xpose.msra.mxu0 0.0
    %1062 = vmatprep.subr.mxu0 0.0
    %1063 = vmatpush1.xpose.msra.mxu0 0.0
    %1064 = vmatprep.subr.mxu0 0.0
    %1065 = vmatpush1.xpose.msra.mxu0 0.0
    %1066 = vmatprep.subr.mxu0 0.0
    %1067 = vmatpush1.xpose.msra.mxu0 0.0
    %1068 = vmatprep.subr.mxu0 0.0
    %1069 = vmatpush1.xpose.msra.mxu0 0.0
    %1070 = vmatprep.subr.mxu0 0.0
    %1071 = vmatpush1.xpose.msra.mxu0 0.0
    %1072 = vmatprep.subr.mxu0 0.0
    %1073 = vmatpush1.xpose.msra.mxu0 0.0
    %1074 = vmatprep.subr.mxu0 0.0
    %1075 = vmatpush1.xpose.msra.mxu0 0.0
    %1076 = vmatprep.subr.mxu0 0.0
    %1077 = vmatpush1.xpose.msra.mxu0 0.0
    %1078 = vmatprep.subr.mxu0 0.0
    %1079 = vmatpush1.xpose.msra.mxu0 0.0
    %1080 = vmatprep.subr.mxu0 0.0
    %1081 = vmatpush1.xpose.msra.mxu0 0.0
    %1082 = vmatprep.subr.mxu0 0.0
    %1083 = vmatpush1.xpose.msra.mxu0 0.0
    %1084 = vmatprep.subr.mxu0 0.0
    %1085 = vmatpush1.xpose.msra.mxu0 0.0
    %1086 = vmatprep.subr.mxu0 0.0
    %1087 = vmatpush1.xpose.msra.mxu0 0.0
    %1088 = vmatprep.subr.mxu0 0.0
    %1089 = vmatpush1.xpose.msra.mxu0 0.0
    %1090 = vmatprep.subr.mxu0 0.0
    %1091 = vmatpush1.xpose.msra.mxu0 0.0
    %1092 = vmatprep.subr.mxu0 0.0
    %1093 = vmatpush1.xpose.msra.mxu0 0.0
    %1094 = vmatprep.mubr.f32.mxu0 0.0
    %1095 = vmatmul.mubr.f32.gmra.mrb[0].mxu0 %v187
    %v1096 = vpop.f32.mrb[0].mxu0
    %v1097 = vadd.f32 %v1022, %v1096
    %v1098 = vpop.f32.mrb[0].mxu0
    %1099 = vdwg.mxu0
    %1100 = vrot.lane.b32.xlu0 %v181, 96
    %v1101 = vpop.permute.xlu0 %1100
    %v1102 = vsel %vm186, %v1101, 0
    %1104 = vmatprep.subr.mxu0 0.0
    %1105 = vmatpush1.xpose.msra.mxu0 %v1102
    %1106 = vmatprep.subr.mxu0 0.0
    %1107 = vmatpush1.xpose.msra.mxu0 0.0
    %1108 = vmatprep.subr.mxu0 0.0
    %1109 = vmatpush1.xpose.msra.mxu0 0.0
    %1110 = vmatprep.subr.mxu0 0.0
    %1111 = vmatpush1.xpose.msra.mxu0 0.0
    %1112 = vmatprep.subr.mxu0 0.0
    %1113 = vmatpush1.xpose.msra.mxu0 0.0
    %1114 = vmatprep.subr.mxu0 0.0
    %1115 = vmatpush1.xpose.msra.mxu0 0.0
    %1116 = vmatprep.subr.mxu0 0.0
    %1117 = vmatpush1.xpose.msra.mxu0 0.0
    %1118 = vmatprep.subr.mxu0 0.0
    %1119 = vmatpush1.xpose.msra.mxu0 0.0
    %1120 = vmatprep.subr.mxu0 0.0
    %1121 = vmatpush1.xpose.msra.mxu0 0.0
    %1122 = vmatprep.subr.mxu0 0.0
    %1123 = vmatpush1.xpose.msra.mxu0 0.0
    %1124 = vmatprep.subr.mxu0 0.0
    %1125 = vmatpush1.xpose.msra.mxu0 0.0
    %1126 = vmatprep.subr.mxu0 0.0
    %1127 = vmatpush1.xpose.msra.mxu0 0.0
    %1128 = vmatprep.subr.mxu0 0.0
    %1129 = vmatpush1.xpose.msra.mxu0 0.0
    %1130 = vmatprep.subr.mxu0 0.0
    %1131 = vmatpush1.xpose.msra.mxu0 0.0
    %1132 = vmatprep.subr.mxu0 0.0
    %1133 = vmatpush1.xpose.msra.mxu0 0.0
    %1134 = vmatprep.subr.mxu0 0.0
    %1135 = vmatpush1.xpose.msra.mxu0 0.0
    %1136 = vmatprep.subr.mxu0 0.0
    %1137 = vmatpush1.xpose.msra.mxu0 0.0
    %1138 = vmatprep.subr.mxu0 0.0
    %1139 = vmatpush1.xpose.msra.mxu0 0.0
    %1140 = vmatprep.subr.mxu0 0.0
    %1141 = vmatpush1.xpose.msra.mxu0 0.0
    %1142 = vmatprep.subr.mxu0 0.0
    %1143 = vmatpush1.xpose.msra.mxu0 0.0
    %1144 = vmatprep.subr.mxu0 0.0
    %1145 = vmatpush1.xpose.msra.mxu0 0.0
    %1146 = vmatprep.subr.mxu0 0.0
    %1147 = vmatpush1.xpose.msra.mxu0 0.0
    %1148 = vmatprep.subr.mxu0 0.0
    %1149 = vmatpush1.xpose.msra.mxu0 0.0
    %1150 = vmatprep.subr.mxu0 0.0
    %1151 = vmatpush1.xpose.msra.mxu0 0.0
    %1152 = vmatprep.subr.mxu0 0.0
    %1153 = vmatpush1.xpose.msra.mxu0 0.0
    %1154 = vmatprep.subr.mxu0 0.0
    %1155 = vmatpush1.xpose.msra.mxu0 0.0
    %1156 = vmatprep.subr.mxu0 0.0
    %1157 = vmatpush1.xpose.msra.mxu0 0.0
    %1158 = vmatprep.subr.mxu0 0.0
    %1159 = vmatpush1.xpose.msra.mxu0 0.0
    %1160 = vmatprep.subr.mxu0 0.0
    %1161 = vmatpush1.xpose.msra.mxu0 0.0
    %1162 = vmatprep.subr.mxu0 0.0
    %1163 = vmatpush1.xpose.msra.mxu0 0.0
    %1164 = vmatprep.subr.mxu0 0.0
    %1165 = vmatpush1.xpose.msra.mxu0 0.0
    %1166 = vmatprep.subr.mxu0 0.0
    %1167 = vmatpush1.xpose.msra.mxu0 0.0
    %1168 = vmatprep.mubr.f32.mxu0 0.0
    %1169 = vmatmul.mubr.f32.gmra.mrb[0].mxu0 %v189
    %v1170 = vpop.f32.mrb[0].mxu0
    %v1171 = vadd.f32 %v1023, %v1170
    %v1172 = vpop.f32.mrb[0].mxu0
    %1173 = vdwg.mxu0
    %1174 = vrot.lane.b32.xlu0 %v183, 96
    %v1175 = vpop.permute.xlu0 %1174
    %v1176 = vsel %vm186, %v1175, 0
    %1178 = vmatprep.subr.mxu0 0.0
    %1179 = vmatpush1.xpose.msra.mxu0 %v1176
    %1180 = vmatprep.subr.mxu0 0.0
    %1181 = vmatpush1.xpose.msra.mxu0 0.0
    %1182 = vmatprep.subr.mxu0 0.0
    %1183 = vmatpush1.xpose.msra.mxu0 0.0
    %1184 = vmatprep.subr.mxu0 0.0
    %1185 = vmatpush1.xpose.msra.mxu0 0.0
    %1186 = vmatprep.subr.mxu0 0.0
    %1187 = vmatpush1.xpose.msra.mxu0 0.0
    %1188 = vmatprep.subr.mxu0 0.0
    %1189 = vmatpush1.xpose.msra.mxu0 0.0
    %1190 = vmatprep.subr.mxu0 0.0
    %1191 = vmatpush1.xpose.msra.mxu0 0.0
    %1192 = vmatprep.subr.mxu0 0.0
    %1193 = vmatpush1.xpose.msra.mxu0 0.0
    %1194 = vmatprep.subr.mxu0 0.0
    %1195 = vmatpush1.xpose.msra.mxu0 0.0
    %1196 = vmatprep.subr.mxu0 0.0
    %1197 = vmatpush1.xpose.msra.mxu0 0.0
    %1198 = vmatprep.subr.mxu0 0.0
    %1199 = vmatpush1.xpose.msra.mxu0 0.0
    %1200 = vmatprep.subr.mxu0 0.0
    %1201 = vmatpush1.xpose.msra.mxu0 0.0
    %1202 = vmatprep.subr.mxu0 0.0
    %1203 = vmatpush1.xpose.msra.mxu0 0.0
    %1204 = vmatprep.subr.mxu0 0.0
    %1205 = vmatpush1.xpose.msra.mxu0 0.0
    %1206 = vmatprep.subr.mxu0 0.0
    %1207 = vmatpush1.xpose.msra.mxu0 0.0
    %1208 = vmatprep.subr.mxu0 0.0
    %1209 = vmatpush1.xpose.msra.mxu0 0.0
    %1210 = vmatprep.subr.mxu0 0.0
    %1211 = vmatpush1.xpose.msra.mxu0 0.0
    %1212 = vmatprep.subr.mxu0 0.0
    %1213 = vmatpush1.xpose.msra.mxu0 0.0
    %1214 = vmatprep.subr.mxu0 0.0
    %1215 = vmatpush1.xpose.msra.mxu0 0.0
    %1216 = vmatprep.subr.mxu0 0.0
    %1217 = vmatpush1.xpose.msra.mxu0 0.0
    %1218 = vmatprep.subr.mxu0 0.0
    %1219 = vmatpush1.xpose.msra.mxu0 0.0
    %1220 = vmatprep.subr.mxu0 0.0
    %1221 = vmatpush1.xpose.msra.mxu0 0.0
    %1222 = vmatprep.subr.mxu0 0.0
    %1223 = vmatpush1.xpose.msra.mxu0 0.0
    %1224 = vmatprep.subr.mxu0 0.0
    %1225 = vmatpush1.xpose.msra.mxu0 0.0
    %1226 = vmatprep.subr.mxu0 0.0
    %1227 = vmatpush1.xpose.msra.mxu0 0.0
    %1228 = vmatprep.subr.mxu0 0.0
    %1229 = vmatpush1.xpose.msra.mxu0 0.0
    %1230 = vmatprep.subr.mxu0 0.0
    %1231 = vmatpush1.xpose.msra.mxu0 0.0
    %1232 = vmatprep.subr.mxu0 0.0
    %1233 = vmatpush1.xpose.msra.mxu0 0.0
    %1234 = vmatprep.subr.mxu0 0.0
    %1235 = vmatpush1.xpose.msra.mxu0 0.0
    %1236 = vmatprep.subr.mxu0 0.0
    %1237 = vmatpush1.xpose.msra.mxu0 0.0
    %1238 = vmatprep.subr.mxu0 0.0
    %1239 = vmatpush1.xpose.msra.mxu0 0.0
    %1240 = vmatprep.subr.mxu0 0.0
    %1241 = vmatpush1.xpose.msra.mxu0 0.0
    %1242 = vmatprep.mubr.f32.mxu0 0.0
    %1243 = vmatmul.mubr.f32.gmra.mrb[0].mxu0 %v191
    %v1244 = vpop.f32.mrb[0].mxu0
    %v1245 = vadd.f32 %v1024, %v1244
    %v1246 = vpop.f32.mrb[0].mxu0
    %1247 = vdwg.mxu0
    %1248 = vrot.lane.b32.xlu0 %v185, 96
    %v1249 = vpop.permute.xlu0 %1248
    %v1250 = vsel %vm186, %v1249, 0
    %1252 = vmatprep.subr.mxu0 0.0
    %1253 = vmatpush1.xpose.msra.mxu0 %v1250
    %1254 = vmatprep.subr.mxu0 0.0
    %1255 = vmatpush1.xpose.msra.mxu0 0.0
    %1256 = vmatprep.subr.mxu0 0.0
    %1257 = vmatpush1.xpose.msra.mxu0 0.0
    %1258 = vmatprep.subr.mxu0 0.0
    %1259 = vmatpush1.xpose.msra.mxu0 0.0
    %1260 = vmatprep.subr.mxu0 0.0
    %1261 = vmatpush1.xpose.msra.mxu0 0.0
    %1262 = vmatprep.subr.mxu0 0.0
    %1263 = vmatpush1.xpose.msra.mxu0 0.0
    %1264 = vmatprep.subr.mxu0 0.0
    %1265 = vmatpush1.xpose.msra.mxu0 0.0
    %1266 = vmatprep.subr.mxu0 0.0
    %1267 = vmatpush1.xpose.msra.mxu0 0.0
    %1268 = vmatprep.subr.mxu0 0.0
    %1269 = vmatpush1.xpose.msra.mxu0 0.0
    %1270 = vmatprep.subr.mxu0 0.0
    %1271 = vmatpush1.xpose.msra.mxu0 0.0
    %1272 = vmatprep.subr.mxu0 0.0
    %1273 = vmatpush1.xpose.msra.mxu0 0.0
    %1274 = vmatprep.subr.mxu0 0.0
    %1275 = vmatpush1.xpose.msra.mxu0 0.0
    %1276 = vmatprep.subr.mxu0 0.0
    %1277 = vmatpush1.xpose.msra.mxu0 0.0
    %1278 = vmatprep.subr.mxu0 0.0
    %1279 = vmatpush1.xpose.msra.mxu0 0.0
    %1280 = vmatprep.subr.mxu0 0.0
    %1281 = vmatpush1.xpose.msra.mxu0 0.0
    %1282 = vmatprep.subr.mxu0 0.0
    %1283 = vmatpush1.xpose.msra.mxu0 0.0
    %1284 = vmatprep.subr.mxu0 0.0
    %1285 = vmatpush1.xpose.msra.mxu0 0.0
    %1286 = vmatprep.subr.mxu0 0.0
    %1287 = vmatpush1.xpose.msra.mxu0 0.0
    %1288 = vmatprep.subr.mxu0 0.0
    %1289 = vmatpush1.xpose.msra.mxu0 0.0
    %1290 = vmatprep.subr.mxu0 0.0
    %1291 = vmatpush1.xpose.msra.mxu0 0.0
    %1292 = vmatprep.subr.mxu0 0.0
    %1293 = vmatpush1.xpose.msra.mxu0 0.0
    %1294 = vmatprep.subr.mxu0 0.0
    %1295 = vmatpush1.xpose.msra.mxu0 0.0
    %1296 = vmatprep.subr.mxu0 0.0
    %1297 = vmatpush1.xpose.msra.mxu0 0.0
    %1298 = vmatprep.subr.mxu0 0.0
    %1299 = vmatpush1.xpose.msra.mxu0 0.0
    %1300 = vmatprep.subr.mxu0 0.0
    %1301 = vmatpush1.xpose.msra.mxu0 0.0
    %1302 = vmatprep.subr.mxu0 0.0
    %1303 = vmatpush1.xpose.msra.mxu0 0.0
    %1304 = vmatprep.subr.mxu0 0.0
    %1305 = vmatpush1.xpose.msra.mxu0 0.0
    %1306 = vmatprep.subr.mxu0 0.0
    %1307 = vmatpush1.xpose.msra.mxu0 0.0
    %1308 = vmatprep.subr.mxu0 0.0
    %1309 = vmatpush1.xpose.msra.mxu0 0.0
    %1310 = vmatprep.subr.mxu0 0.0
    %1311 = vmatpush1.xpose.msra.mxu0 0.0
    %1312 = vmatprep.subr.mxu0 0.0
    %1313 = vmatpush1.xpose.msra.mxu0 0.0
    %1314 = vmatprep.subr.mxu0 0.0
    %1315 = vmatpush1.xpose.msra.mxu0 0.0
    %1316 = vmatprep.mubr.f32.mxu0 0.0
    %1317 = vmatmul.mubr.f32.gmra.mrb[0].mxu0 %v193
    %v1318 = vpop.f32.mrb[0].mxu0
    %v1319 = vadd.f32 %v1025, %v1318
    %v1320 = vpop.f32.mrb[0].mxu0
    %1321 = vdwg.mxu0
    %v1322 = vmul.f32 %v1097, 0.35355338
    %v1323 = vmul.f32 %v1171, 0.35355338
    %v1324 = vmul.f32 %v1245, 0.35355338
    %v1325 = vmul.f32 %v1319, 0.35355338
    %v1326 = vsel %vm186, %v1322, -inf
    %1327 = vmax.xlane.f32.xlu0 %v1326
    %v1328 = vpop.xlane.xlu0 %1327
    %v1329 = vsel %vm186, %v1323, -inf
    %1330 = vmax.xlane.f32.xlu0 %v1329
    %v1331 = vpop.xlane.xlu0 %1330
    %v1332 = vsel %vm186, %v1324, -inf
    %1333 = vmax.xlane.f32.xlu0 %v1332
    %v1334 = vpop.xlane.xlu0 %1333
    %v1335 = vsel %vm186, %v1325, -inf
    %1336 = vmax.xlane.f32.xlu0 %v1335
    %v1337 = vpop.xlane.xlu0 %1336
    %v1338 = vsub.f32 %v1322, %v1328
    %v1339 = vsub.f32 %v1323, %v1331
    %v1340 = vsub.f32 %v1324, %v1334
    %v1341 = vsub.f32 %v1325, %v1337
    %v1342 = vmul.f32 %v1338, 1.442695
    %v1343 = vpow.pop %v1342
    %v1344 = vmul.f32 %v1339, 1.442695
    %v1345 = vpow.pop %v1344
    %v1346 = vmul.f32 %v1340, 1.442695
    %v1347 = vpow.pop %v1346
    %v1348 = vmul.f32 %v1341, 1.442695
    %v1349 = vpow.pop %v1348
    %v1350 = vsel %vm186, %v1343, 0.0
    %1351 = vadd.xlane.f32.xlu0 %v1350
    %v1352 = vpop.xlane.xlu0 %1351
    %v1353 = vsel %vm186, %v1345, 0.0
    %1354 = vadd.xlane.f32.xlu0 %v1353
    %v1355 = vpop.xlane.xlu0 %1354
    %v1356 = vsel %vm186, %v1347, 0.0
    %1357 = vadd.xlane.f32.xlu0 %v1356
    %v1358 = vpop.xlane.xlu0 %1357
    %v1359 = vsel %vm186, %v1349, 0.0
    %1360 = vadd.xlane.f32.xlu0 %v1359
    %v1361 = vpop.xlane.xlu0 %1360
    %v1362 = vrcp.pop %v1352
    %v1363 = vrcp.pop %v1355
    %v1364 = vrcp.pop %v1358
    %v1365 = vrcp.pop %v1361
    %v1366 = vmul.f32 %v1343, %v1362
    %v1367 = vmul.f32 %v1345, %v1363
    %v1368 = vmul.f32 %v1347, %v1364
    %v1369 = vmul.f32 %v1349, %v1365
    %v1370 = vcombine.low %v1366, %v1368
    %v1371 = vcombine.high %v1366, %v1368
    %v1373 = vunpack.c.l.s4 1983009808
    %v1374 = vunpack.c.0.s8 %v1373
    %v1375 = vlaneseq
    %v1376 = vshrl.u32 %v1375, 7
    %v1377 = vsub.s32 %v1374, %v1376
    %v1378 = vrot.slane %v1370, %v1377
    %v1380 = vunpack.c.l.s4 1983009808
    %v1381 = vunpack.c.0.s8 %v1380
    %v1382 = vlaneseq
    %v1383 = vshrl.u32 %v1382, 7
    %v1384 = vsub.s32 %v1381, %v1383
    %v1385 = vrot.slane %v1371, %v1384
    %v1386 = vcombine.low %v1367, %v1369
    %v1387 = vcombine.high %v1367, %v1369
    %v1389 = vunpack.c.l.s4 1983009808
    %v1390 = vunpack.c.0.s8 %v1389
    %v1391 = vlaneseq
    %v1392 = vshrl.u32 %v1391, 7
    %v1393 = vsub.s32 %v1390, %v1392
    %v1394 = vrot.slane %v1386, %v1393
    %v1396 = vunpack.c.l.s4 1983009808
    %v1397 = vunpack.c.0.s8 %v1396
    %v1398 = vlaneseq
    %v1399 = vshrl.u32 %v1398, 7
    %v1400 = vsub.s32 %v1397, %v1399
    %v1401 = vrot.slane %v1387, %v1400
    %v1402 = vcombine.low %v1378, %v1394
    %v1403 = vcombine.high %v1378, %v1394
    %v1405 = vunpack.c.l.s4 1934713408
    %v1406 = vunpack.c.0.s8 %v1405
    %v1407 = vlaneseq
    %v1408 = vshrl.u32 %v1407, 7
    %v1409 = vsub.s32 %v1406, %v1408
    %v1410 = vrot.slane %v1402, %v1409
    %v1412 = vunpack.c.l.s4 1934713408
    %v1413 = vunpack.c.0.s8 %v1412
    %v1414 = vlaneseq
    %v1415 = vshrl.u32 %v1414, 7
    %v1416 = vsub.s32 %v1413, %v1415
    %v1417 = vrot.slane %v1403, %v1416
    %v1418 = vcombine.low %v1385, %v1401
    %v1419 = vcombine.high %v1385, %v1401
    %v1421 = vunpack.c.l.s4 1934713408
    %v1422 = vunpack.c.0.s8 %v1421
    %v1423 = vlaneseq
    %v1424 = vshrl.u32 %v1423, 7
    %v1425 = vsub.s32 %v1422, %v1424
    %v1426 = vrot.slane %v1418, %v1425
    %v1428 = vunpack.c.l.s4 1934713408
    %v1429 = vunpack.c.0.s8 %v1428
    %v1430 = vlaneseq
    %v1431 = vshrl.u32 %v1430, 7
    %v1432 = vsub.s32 %v1429, %v1431
    %v1433 = vrot.slane %v1419, %v1432
    %v1434 = vcombine.high %v1410, 0.0
    %v1435 = vcombine.high %v1417, 0.0
    %v1436 = vcombine.high %v1426, 0.0
    %v1437 = vcombine.high %v1433, 0.0
    %v1439 = vsel %vm186, %v1410, 0
    %v1442 = vsel %vm186, %v30, 0
    %v1444 = vsel %vm186, %v31, 0
    %1446 = vmatprep.subr.mxu0 0.0
    %1447 = vmatpush1.xpose.msra.mxu0 %v1442
    %1448 = vmatprep.subr.mxu0 0.0
    %1449 = vmatpush1.xpose.msra.mxu0 %v1444
    %1450 = vmatprep.subr.mxu0 0.0
    %1451 = vmatpush1.xpose.msra.mxu0 0.0
    %1452 = vmatprep.subr.mxu0 0.0
    %1453 = vmatpush1.xpose.msra.mxu0 0.0
    %1454 = vmatprep.subr.mxu0 0.0
    %1455 = vmatpush1.xpose.msra.mxu0 0.0
    %1456 = vmatprep.subr.mxu0 0.0
    %1457 = vmatpush1.xpose.msra.mxu0 0.0
    %1458 = vmatprep.subr.mxu0 0.0
    %1459 = vmatpush1.xpose.msra.mxu0 0.0
    %1460 = vmatprep.subr.mxu0 0.0
    %1461 = vmatpush1.xpose.msra.mxu0 0.0
    %1462 = vmatprep.subr.mxu0 0.0
    %1463 = vmatpush1.xpose.msra.mxu0 0.0
    %1464 = vmatprep.subr.mxu0 0.0
    %1465 = vmatpush1.xpose.msra.mxu0 0.0
    %1466 = vmatprep.subr.mxu0 0.0
    %1467 = vmatpush1.xpose.msra.mxu0 0.0
    %1468 = vmatprep.subr.mxu0 0.0
    %1469 = vmatpush1.xpose.msra.mxu0 0.0
    %1470 = vmatprep.subr.mxu0 0.0
    %1471 = vmatpush1.xpose.msra.mxu0 0.0
    %1472 = vmatprep.subr.mxu0 0.0
    %1473 = vmatpush1.xpose.msra.mxu0 0.0
    %1474 = vmatprep.subr.mxu0 0.0
    %1475 = vmatpush1.xpose.msra.mxu0 0.0
    %1476 = vmatprep.subr.mxu0 0.0
    %1477 = vmatpush1.xpose.msra.mxu0 0.0
    %1478 = vmatprep.subr.mxu0 0.0
    %1479 = vmatpush1.xpose.msra.mxu0 0.0
    %1480 = vmatprep.subr.mxu0 0.0
    %1481 = vmatpush1.xpose.msra.mxu0 0.0
    %1482 = vmatprep.subr.mxu0 0.0
    %1483 = vmatpush1.xpose.msra.mxu0 0.0
    %1484 = vmatprep.subr.mxu0 0.0
    %1485 = vmatpush1.xpose.msra.mxu0 0.0
    %1486 = vmatprep.subr.mxu0 0.0
    %1487 = vmatpush1.xpose.msra.mxu0 0.0
    %1488 = vmatprep.subr.mxu0 0.0
    %1489 = vmatpush1.xpose.msra.mxu0 0.0
    %1490 = vmatprep.subr.mxu0 0.0
    %1491 = vmatpush1.xpose.msra.mxu0 0.0
    %1492 = vmatprep.subr.mxu0 0.0
    %1493 = vmatpush1.xpose.msra.mxu0 0.0
    %1494 = vmatprep.subr.mxu0 0.0
    %1495 = vmatpush1.xpose.msra.mxu0 0.0
    %1496 = vmatprep.subr.mxu0 0.0
    %1497 = vmatpush1.xpose.msra.mxu0 0.0
    %1498 = vmatprep.subr.mxu0 0.0
    %1499 = vmatpush1.xpose.msra.mxu0 0.0
    %1500 = vmatprep.subr.mxu0 0.0
    %1501 = vmatpush1.xpose.msra.mxu0 0.0
    %1502 = vmatprep.subr.mxu0 0.0
    %1503 = vmatpush1.xpose.msra.mxu0 0.0
    %1504 = vmatprep.subr.mxu0 0.0
    %1505 = vmatpush1.xpose.msra.mxu0 0.0
    %1506 = vmatprep.subr.mxu0 0.0
    %1507 = vmatpush1.xpose.msra.mxu0 0.0
    %1508 = vmatprep.subr.mxu0 0.0
    %1509 = vmatpush1.xpose.msra.mxu0 0.0
    %1510 = vmatprep.mubr.f32.mxu0 0.0
    %1511 = vmatmul.mubr.f32.gmra.mrb[0].mxu0 %v1439
    %v1512 = vpop.f32.mrb[0].mxu0
    %v1513 = vadd.f32 0.0, %v1512
    %v1514 = vpop.f32.mrb[0].mxu0
    %1515 = vdwg.mxu0
    %v1517 = vsel %vm186, %v1434, 0
    %v1520 = vsel %vm186, %v32, 0
    %v1522 = vsel %vm186, %v33, 0
    %1524 = vmatprep.subr.mxu0 0.0
    %1525 = vmatpush1.xpose.msra.mxu0 %v1520
    %1526 = vmatprep.subr.mxu0 0.0
    %1527 = vmatpush1.xpose.msra.mxu0 %v1522
    %1528 = vmatprep.subr.mxu0 0.0
    %1529 = vmatpush1.xpose.msra.mxu0 0.0
    %1530 = vmatprep.subr.mxu0 0.0
    %1531 = vmatpush1.xpose.msra.mxu0 0.0
    %1532 = vmatprep.subr.mxu0 0.0
    %1533 = vmatpush1.xpose.msra.mxu0 0.0
    %1534 = vmatprep.subr.mxu0 0.0
    %1535 = vmatpush1.xpose.msra.mxu0 0.0
    %1536 = vmatprep.subr.mxu0 0.0
    %1537 = vmatpush1.xpose.msra.mxu0 0.0
    %1538 = vmatprep.subr.mxu0 0.0
    %1539 = vmatpush1.xpose.msra.mxu0 0.0
    %1540 = vmatprep.subr.mxu0 0.0
    %1541 = vmatpush1.xpose.msra.mxu0 0.0
    %1542 = vmatprep.subr.mxu0 0.0
    %1543 = vmatpush1.xpose.msra.mxu0 0.0
    %1544 = vmatprep.subr.mxu0 0.0
    %1545 = vmatpush1.xpose.msra.mxu0 0.0
    %1546 = vmatprep.subr.mxu0 0.0
    %1547 = vmatpush1.xpose.msra.mxu0 0.0
    %1548 = vmatprep.subr.mxu0 0.0
    %1549 = vmatpush1.xpose.msra.mxu0 0.0
    %1550 = vmatprep.subr.mxu0 0.0
    %1551 = vmatpush1.xpose.msra.mxu0 0.0
    %1552 = vmatprep.subr.mxu0 0.0
    %1553 = vmatpush1.xpose.msra.mxu0 0.0
    %1554 = vmatprep.subr.mxu0 0.0
    %1555 = vmatpush1.xpose.msra.mxu0 0.0
    %1556 = vmatprep.subr.mxu0 0.0
    %1557 = vmatpush1.xpose.msra.mxu0 0.0
    %1558 = vmatprep.subr.mxu0 0.0
    %1559 = vmatpush1.xpose.msra.mxu0 0.0
    %1560 = vmatprep.subr.mxu0 0.0
    %1561 = vmatpush1.xpose.msra.mxu0 0.0
    %1562 = vmatprep.subr.mxu0 0.0
    %1563 = vmatpush1.xpose.msra.mxu0 0.0
    %1564 = vmatprep.subr.mxu0 0.0
    %1565 = vmatpush1.xpose.msra.mxu0 0.0
    %1566 = vmatprep.subr.mxu0 0.0
    %1567 = vmatpush1.xpose.msra.mxu0 0.0
    %1568 = vmatprep.subr.mxu0 0.0
    %1569 = vmatpush1.xpose.msra.mxu0 0.0
    %1570 = vmatprep.subr.mxu0 0.0
    %1571 = vmatpush1.xpose.msra.mxu0 0.0
    %1572 = vmatprep.subr.mxu0 0.0
    %1573 = vmatpush1.xpose.msra.mxu0 0.0
    %1574 = vmatprep.subr.mxu0 0.0
    %1575 = vmatpush1.xpose.msra.mxu0 0.0
    %1576 = vmatprep.subr.mxu0 0.0
    %1577 = vmatpush1.xpose.msra.mxu0 0.0
    %1578 = vmatprep.subr.mxu0 0.0
    %1579 = vmatpush1.xpose.msra.mxu0 0.0
    %1580 = vmatprep.subr.mxu0 0.0
    %1581 = vmatpush1.xpose.msra.mxu0 0.0
    %1582 = vmatprep.subr.mxu0 0.0
    %1583 = vmatpush1.xpose.msra.mxu0 0.0
    %1584 = vmatprep.subr.mxu0 0.0
    %1585 = vmatpush1.xpose.msra.mxu0 0.0
    %1586 = vmatprep.subr.mxu0 0.0
    %1587 = vmatpush1.xpose.msra.mxu0 0.0
    %1588 = vmatprep.mubr.f32.mxu0 0.0
    %1589 = vmatmul.mubr.f32.gmra.mrb[0].mxu0 %v1517
    %v1590 = vpop.f32.mrb[0].mxu0
    %v1591 = vadd.f32 0.0, %v1590
    %v1592 = vpop.f32.mrb[0].mxu0
    %1593 = vdwg.mxu0
    %v1595 = vsel %vm186, %v1417, 0
    %v1598 = vsel %vm186, %v34, 0
    %v1600 = vsel %vm186, %v35, 0
    %1602 = vmatprep.subr.mxu0 0.0
    %1603 = vmatpush1.xpose.msra.mxu0 %v1598
    %1604 = vmatprep.subr.mxu0 0.0
    %1605 = vmatpush1.xpose.msra.mxu0 %v1600
    %1606 = vmatprep.subr.mxu0 0.0
    %1607 = vmatpush1.xpose.msra.mxu0 0.0
    %1608 = vmatprep.subr.mxu0 0.0
    %1609 = vmatpush1.xpose.msra.mxu0 0.0
    %1610 = vmatprep.subr.mxu0 0.0
    %1611 = vmatpush1.xpose.msra.mxu0 0.0
    %1612 = vmatprep.subr.mxu0 0.0
    %1613 = vmatpush1.xpose.msra.mxu0 0.0
    %1614 = vmatprep.subr.mxu0 0.0
    %1615 = vmatpush1.xpose.msra.mxu0 0.0
    %1616 = vmatprep.subr.mxu0 0.0
    %1617 = vmatpush1.xpose.msra.mxu0 0.0
    %1618 = vmatprep.subr.mxu0 0.0
    %1619 = vmatpush1.xpose.msra.mxu0 0.0
    %1620 = vmatprep.subr.mxu0 0.0
    %1621 = vmatpush1.xpose.msra.mxu0 0.0
    %1622 = vmatprep.subr.mxu0 0.0
    %1623 = vmatpush1.xpose.msra.mxu0 0.0
    %1624 = vmatprep.subr.mxu0 0.0
    %1625 = vmatpush1.xpose.msra.mxu0 0.0
    %1626 = vmatprep.subr.mxu0 0.0
    %1627 = vmatpush1.xpose.msra.mxu0 0.0
    %1628 = vmatprep.subr.mxu0 0.0
    %1629 = vmatpush1.xpose.msra.mxu0 0.0
    %1630 = vmatprep.subr.mxu0 0.0
    %1631 = vmatpush1.xpose.msra.mxu0 0.0
    %1632 = vmatprep.subr.mxu0 0.0
    %1633 = vmatpush1.xpose.msra.mxu0 0.0
    %1634 = vmatprep.subr.mxu0 0.0
    %1635 = vmatpush1.xpose.msra.mxu0 0.0
    %1636 = vmatprep.subr.mxu0 0.0
    %1637 = vmatpush1.xpose.msra.mxu0 0.0
    %1638 = vmatprep.subr.mxu0 0.0
    %1639 = vmatpush1.xpose.msra.mxu0 0.0
    %1640 = vmatprep.subr.mxu0 0.0
    %1641 = vmatpush1.xpose.msra.mxu0 0.0
    %1642 = vmatprep.subr.mxu0 0.0
    %1643 = vmatpush1.xpose.msra.mxu0 0.0
    %1644 = vmatprep.subr.mxu0 0.0
    %1645 = vmatpush1.xpose.msra.mxu0 0.0
    %1646 = vmatprep.subr.mxu0 0.0
    %1647 = vmatpush1.xpose.msra.mxu0 0.0
    %1648 = vmatprep.subr.mxu0 0.0
    %1649 = vmatpush1.xpose.msra.mxu0 0.0
    %1650 = vmatprep.subr.mxu0 0.0
    %1651 = vmatpush1.xpose.msra.mxu0 0.0
    %1652 = vmatprep.subr.mxu0 0.0
    %1653 = vmatpush1.xpose.msra.mxu0 0.0
    %1654 = vmatprep.subr.mxu0 0.0
    %1655 = vmatpush1.xpose.msra.mxu0 0.0
    %1656 = vmatprep.subr.mxu0 0.0
    %1657 = vmatpush1.xpose.msra.mxu0 0.0
    %1658 = vmatprep.subr.mxu0 0.0
    %1659 = vmatpush1.xpose.msra.mxu0 0.0
    %1660 = vmatprep.subr.mxu0 0.0
    %1661 = vmatpush1.xpose.msra.mxu0 0.0
    %1662 = vmatprep.subr.mxu0 0.0
    %1663 = vmatpush1.xpose.msra.mxu0 0.0
    %1664 = vmatprep.subr.mxu0 0.0
    %1665 = vmatpush1.xpose.msra.mxu0 0.0
    %1666 = vmatprep.mubr.f32.mxu0 0.0
    %1667 = vmatmul.mubr.f32.gmra.mrb[0].mxu0 %v1595
    %v1668 = vpop.f32.mrb[0].mxu0
    %v1669 = vadd.f32 0.0, %v1668
    %v1670 = vpop.f32.mrb[0].mxu0
    %1671 = vdwg.mxu0
    %v1673 = vsel %vm186, %v1435, 0
    %v1676 = vsel %vm186, %v36, 0
    %v1678 = vsel %vm186, %v37, 0
    %1680 = vmatprep.subr.mxu0 0.0
    %1681 = vmatpush1.xpose.msra.mxu0 %v1676
    %1682 = vmatprep.subr.mxu0 0.0
    %1683 = vmatpush1.xpose.msra.mxu0 %v1678
    %1684 = vmatprep.subr.mxu0 0.0
    %1685 = vmatpush1.xpose.msra.mxu0 0.0
    %1686 = vmatprep.subr.mxu0 0.0
    %1687 = vmatpush1.xpose.msra.mxu0 0.0
    %1688 = vmatprep.subr.mxu0 0.0
    %1689 = vmatpush1.xpose.msra.mxu0 0.0
    %1690 = vmatprep.subr.mxu0 0.0
    %1691 = vmatpush1.xpose.msra.mxu0 0.0
    %1692 = vmatprep.subr.mxu0 0.0
    %1693 = vmatpush1.xpose.msra.mxu0 0.0
    %1694 = vmatprep.subr.mxu0 0.0
    %1695 = vmatpush1.xpose.msra.mxu0 0.0
    %1696 = vmatprep.subr.mxu0 0.0
    %1697 = vmatpush1.xpose.msra.mxu0 0.0
    %1698 = vmatprep.subr.mxu0 0.0
    %1699 = vmatpush1.xpose.msra.mxu0 0.0
    %1700 = vmatprep.subr.mxu0 0.0
    %1701 = vmatpush1.xpose.msra.mxu0 0.0
    %1702 = vmatprep.subr.mxu0 0.0
    %1703 = vmatpush1.xpose.msra.mxu0 0.0
    %1704 = vmatprep.subr.mxu0 0.0
    %1705 = vmatpush1.xpose.msra.mxu0 0.0
    %1706 = vmatprep.subr.mxu0 0.0
    %1707 = vmatpush1.xpose.msra.mxu0 0.0
    %1708 = vmatprep.subr.mxu0 0.0
    %1709 = vmatpush1.xpose.msra.mxu0 0.0
    %1710 = vmatprep.subr.mxu0 0.0
    %1711 = vmatpush1.xpose.msra.mxu0 0.0
    %1712 = vmatprep.subr.mxu0 0.0
    %1713 = vmatpush1.xpose.msra.mxu0 0.0
    %1714 = vmatprep.subr.mxu0 0.0
    %1715 = vmatpush1.xpose.msra.mxu0 0.0
    %1716 = vmatprep.subr.mxu0 0.0
    %1717 = vmatpush1.xpose.msra.mxu0 0.0
    %1718 = vmatprep.subr.mxu0 0.0
    %1719 = vmatpush1.xpose.msra.mxu0 0.0
    %1720 = vmatprep.subr.mxu0 0.0
    %1721 = vmatpush1.xpose.msra.mxu0 0.0
    %1722 = vmatprep.subr.mxu0 0.0
    %1723 = vmatpush1.xpose.msra.mxu0 0.0
    %1724 = vmatprep.subr.mxu0 0.0
    %1725 = vmatpush1.xpose.msra.mxu0 0.0
    %1726 = vmatprep.subr.mxu0 0.0
    %1727 = vmatpush1.xpose.msra.mxu0 0.0
    %1728 = vmatprep.subr.mxu0 0.0
    %1729 = vmatpush1.xpose.msra.mxu0 0.0
    %1730 = vmatprep.subr.mxu0 0.0
    %1731 = vmatpush1.xpose.msra.mxu0 0.0
    %1732 = vmatprep.subr.mxu0 0.0
    %1733 = vmatpush1.xpose.msra.mxu0 0.0
    %1734 = vmatprep.subr.mxu0 0.0
    %1735 = vmatpush1.xpose.msra.mxu0 0.0
    %1736 = vmatprep.subr.mxu0 0.0
    %1737 = vmatpush1.xpose.msra.mxu0 0.0
    %1738 = vmatprep.subr.mxu0 0.0
    %1739 = vmatpush1.xpose.msra.mxu0 0.0
    %1740 = vmatprep.subr.mxu0 0.0
    %1741 = vmatpush1.xpose.msra.mxu0 0.0
    %1742 = vmatprep.subr.mxu0 0.0
    %1743 = vmatpush1.xpose.msra.mxu0 0.0
    %1744 = vmatprep.mubr.f32.mxu0 0.0
    %1745 = vmatmul.mubr.f32.gmra.mrb[0].mxu0 %v1673
    %v1746 = vpop.f32.mrb[0].mxu0
    %v1747 = vadd.f32 0.0, %v1746
    %v1748 = vpop.f32.mrb[0].mxu0
    %1749 = vdwg.mxu0
    %v1751 = vsel %vm186, %v1426, 0
    %v1754 = vsel %vm186, %v38, 0
    %v1756 = vsel %vm186, %v39, 0
    %1758 = vmatprep.subr.mxu0 0.0
    %1759 = vmatpush1.xpose.msra.mxu0 %v1754
    %1760 = vmatprep.subr.mxu0 0.0
    %1761 = vmatpush1.xpose.msra.mxu0 %v1756
    %1762 = vmatprep.subr.mxu0 0.0
    %1763 = vmatpush1.xpose.msra.mxu0 0.0
    %1764 = vmatprep.subr.mxu0 0.0
    %1765 = vmatpush1.xpose.msra.mxu0 0.0
    %1766 = vmatprep.subr.mxu0 0.0
    %1767 = vmatpush1.xpose.msra.mxu0 0.0
    %1768 = vmatprep.subr.mxu0 0.0
    %1769 = vmatpush1.xpose.msra.mxu0 0.0
    %1770 = vmatprep.subr.mxu0 0.0
    %1771 = vmatpush1.xpose.msra.mxu0 0.0
    %1772 = vmatprep.subr.mxu0 0.0
    %1773 = vmatpush1.xpose.msra.mxu0 0.0
    %1774 = vmatprep.subr.mxu0 0.0
    %1775 = vmatpush1.xpose.msra.mxu0 0.0
    %1776 = vmatprep.subr.mxu0 0.0
    %1777 = vmatpush1.xpose.msra.mxu0 0.0
    %1778 = vmatprep.subr.mxu0 0.0
    %1779 = vmatpush1.xpose.msra.mxu0 0.0
    %1780 = vmatprep.subr.mxu0 0.0
    %1781 = vmatpush1.xpose.msra.mxu0 0.0
    %1782 = vmatprep.subr.mxu0 0.0
    %1783 = vmatpush1.xpose.msra.mxu0 0.0
    %1784 = vmatprep.subr.mxu0 0.0
    %1785 = vmatpush1.xpose.msra.mxu0 0.0
    %1786 = vmatprep.subr.mxu0 0.0
    %1787 = vmatpush1.xpose.msra.mxu0 0.0
    %1788 = vmatprep.subr.mxu0 0.0
    %1789 = vmatpush1.xpose.msra.mxu0 0.0
    %1790 = vmatprep.subr.mxu0 0.0
    %1791 = vmatpush1.xpose.msra.mxu0 0.0
    %1792 = vmatprep.subr.mxu0 0.0
    %1793 = vmatpush1.xpose.msra.mxu0 0.0
    %1794 = vmatprep.subr.mxu0 0.0
    %1795 = vmatpush1.xpose.msra.mxu0 0.0
    %1796 = vmatprep.subr.mxu0 0.0
    %1797 = vmatpush1.xpose.msra.mxu0 0.0
    %1798 = vmatprep.subr.mxu0 0.0
    %1799 = vmatpush1.xpose.msra.mxu0 0.0
    %1800 = vmatprep.subr.mxu0 0.0
    %1801 = vmatpush1.xpose.msra.mxu0 0.0
    %1802 = vmatprep.subr.mxu0 0.0
    %1803 = vmatpush1.xpose.msra.mxu0 0.0
    %1804 = vmatprep.subr.mxu0 0.0
    %1805 = vmatpush1.xpose.msra.mxu0 0.0
    %1806 = vmatprep.subr.mxu0 0.0
    %1807 = vmatpush1.xpose.msra.mxu0 0.0
    %1808 = vmatprep.subr.mxu0 0.0
    %1809 = vmatpush1.xpose.msra.mxu0 0.0
    %1810 = vmatprep.subr.mxu0 0.0
    %1811 = vmatpush1.xpose.msra.mxu0 0.0
    %1812 = vmatprep.subr.mxu0 0.0
    %1813 = vmatpush1.xpose.msra.mxu0 0.0
    %1814 = vmatprep.subr.mxu0 0.0
    %1815 = vmatpush1.xpose.msra.mxu0 0.0
    %1816 = vmatprep.subr.mxu0 0.0
    %1817 = vmatpush1.xpose.msra.mxu0 0.0
    %1818 = vmatprep.subr.mxu0 0.0
    %1819 = vmatpush1.xpose.msra.mxu0 0.0
    %1820 = vmatprep.subr.mxu0 0.0
    %1821 = vmatpush1.xpose.msra.mxu0 0.0
    %1822 = vmatprep.mubr.f32.mxu0 0.0
    %1823 = vmatmul.mubr.f32.gmra.mrb[0].mxu0 %v1751
    %v1824 = vpop.f32.mrb[0].mxu0
    %v1825 = vadd.f32 0.0, %v1824
    %v1826 = vpop.f32.mrb[0].mxu0
    %1827 = vdwg.mxu0
    %v1829 = vsel %vm186, %v1436, 0
    %v1832 = vsel %vm186, %v40, 0
    %v1834 = vsel %vm186, %v41, 0
    %1836 = vmatprep.subr.mxu0 0.0
    %1837 = vmatpush1.xpose.msra.mxu0 %v1832
    %1838 = vmatprep.subr.mxu0 0.0
    %1839 = vmatpush1.xpose.msra.mxu0 %v1834
    %1840 = vmatprep.subr.mxu0 0.0
    %1841 = vmatpush1.xpose.msra.mxu0 0.0
    %1842 = vmatprep.subr.mxu0 0.0
    %1843 = vmatpush1.xpose.msra.mxu0 0.0
    %1844 = vmatprep.subr.mxu0 0.0
    %1845 = vmatpush1.xpose.msra.mxu0 0.0
    %1846 = vmatprep.subr.mxu0 0.0
    %1847 = vmatpush1.xpose.msra.mxu0 0.0
    %1848 = vmatprep.subr.mxu0 0.0
    %1849 = vmatpush1.xpose.msra.mxu0 0.0
    %1850 = vmatprep.subr.mxu0 0.0
    %1851 = vmatpush1.xpose.msra.mxu0 0.0
    %1852 = vmatprep.subr.mxu0 0.0
    %1853 = vmatpush1.xpose.msra.mxu0 0.0
    %1854 = vmatprep.subr.mxu0 0.0
    %1855 = vmatpush1.xpose.msra.mxu0 0.0
    %1856 = vmatprep.subr.mxu0 0.0
    %1857 = vmatpush1.xpose.msra.mxu0 0.0
    %1858 = vmatprep.subr.mxu0 0.0
    %1859 = vmatpush1.xpose.msra.mxu0 0.0
    %1860 = vmatprep.subr.mxu0 0.0
    %1861 = vmatpush1.xpose.msra.mxu0 0.0
    %1862 = vmatprep.subr.mxu0 0.0
    %1863 = vmatpush1.xpose.msra.mxu0 0.0
    %1864 = vmatprep.subr.mxu0 0.0
    %1865 = vmatpush1.xpose.msra.mxu0 0.0
    %1866 = vmatprep.subr.mxu0 0.0
    %1867 = vmatpush1.xpose.msra.mxu0 0.0
    %1868 = vmatprep.subr.mxu0 0.0
    %1869 = vmatpush1.xpose.msra.mxu0 0.0
    %1870 = vmatprep.subr.mxu0 0.0
    %1871 = vmatpush1.xpose.msra.mxu0 0.0
    %1872 = vmatprep.subr.mxu0 0.0
    %1873 = vmatpush1.xpose.msra.mxu0 0.0
    %1874 = vmatprep.subr.mxu0 0.0
    %1875 = vmatpush1.xpose.msra.mxu0 0.0
    %1876 = vmatprep.subr.mxu0 0.0
    %1877 = vmatpush1.xpose.msra.mxu0 0.0
    %1878 = vmatprep.subr.mxu0 0.0
    %1879 = vmatpush1.xpose.msra.mxu0 0.0
    %1880 = vmatprep.subr.mxu0 0.0
    %1881 = vmatpush1.xpose.msra.mxu0 0.0
    %1882 = vmatprep.subr.mxu0 0.0
    %1883 = vmatpush1.xpose.msra.mxu0 0.0
    %1884 = vmatprep.subr.mxu0 0.0
    %1885 = vmatpush1.xpose.msra.mxu0 0.0
    %1886 = vmatprep.subr.mxu0 0.0
    %1887 = vmatpush1.xpose.msra.mxu0 0.0
    %1888 = vmatprep.subr.mxu0 0.0
    %1889 = vmatpush1.xpose.msra.mxu0 0.0
    %1890 = vmatprep.subr.mxu0 0.0
    %1891 = vmatpush1.xpose.msra.mxu0 0.0
    %1892 = vmatprep.subr.mxu0 0.0
    %1893 = vmatpush1.xpose.msra.mxu0 0.0
    %1894 = vmatprep.subr.mxu0 0.0
    %1895 = vmatpush1.xpose.msra.mxu0 0.0
    %1896 = vmatprep.subr.mxu0 0.0
    %1897 = vmatpush1.xpose.msra.mxu0 0.0
    %1898 = vmatprep.subr.mxu0 0.0
    %1899 = vmatpush1.xpose.msra.mxu0 0.0
    %1900 = vmatprep.mubr.f32.mxu0 0.0
    %1901 = vmatmul.mubr.f32.gmra.mrb[0].mxu0 %v1829
    %v1902 = vpop.f32.mrb[0].mxu0
    %v1903 = vadd.f32 0.0, %v1902
    %v1904 = vpop.f32.mrb[0].mxu0
    %1905 = vdwg.mxu0
    %v1907 = vsel %vm186, %v1433, 0
    %v1910 = vsel %vm186, %v42, 0
    %v1912 = vsel %vm186, %v43, 0
    %1914 = vmatprep.subr.mxu0 0.0
    %1915 = vmatpush1.xpose.msra.mxu0 %v1910
    %1916 = vmatprep.subr.mxu0 0.0
    %1917 = vmatpush1.xpose.msra.mxu0 %v1912
    %1918 = vmatprep.subr.mxu0 0.0
    %1919 = vmatpush1.xpose.msra.mxu0 0.0
    %1920 = vmatprep.subr.mxu0 0.0
    %1921 = vmatpush1.xpose.msra.mxu0 0.0
    %1922 = vmatprep.subr.mxu0 0.0
    %1923 = vmatpush1.xpose.msra.mxu0 0.0
    %1924 = vmatprep.subr.mxu0 0.0
    %1925 = vmatpush1.xpose.msra.mxu0 0.0
    %1926 = vmatprep.subr.mxu0 0.0
    %1927 = vmatpush1.xpose.msra.mxu0 0.0
    %1928 = vmatprep.subr.mxu0 0.0
    %1929 = vmatpush1.xpose.msra.mxu0 0.0
    %1930 = vmatprep.subr.mxu0 0.0
    %1931 = vmatpush1.xpose.msra.mxu0 0.0
    %1932 = vmatprep.subr.mxu0 0.0
    %1933 = vmatpush1.xpose.msra.mxu0 0.0
    %1934 = vmatprep.subr.mxu0 0.0
    %1935 = vmatpush1.xpose.msra.mxu0 0.0
    %1936 = vmatprep.subr.mxu0 0.0
    %1937 = vmatpush1.xpose.msra.mxu0 0.0
    %1938 = vmatprep.subr.mxu0 0.0
    %1939 = vmatpush1.xpose.msra.mxu0 0.0
    %1940 = vmatprep.subr.mxu0 0.0
    %1941 = vmatpush1.xpose.msra.mxu0 0.0
    %1942 = vmatprep.subr.mxu0 0.0
    %1943 = vmatpush1.xpose.msra.mxu0 0.0
    %1944 = vmatprep.subr.mxu0 0.0
    %1945 = vmatpush1.xpose.msra.mxu0 0.0
    %1946 = vmatprep.subr.mxu0 0.0
    %1947 = vmatpush1.xpose.msra.mxu0 0.0
    %1948 = vmatprep.subr.mxu0 0.0
    %1949 = vmatpush1.xpose.msra.mxu0 0.0
    %1950 = vmatprep.subr.mxu0 0.0
    %1951 = vmatpush1.xpose.msra.mxu0 0.0
    %1952 = vmatprep.subr.mxu0 0.0
    %1953 = vmatpush1.xpose.msra.mxu0 0.0
    %1954 = vmatprep.subr.mxu0 0.0
    %1955 = vmatpush1.xpose.msra.mxu0 0.0
    %1956 = vmatprep.subr.mxu0 0.0
    %1957 = vmatpush1.xpose.msra.mxu0 0.0
    %1958 = vmatprep.subr.mxu0 0.0
    %1959 = vmatpush1.xpose.msra.mxu0 0.0
    %1960 = vmatprep.subr.mxu0 0.0
    %1961 = vmatpush1.xpose.msra.mxu0 0.0
    %1962 = vmatprep.subr.mxu0 0.0
    %1963 = vmatpush1.xpose.msra.mxu0 0.0
    %1964 = vmatprep.subr.mxu0 0.0
    %1965 = vmatpush1.xpose.msra.mxu0 0.0
    %1966 = vmatprep.subr.mxu0 0.0
    %1967 = vmatpush1.xpose.msra.mxu0 0.0
    %1968 = vmatprep.subr.mxu0 0.0
    %1969 = vmatpush1.xpose.msra.mxu0 0.0
    %1970 = vmatprep.subr.mxu0 0.0
    %1971 = vmatpush1.xpose.msra.mxu0 0.0
    %1972 = vmatprep.subr.mxu0 0.0
    %1973 = vmatpush1.xpose.msra.mxu0 0.0
    %1974 = vmatprep.subr.mxu0 0.0
    %1975 = vmatpush1.xpose.msra.mxu0 0.0
    %1976 = vmatprep.subr.mxu0 0.0
    %1977 = vmatpush1.xpose.msra.mxu0 0.0
    %1978 = vmatprep.mubr.f32.mxu0 0.0
    %1979 = vmatmul.mubr.f32.gmra.mrb[0].mxu0 %v1907
    %v1980 = vpop.f32.mrb[0].mxu0
    %v1981 = vadd.f32 0.0, %v1980
    %v1982 = vpop.f32.mrb[0].mxu0
    %1983 = vdwg.mxu0
    %v1985 = vsel %vm186, %v1437, 0
    %v1988 = vsel %vm186, %v44, 0
    %v1990 = vsel %vm186, %v45, 0
    %1992 = vmatprep.subr.mxu0 0.0
    %1993 = vmatpush1.xpose.msra.mxu0 %v1988
    %1994 = vmatprep.subr.mxu0 0.0
    %1995 = vmatpush1.xpose.msra.mxu0 %v1990
    %1996 = vmatprep.subr.mxu0 0.0
    %1997 = vmatpush1.xpose.msra.mxu0 0.0
    %1998 = vmatprep.subr.mxu0 0.0
    %1999 = vmatpush1.xpose.msra.mxu0 0.0
    %2000 = vmatprep.subr.mxu0 0.0
    %2001 = vmatpush1.xpose.msra.mxu0 0.0
    %2002 = vmatprep.subr.mxu0 0.0
    %2003 = vmatpush1.xpose.msra.mxu0 0.0
    %2004 = vmatprep.subr.mxu0 0.0
    %2005 = vmatpush1.xpose.msra.mxu0 0.0
    %2006 = vmatprep.subr.mxu0 0.0
    %2007 = vmatpush1.xpose.msra.mxu0 0.0
    %2008 = vmatprep.subr.mxu0 0.0
    %2009 = vmatpush1.xpose.msra.mxu0 0.0
    %2010 = vmatprep.subr.mxu0 0.0
    %2011 = vmatpush1.xpose.msra.mxu0 0.0
    %2012 = vmatprep.subr.mxu0 0.0
    %2013 = vmatpush1.xpose.msra.mxu0 0.0
    %2014 = vmatprep.subr.mxu0 0.0
    %2015 = vmatpush1.xpose.msra.mxu0 0.0
    %2016 = vmatprep.subr.mxu0 0.0
    %2017 = vmatpush1.xpose.msra.mxu0 0.0
    %2018 = vmatprep.subr.mxu0 0.0
    %2019 = vmatpush1.xpose.msra.mxu0 0.0
    %2020 = vmatprep.subr.mxu0 0.0
    %2021 = vmatpush1.xpose.msra.mxu0 0.0
    %2022 = vmatprep.subr.mxu0 0.0
    %2023 = vmatpush1.xpose.msra.mxu0 0.0
    %2024 = vmatprep.subr.mxu0 0.0
    %2025 = vmatpush1.xpose.msra.mxu0 0.0
    %2026 = vmatprep.subr.mxu0 0.0
    %2027 = vmatpush1.xpose.msra.mxu0 0.0
    %2028 = vmatprep.subr.mxu0 0.0
    %2029 = vmatpush1.xpose.msra.mxu0 0.0
    %2030 = vmatprep.subr.mxu0 0.0
    %2031 = vmatpush1.xpose.msra.mxu0 0.0
    %2032 = vmatprep.subr.mxu0 0.0
    %2033 = vmatpush1.xpose.msra.mxu0 0.0
    %2034 = vmatprep.subr.mxu0 0.0
    %2035 = vmatpush1.xpose.msra.mxu0 0.0
    %2036 = vmatprep.subr.mxu0 0.0
    %2037 = vmatpush1.xpose.msra.mxu0 0.0
    %2038 = vmatprep.subr.mxu0 0.0
    %2039 = vmatpush1.xpose.msra.mxu0 0.0
    %2040 = vmatprep.subr.mxu0 0.0
    %2041 = vmatpush1.xpose.msra.mxu0 0.0
    %2042 = vmatprep.subr.mxu0 0.0
    %2043 = vmatpush1.xpose.msra.mxu0 0.0
    %2044 = vmatprep.subr.mxu0 0.0
    %2045 = vmatpush1.xpose.msra.mxu0 0.0
    %2046 = vmatprep.subr.mxu0 0.0
    %2047 = vmatpush1.xpose.msra.mxu0 0.0
    %2048 = vmatprep.subr.mxu0 0.0
    %2049 = vmatpush1.xpose.msra.mxu0 0.0
    %2050 = vmatprep.subr.mxu0 0.0
    %2051 = vmatpush1.xpose.msra.mxu0 0.0
    %2052 = vmatprep.subr.mxu0 0.0
    %2053 = vmatpush1.xpose.msra.mxu0 0.0
    %2054 = vmatprep.subr.mxu0 0.0
    %2055 = vmatpush1.xpose.msra.mxu0 0.0
    %2056 = vmatprep.mubr.f32.mxu0 0.0
    %2057 = vmatmul.mubr.f32.gmra.mrb[0].mxu0 %v1985
    %v2058 = vpop.f32.mrb[0].mxu0
    %v2059 = vadd.f32 0.0, %v2058
    %v2060 = vpop.f32.mrb[0].mxu0
    %2061 = vdwg.mxu0
    %v2070 = vcombine.low %v1513, %v1591
    %v2071 = vcombine.low %v1669, %v1747
    %v2072 = vcombine.low %v1825, %v1903
    %v2073 = vcombine.low %v1981, %v2059
    %v2074 = vsel %vm348, %v2070, 0
    %v2076 = vsel %vm348, %v2071, 0
    %v2078 = vsel %vm348, %v2072, 0
    %v2080 = vsel %vm348, %v2073, 0
    %v2083 = vsel %vm352, %v76, 0
    %2085 = vmatprep.subr.mxu0 0.0
    %2086 = vmatpush1.msra.mxu0 %v75
    %2087 = vmatprep.subr.mxu0 0.0
    %2088 = vmatpush1.msra.mxu0 %v2083
    %2089 = vmatprep.subr.mxu0 0.0
    %2090 = vmatpush1.msra.mxu0 0.0
    %2091 = vmatprep.subr.mxu0 0.0
    %2092 = vmatpush1.msra.mxu0 0.0
    %2093 = vmatprep.subr.mxu0 0.0
    %2094 = vmatpush1.msra.mxu0 0.0
    %2095 = vmatprep.subr.mxu0 0.0
    %2096 = vmatpush1.msra.mxu0 0.0
    %2097 = vmatprep.subr.mxu0 0.0
    %2098 = vmatpush1.msra.mxu0 0.0
    %2099 = vmatprep.subr.mxu0 0.0
    %2100 = vmatpush1.msra.mxu0 0.0
    %2101 = vmatprep.subr.mxu0 0.0
    %2102 = vmatpush1.msra.mxu0 0.0
    %2103 = vmatprep.subr.mxu0 0.0
    %2104 = vmatpush1.msra.mxu0 0.0
    %2105 = vmatprep.subr.mxu0 0.0
    %2106 = vmatpush1.msra.mxu0 0.0
    %2107 = vmatprep.subr.mxu0 0.0
    %2108 = vmatpush1.msra.mxu0 0.0
    %2109 = vmatprep.subr.mxu0 0.0
    %2110 = vmatpush1.msra.mxu0 0.0
    %2111 = vmatprep.subr.mxu0 0.0
    %2112 = vmatpush1.msra.mxu0 0.0
    %2113 = vmatprep.subr.mxu0 0.0
    %2114 = vmatpush1.msra.mxu0 0.0
    %2115 = vmatprep.subr.mxu0 0.0
    %2116 = vmatpush1.msra.mxu0 0.0
    %2117 = vmatprep.subr.mxu0 0.0
    %2118 = vmatpush1.msra.mxu0 0.0
    %2119 = vmatprep.subr.mxu0 0.0
    %2120 = vmatpush1.msra.mxu0 0.0
    %2121 = vmatprep.subr.mxu0 0.0
    %2122 = vmatpush1.msra.mxu0 0.0
    %2123 = vmatprep.subr.mxu0 0.0
    %2124 = vmatpush1.msra.mxu0 0.0
    %2125 = vmatprep.subr.mxu0 0.0
    %2126 = vmatpush1.msra.mxu0 0.0
    %2127 = vmatprep.subr.mxu0 0.0
    %2128 = vmatpush1.msra.mxu0 0.0
    %2129 = vmatprep.subr.mxu0 0.0
    %2130 = vmatpush1.msra.mxu0 0.0
    %2131 = vmatprep.subr.mxu0 0.0
    %2132 = vmatpush1.msra.mxu0 0.0
    %2133 = vmatprep.subr.mxu0 0.0
    %2134 = vmatpush1.msra.mxu0 0.0
    %2135 = vmatprep.subr.mxu0 0.0
    %2136 = vmatpush1.msra.mxu0 0.0
    %2137 = vmatprep.subr.mxu0 0.0
    %2138 = vmatpush1.msra.mxu0 0.0
    %2139 = vmatprep.subr.mxu0 0.0
    %2140 = vmatpush1.msra.mxu0 0.0
    %2141 = vmatprep.subr.mxu0 0.0
    %2142 = vmatpush1.msra.mxu0 0.0
    %2143 = vmatprep.subr.mxu0 0.0
    %2144 = vmatpush1.msra.mxu0 0.0
    %2145 = vmatprep.subr.mxu0 0.0
    %2146 = vmatpush1.msra.mxu0 0.0
    %2147 = vmatprep.subr.mxu0 0.0
    %2148 = vmatpush1.msra.mxu0 0.0
    %2149 = vmatprep.mubr.f32.mxu0 0.0
    %2150 = vmatmul.mubr.f32.gmra.mrb[0].mxu0 %v2074
    %v2151 = vpop.f32.mrb[0].mxu0
    %v2152 = vadd.f32 0.0, %v2151
    %v2153 = vpop.f32.mrb[0].mxu0
    %2154 = vmatprep.mubr.f32.mxu0 0.0
    %2155 = vmatmul.mubr.f32.gmra.mrb[0].mxu0 %v2076
    %v2156 = vpop.f32.mrb[0].mxu0
    %v2157 = vadd.f32 0.0, %v2156
    %v2158 = vpop.f32.mrb[0].mxu0
    %2159 = vmatprep.mubr.f32.mxu0 0.0
    %2160 = vmatmul.mubr.f32.gmra.mrb[0].mxu0 %v2078
    %v2161 = vpop.f32.mrb[0].mxu0
    %v2162 = vadd.f32 0.0, %v2161
    %v2163 = vpop.f32.mrb[0].mxu0
    %2164 = vmatprep.mubr.f32.mxu0 0.0
    %2165 = vmatmul.mubr.f32.gmra.mrb[0].mxu0 %v2080
    %v2166 = vpop.f32.mrb[0].mxu0
    %v2167 = vadd.f32 0.0, %v2166
    %v2168 = vpop.f32.mrb[0].mxu0
    %2169 = vdwg.mxu0
    %v2174 = vcombine.high %v2152, %v2152
    %v2175 = vcombine.high %v2157, %v2157
    %v2176 = vcombine.high %v2162, %v2162
    %v2177 = vcombine.high %v2167, %v2167
    %v2182 = vcombine.low %v2152, %v2157
    %v2184 = vunpack.c.l.s4 1983009808
    %v2185 = vunpack.c.0.s8 %v2184
    %v2186 = vlaneseq
    %v2187 = vshrl.u32 %v2186, 7
    %v2188 = vsub.s32 %v2185, %v2187
    %v2189 = vrot.slane %v2182, %v2188
    %v2190 = vcombine.low %v2174, %v2175
    %v2192 = vunpack.c.l.s4 1983009808
    %v2193 = vunpack.c.0.s8 %v2192
    %v2194 = vlaneseq
    %v2195 = vshrl.u32 %v2194, 7
    %v2196 = vsub.s32 %v2193, %v2195
    %v2197 = vrot.slane %v2190, %v2196
    %v2198 = vcombine.low %v2189, %v2197
    %v2199 = vcombine.high %v2189, %v2197
    %v2201 = vunpack.c.l.s4 1934713408
    %v2202 = vunpack.c.0.s8 %v2201
    %v2203 = vlaneseq
    %v2204 = vshrl.u32 %v2203, 7
    %v2205 = vsub.s32 %v2202, %v2204
    %v2206 = vrot.slane %v2198, %v2205
    %v2208 = vunpack.c.l.s4 1934713408
    %v2209 = vunpack.c.0.s8 %v2208
    %v2210 = vlaneseq
    %v2211 = vshrl.u32 %v2210, 7
    %v2212 = vsub.s32 %v2209, %v2211
    %v2213 = vrot.slane %v2199, %v2212
    %v2214 = vcombine.high %v2206, 0.0
    %v2215 = vcombine.high %v2213, 0.0
    %v2216 = vcombine.low %v2162, %v2167
    %v2218 = vunpack.c.l.s4 1983009808
    %v2219 = vunpack.c.0.s8 %v2218
    %v2220 = vlaneseq
    %v2221 = vshrl.u32 %v2220, 7
    %v2222 = vsub.s32 %v2219, %v2221
    %v2223 = vrot.slane %v2216, %v2222
    %v2224 = vcombine.low %v2176, %v2177
    %v2226 = vunpack.c.l.s4 1983009808
    %v2227 = vunpack.c.0.s8 %v2226
    %v2228 = vlaneseq
    %v2229 = vshrl.u32 %v2228, 7
    %v2230 = vsub.s32 %v2227, %v2229
    %v2231 = vrot.slane %v2224, %v2230
    %v2232 = vcombine.low %v2223, %v2231
    %v2233 = vcombine.high %v2223, %v2231
    %v2235 = vunpack.c.l.s4 1934713408
    %v2236 = vunpack.c.0.s8 %v2235
    %v2237 = vlaneseq
    %v2238 = vshrl.u32 %v2237, 7
    %v2239 = vsub.s32 %v2236, %v2238
    %v2240 = vrot.slane %v2232, %v2239
    %v2242 = vunpack.c.l.s4 1934713408
    %v2243 = vunpack.c.0.s8 %v2242
    %v2244 = vlaneseq
    %v2245 = vshrl.u32 %v2244, 7
    %v2246 = vsub.s32 %v2243, %v2245
    %v2247 = vrot.slane %v2233, %v2246
    %v2248 = vcombine.high %v2240, 0.0
    %v2249 = vcombine.high %v2247, 0.0
    %2250 = vrot.lane.b32.xlu0 %v176, 64
    %v2251 = vpop.permute.xlu0 %2250
    %v2255 = vcombine.low %v2206, %v2240
    %v2258 = vsel %vm186, %v1366, 0
    %2260 = vmatprep.subr.mxu0 0.0
    %2261 = vmatpush1.msra.mxu0 %v2251
    %2262 = vmatprep.subr.mxu0 0.0
    %2263 = vmatpush1.msra.mxu0 0.0
    %2264 = vmatprep.subr.mxu0 0.0
    %2265 = vmatpush1.msra.mxu0 0.0
    %2266 = vmatprep.subr.mxu0 0.0
    %2267 = vmatpush1.msra.mxu0 0.0
    %2268 = vmatprep.subr.mxu0 0.0
    %2269 = vmatpush1.msra.mxu0 0.0
    %2270 = vmatprep.subr.mxu0 0.0
    %2271 = vmatpush1.msra.mxu0 0.0
    %2272 = vmatprep.subr.mxu0 0.0
    %2273 = vmatpush1.msra.mxu0 0.0
    %2274 = vmatprep.subr.mxu0 0.0
    %2275 = vmatpush1.msra.mxu0 0.0
    %2276 = vmatprep.subr.mxu0 0.0
    %2277 = vmatpush1.msra.mxu0 0.0
    %2278 = vmatprep.subr.mxu0 0.0
    %2279 = vmatpush1.msra.mxu0 0.0
    %2280 = vmatprep.subr.mxu0 0.0
    %2281 = vmatpush1.msra.mxu0 0.0
    %2282 = vmatprep.subr.mxu0 0.0
    %2283 = vmatpush1.msra.mxu0 0.0
    %2284 = vmatprep.subr.mxu0 0.0
    %2285 = vmatpush1.msra.mxu0 0.0
    %2286 = vmatprep.subr.mxu0 0.0
    %2287 = vmatpush1.msra.mxu0 0.0
    %2288 = vmatprep.subr.mxu0 0.0
    %2289 = vmatpush1.msra.mxu0 0.0
    %2290 = vmatprep.subr.mxu0 0.0
    %2291 = vmatpush1.msra.mxu0 0.0
    %2292 = vmatprep.subr.mxu0 0.0
    %2293 = vmatpush1.msra.mxu0 0.0
    %2294 = vmatprep.subr.mxu0 0.0
    %2295 = vmatpush1.msra.mxu0 0.0
    %2296 = vmatprep.subr.mxu0 0.0
    %2297 = vmatpush1.msra.mxu0 0.0
    %2298 = vmatprep.subr.mxu0 0.0
    %2299 = vmatpush1.msra.mxu0 0.0
    %2300 = vmatprep.subr.mxu0 0.0
    %2301 = vmatpush1.msra.mxu0 0.0
    %2302 = vmatprep.subr.mxu0 0.0
    %2303 = vmatpush1.msra.mxu0 0.0
    %2304 = vmatprep.subr.mxu0 0.0
    %2305 = vmatpush1.msra.mxu0 0.0
    %2306 = vmatprep.subr.mxu0 0.0
    %2307 = vmatpush1.msra.mxu0 0.0
    %2308 = vmatprep.subr.mxu0 0.0
    %2309 = vmatpush1.msra.mxu0 0.0
    %2310 = vmatprep.subr.mxu0 0.0
    %2311 = vmatpush1.msra.mxu0 0.0
    %2312 = vmatprep.subr.mxu0 0.0
    %2313 = vmatpush1.msra.mxu0 0.0
    %2314 = vmatprep.subr.mxu0 0.0
    %2315 = vmatpush1.msra.mxu0 0.0
    %2316 = vmatprep.subr.mxu0 0.0
    %2317 = vmatpush1.msra.mxu0 0.0
    %2318 = vmatprep.subr.mxu0 0.0
    %2319 = vmatpush1.msra.mxu0 0.0
    %2320 = vmatprep.subr.mxu0 0.0
    %2321 = vmatpush1.msra.mxu0 0.0
    %2322 = vmatprep.subr.mxu0 0.0
    %2323 = vmatpush1.msra.mxu0 0.0
    %2324 = vmatprep.mubr.f32.mxu0 0.0
    %2325 = vmatmul.mubr.f32.gmra.mrb[0].mxu0 %v2258
    %v2326 = vpop.f32.mrb[0].mxu0
    %v2327 = vadd.f32 %v2255, %v2326
    %v2328 = vpop.f32.mrb[0].mxu0
    %2329 = vdwg.mxu0
    %2330 = vrot.lane.b32.xlu0 %v181, 64
    %v2331 = vpop.permute.xlu0 %2330
    %v2335 = vcombine.low %v2214, %v2248
    %v2338 = vsel %vm186, %v1367, 0
    %2340 = vmatprep.subr.mxu0 0.0
    %2341 = vmatpush1.msra.mxu0 %v2331
    %2342 = vmatprep.subr.mxu0 0.0
    %2343 = vmatpush1.msra.mxu0 0.0
    %2344 = vmatprep.subr.mxu0 0.0
    %2345 = vmatpush1.msra.mxu0 0.0
    %2346 = vmatprep.subr.mxu0 0.0
    %2347 = vmatpush1.msra.mxu0 0.0
    %2348 = vmatprep.subr.mxu0 0.0
    %2349 = vmatpush1.msra.mxu0 0.0
    %2350 = vmatprep.subr.mxu0 0.0
    %2351 = vmatpush1.msra.mxu0 0.0
    %2352 = vmatprep.subr.mxu0 0.0
    %2353 = vmatpush1.msra.mxu0 0.0
    %2354 = vmatprep.subr.mxu0 0.0
    %2355 = vmatpush1.msra.mxu0 0.0
    %2356 = vmatprep.subr.mxu0 0.0
    %2357 = vmatpush1.msra.mxu0 0.0
    %2358 = vmatprep.subr.mxu0 0.0
    %2359 = vmatpush1.msra.mxu0 0.0
    %2360 = vmatprep.subr.mxu0 0.0
    %2361 = vmatpush1.msra.mxu0 0.0
    %2362 = vmatprep.subr.mxu0 0.0
    %2363 = vmatpush1.msra.mxu0 0.0
    %2364 = vmatprep.subr.mxu0 0.0
    %2365 = vmatpush1.msra.mxu0 0.0
    %2366 = vmatprep.subr.mxu0 0.0
    %2367 = vmatpush1.msra.mxu0 0.0
    %2368 = vmatprep.subr.mxu0 0.0
    %2369 = vmatpush1.msra.mxu0 0.0
    %2370 = vmatprep.subr.mxu0 0.0
    %2371 = vmatpush1.msra.mxu0 0.0
    %2372 = vmatprep.subr.mxu0 0.0
    %2373 = vmatpush1.msra.mxu0 0.0
    %2374 = vmatprep.subr.mxu0 0.0
    %2375 = vmatpush1.msra.mxu0 0.0
    %2376 = vmatprep.subr.mxu0 0.0
    %2377 = vmatpush1.msra.mxu0 0.0
    %2378 = vmatprep.subr.mxu0 0.0
    %2379 = vmatpush1.msra.mxu0 0.0
    %2380 = vmatprep.subr.mxu0 0.0
    %2381 = vmatpush1.msra.mxu0 0.0
    %2382 = vmatprep.subr.mxu0 0.0
    %2383 = vmatpush1.msra.mxu0 0.0
    %2384 = vmatprep.subr.mxu0 0.0
    %2385 = vmatpush1.msra.mxu0 0.0
    %2386 = vmatprep.subr.mxu0 0.0
    %2387 = vmatpush1.msra.mxu0 0.0
    %2388 = vmatprep.subr.mxu0 0.0
    %2389 = vmatpush1.msra.mxu0 0.0
    %2390 = vmatprep.subr.mxu0 0.0
    %2391 = vmatpush1.msra.mxu0 0.0
    %2392 = vmatprep.subr.mxu0 0.0
    %2393 = vmatpush1.msra.mxu0 0.0
    %2394 = vmatprep.subr.mxu0 0.0
    %2395 = vmatpush1.msra.mxu0 0.0
    %2396 = vmatprep.subr.mxu0 0.0
    %2397 = vmatpush1.msra.mxu0 0.0
    %2398 = vmatprep.subr.mxu0 0.0
    %2399 = vmatpush1.msra.mxu0 0.0
    %2400 = vmatprep.subr.mxu0 0.0
    %2401 = vmatpush1.msra.mxu0 0.0
    %2402 = vmatprep.subr.mxu0 0.0
    %2403 = vmatpush1.msra.mxu0 0.0
    %2404 = vmatprep.mubr.f32.mxu0 0.0
    %2405 = vmatmul.mubr.f32.gmra.mrb[0].mxu0 %v2338
    %v2406 = vpop.f32.mrb[0].mxu0
    %v2407 = vadd.f32 %v2335, %v2406
    %v2408 = vpop.f32.mrb[0].mxu0
    %2409 = vdwg.mxu0
    %2410 = vrot.lane.b32.xlu0 %v183, 64
    %v2411 = vpop.permute.xlu0 %2410
    %v2415 = vcombine.low %v2213, %v2247
    %v2418 = vsel %vm186, %v1368, 0
    %2420 = vmatprep.subr.mxu0 0.0
    %2421 = vmatpush1.msra.mxu0 %v2411
    %2422 = vmatprep.subr.mxu0 0.0
    %2423 = vmatpush1.msra.mxu0 0.0
    %2424 = vmatprep.subr.mxu0 0.0
    %2425 = vmatpush1.msra.mxu0 0.0
    %2426 = vmatprep.subr.mxu0 0.0
    %2427 = vmatpush1.msra.mxu0 0.0
    %2428 = vmatprep.subr.mxu0 0.0
    %2429 = vmatpush1.msra.mxu0 0.0
    %2430 = vmatprep.subr.mxu0 0.0
    %2431 = vmatpush1.msra.mxu0 0.0
    %2432 = vmatprep.subr.mxu0 0.0
    %2433 = vmatpush1.msra.mxu0 0.0
    %2434 = vmatprep.subr.mxu0 0.0
    %2435 = vmatpush1.msra.mxu0 0.0
    %2436 = vmatprep.subr.mxu0 0.0
    %2437 = vmatpush1.msra.mxu0 0.0
    %2438 = vmatprep.subr.mxu0 0.0
    %2439 = vmatpush1.msra.mxu0 0.0
    %2440 = vmatprep.subr.mxu0 0.0
    %2441 = vmatpush1.msra.mxu0 0.0
    %2442 = vmatprep.subr.mxu0 0.0
    %2443 = vmatpush1.msra.mxu0 0.0
    %2444 = vmatprep.subr.mxu0 0.0
    %2445 = vmatpush1.msra.mxu0 0.0
    %2446 = vmatprep.subr.mxu0 0.0
    %2447 = vmatpush1.msra.mxu0 0.0
    %2448 = vmatprep.subr.mxu0 0.0
    %2449 = vmatpush1.msra.mxu0 0.0
    %2450 = vmatprep.subr.mxu0 0.0
    %2451 = vmatpush1.msra.mxu0 0.0
    %2452 = vmatprep.subr.mxu0 0.0
    %2453 = vmatpush1.msra.mxu0 0.0
    %2454 = vmatprep.subr.mxu0 0.0
    %2455 = vmatpush1.msra.mxu0 0.0
    %2456 = vmatprep.subr.mxu0 0.0
    %2457 = vmatpush1.msra.mxu0 0.0
    %2458 = vmatprep.subr.mxu0 0.0
    %2459 = vmatpush1.msra.mxu0 0.0
    %2460 = vmatprep.subr.mxu0 0.0
    %2461 = vmatpush1.msra.mxu0 0.0
    %2462 = vmatprep.subr.mxu0 0.0
    %2463 = vmatpush1.msra.mxu0 0.0
    %2464 = vmatprep.subr.mxu0 0.0
    %2465 = vmatpush1.msra.mxu0 0.0
    %2466 = vmatprep.subr.mxu0 0.0
    %2467 = vmatpush1.msra.mxu0 0.0
    %2468 = vmatprep.subr.mxu0 0.0
    %2469 = vmatpush1.msra.mxu0 0.0
    %2470 = vmatprep.subr.mxu0 0.0
    %2471 = vmatpush1.msra.mxu0 0.0
    %2472 = vmatprep.subr.mxu0 0.0
    %2473 = vmatpush1.msra.mxu0 0.0
    %2474 = vmatprep.subr.mxu0 0.0
    %2475 = vmatpush1.msra.mxu0 0.0
    %2476 = vmatprep.subr.mxu0 0.0
    %2477 = vmatpush1.msra.mxu0 0.0
    %2478 = vmatprep.subr.mxu0 0.0
    %2479 = vmatpush1.msra.mxu0 0.0
    %2480 = vmatprep.subr.mxu0 0.0
    %2481 = vmatpush1.msra.mxu0 0.0
    %2482 = vmatprep.subr.mxu0 0.0
    %2483 = vmatpush1.msra.mxu0 0.0
    %2484 = vmatprep.mubr.f32.mxu0 0.0
    %2485 = vmatmul.mubr.f32.gmra.mrb[0].mxu0 %v2418
    %v2486 = vpop.f32.mrb[0].mxu0
    %v2487 = vadd.f32 %v2415, %v2486
    %v2488 = vpop.f32.mrb[0].mxu0
    %2489 = vdwg.mxu0
    %2490 = vrot.lane.b32.xlu0 %v185, 64
    %v2491 = vpop.permute.xlu0 %2490
    %v2495 = vcombine.low %v2215, %v2249
    %v2498 = vsel %vm186, %v1369, 0
    %2500 = vmatprep.subr.mxu0 0.0
    %2501 = vmatpush1.msra.mxu0 %v2491
    %2502 = vmatprep.subr.mxu0 0.0
    %2503 = vmatpush1.msra.mxu0 0.0
    %2504 = vmatprep.subr.mxu0 0.0
    %2505 = vmatpush1.msra.mxu0 0.0
    %2506 = vmatprep.subr.mxu0 0.0
    %2507 = vmatpush1.msra.mxu0 0.0
    %2508 = vmatprep.subr.mxu0 0.0
    %2509 = vmatpush1.msra.mxu0 0.0
    %2510 = vmatprep.subr.mxu0 0.0
    %2511 = vmatpush1.msra.mxu0 0.0
    %2512 = vmatprep.subr.mxu0 0.0
    %2513 = vmatpush1.msra.mxu0 0.0
    %2514 = vmatprep.subr.mxu0 0.0
    %2515 = vmatpush1.msra.mxu0 0.0
    %2516 = vmatprep.subr.mxu0 0.0
    %2517 = vmatpush1.msra.mxu0 0.0
    %2518 = vmatprep.subr.mxu0 0.0
    %2519 = vmatpush1.msra.mxu0 0.0
    %2520 = vmatprep.subr.mxu0 0.0
    %2521 = vmatpush1.msra.mxu0 0.0
    %2522 = vmatprep.subr.mxu0 0.0
    %2523 = vmatpush1.msra.mxu0 0.0
    %2524 = vmatprep.subr.mxu0 0.0
    %2525 = vmatpush1.msra.mxu0 0.0
    %2526 = vmatprep.subr.mxu0 0.0
    %2527 = vmatpush1.msra.mxu0 0.0
    %2528 = vmatprep.subr.mxu0 0.0
    %2529 = vmatpush1.msra.mxu0 0.0
    %2530 = vmatprep.subr.mxu0 0.0
    %2531 = vmatpush1.msra.mxu0 0.0
    %2532 = vmatprep.subr.mxu0 0.0
    %2533 = vmatpush1.msra.mxu0 0.0
    %2534 = vmatprep.subr.mxu0 0.0
    %2535 = vmatpush1.msra.mxu0 0.0
    %2536 = vmatprep.subr.mxu0 0.0
    %2537 = vmatpush1.msra.mxu0 0.0
    %2538 = vmatprep.subr.mxu0 0.0
    %2539 = vmatpush1.msra.mxu0 0.0
    %2540 = vmatprep.subr.mxu0 0.0
    %2541 = vmatpush1.msra.mxu0 0.0
    %2542 = vmatprep.subr.mxu0 0.0
    %2543 = vmatpush1.msra.mxu0 0.0
    %2544 = vmatprep.subr.mxu0 0.0
    %2545 = vmatpush1.msra.mxu0 0.0
    %2546 = vmatprep.subr.mxu0 0.0
    %2547 = vmatpush1.msra.mxu0 0.0
    %2548 = vmatprep.subr.mxu0 0.0
    %2549 = vmatpush1.msra.mxu0 0.0
    %2550 = vmatprep.subr.mxu0 0.0
    %2551 = vmatpush1.msra.mxu0 0.0
    %2552 = vmatprep.subr.mxu0 0.0
    %2553 = vmatpush1.msra.mxu0 0.0
    %2554 = vmatprep.subr.mxu0 0.0
    %2555 = vmatpush1.msra.mxu0 0.0
    %2556 = vmatprep.subr.mxu0 0.0
    %2557 = vmatpush1.msra.mxu0 0.0
    %2558 = vmatprep.subr.mxu0 0.0
    %2559 = vmatpush1.msra.mxu0 0.0
    %2560 = vmatprep.subr.mxu0 0.0
    %2561 = vmatpush1.msra.mxu0 0.0
    %2562 = vmatprep.subr.mxu0 0.0
    %2563 = vmatpush1.msra.mxu0 0.0
    %2564 = vmatprep.mubr.f32.mxu0 0.0
    %2565 = vmatmul.mubr.f32.gmra.mrb[0].mxu0 %v2498
    %v2566 = vpop.f32.mrb[0].mxu0
    %v2567 = vadd.f32 %v2495, %v2566
    %v2568 = vpop.f32.mrb[0].mxu0
    %2569 = vdwg.mxu0
    %2571 = vrot.lane.b32.xlu0 %v2407, 8
    %v2572 = vpop.permute.xlu0 %2571
    %2575 = vrot.lane.b32.xlu0 %v2487, 16
    %v2576 = vpop.permute.xlu0 %2575
    %2579 = vrot.lane.b32.xlu0 %v2567, 24
    %v2580 = vpop.permute.xlu0 %2579
    %v2582 = vsel %vm186, %v2327, %v2572
    %vm2583 = vcmask 130048
    %v2584 = vsel %vm2583, %v2582, %v2576
    %vm2585 = vcmask 195584
    %v2586 = vsel %vm2585, %v2584, %v2580
    %2591 = vrot.lane.b32.xlu0 %v46, 32
    %v2592 = vpop.permute.xlu0 %2591
    %2593 = vrot.lane.b32.xlu0 %v47, 32
    %v2594 = vpop.permute.xlu0 %2593
    %2595 = vrot.lane.b32.xlu0 %v48, 32
    %v2596 = vpop.permute.xlu0 %2595
    %2597 = vrot.lane.b32.xlu0 %v49, 32
    %v2598 = vpop.permute.xlu0 %2597
    %2604 = vrot.lane.b32.xlu0 %v105, 32
    %v2605 = vpop.permute.xlu0 %2604
    %v2608 = vsel %vm77, %v2586, 0
    %2610 = vmatprep.subr.mxu0 0.0
    %2611 = vmatpush1.msra.mxu0 %v2592
    %2612 = vmatprep.subr.mxu0 0.0
    %2613 = vmatpush1.msra.mxu0 %v2594
    %2614 = vmatprep.subr.mxu0 0.0
    %2615 = vmatpush1.msra.mxu0 %v2596
    %2616 = vmatprep.subr.mxu0 0.0
    %2617 = vmatpush1.msra.mxu0 %v2598
    %2618 = vmatprep.subr.mxu0 0.0
    %2619 = vmatpush1.msra.mxu0 0.0
    %2620 = vmatprep.subr.mxu0 0.0
    %2621 = vmatpush1.msra.mxu0 0.0
    %2622 = vmatprep.subr.mxu0 0.0
    %2623 = vmatpush1.msra.mxu0 0.0
    %2624 = vmatprep.subr.mxu0 0.0
    %2625 = vmatpush1.msra.mxu0 0.0
    %2626 = vmatprep.subr.mxu0 0.0
    %2627 = vmatpush1.msra.mxu0 0.0
    %2628 = vmatprep.subr.mxu0 0.0
    %2629 = vmatpush1.msra.mxu0 0.0
    %2630 = vmatprep.subr.mxu0 0.0
    %2631 = vmatpush1.msra.mxu0 0.0
    %2632 = vmatprep.subr.mxu0 0.0
    %2633 = vmatpush1.msra.mxu0 0.0
    %2634 = vmatprep.subr.mxu0 0.0
    %2635 = vmatpush1.msra.mxu0 0.0
    %2636 = vmatprep.subr.mxu0 0.0
    %2637 = vmatpush1.msra.mxu0 0.0
    %2638 = vmatprep.subr.mxu0 0.0
    %2639 = vmatpush1.msra.mxu0 0.0
    %2640 = vmatprep.subr.mxu0 0.0
    %2641 = vmatpush1.msra.mxu0 0.0
    %2642 = vmatprep.subr.mxu0 0.0
    %2643 = vmatpush1.msra.mxu0 0.0
    %2644 = vmatprep.subr.mxu0 0.0
    %2645 = vmatpush1.msra.mxu0 0.0
    %2646 = vmatprep.subr.mxu0 0.0
    %2647 = vmatpush1.msra.mxu0 0.0
    %2648 = vmatprep.subr.mxu0 0.0
    %2649 = vmatpush1.msra.mxu0 0.0
    %2650 = vmatprep.subr.mxu0 0.0
    %2651 = vmatpush1.msra.mxu0 0.0
    %2652 = vmatprep.subr.mxu0 0.0
    %2653 = vmatpush1.msra.mxu0 0.0
    %2654 = vmatprep.subr.mxu0 0.0
    %2655 = vmatpush1.msra.mxu0 0.0
    %2656 = vmatprep.subr.mxu0 0.0
    %2657 = vmatpush1.msra.mxu0 0.0
    %2658 = vmatprep.subr.mxu0 0.0
    %2659 = vmatpush1.msra.mxu0 0.0
    %2660 = vmatprep.subr.mxu0 0.0
    %2661 = vmatpush1.msra.mxu0 0.0
    %2662 = vmatprep.subr.mxu0 0.0
    %2663 = vmatpush1.msra.mxu0 0.0
    %2664 = vmatprep.subr.mxu0 0.0
    %2665 = vmatpush1.msra.mxu0 0.0
    %2666 = vmatprep.subr.mxu0 0.0
    %2667 = vmatpush1.msra.mxu0 0.0
    %2668 = vmatprep.subr.mxu0 0.0
    %2669 = vmatpush1.msra.mxu0 0.0
    %2670 = vmatprep.subr.mxu0 0.0
    %2671 = vmatpush1.msra.mxu0 0.0
    %2672 = vmatprep.subr.mxu0 0.0
    %2673 = vmatpush1.msra.mxu0 0.0
    %2674 = vmatprep.mubr.f32.mxu0 0.0
    %2675 = vmatmul.mubr.f32.gmra.mrb[0].mxu0 %v2608
    %v2676 = vpop.f32.mrb[0].mxu0
    %v2677 = vadd.f32 %v2605, %v2676
    %v2678 = vpop.f32.mrb[0].mxu0
    %2679 = vdwg.mxu0
    %v2680 = vadd.f32 %v29, %v2677
    %v2681 = vsel %vm77, %v2680, 0.0
    %2682 = vadd.xlane.f32.xlu0 %v2681
    %v2683 = vpop.xlane.xlu0 %2682
    %v2684 = vmul.f32 %v2683, %v81
    %v2685 = vsub.f32 %v2680, %v2684
    %v2686 = vmul.f32 %v2685, %v2685
    %v2687 = vsel %vm77, %v2686, 0.0
    %2688 = vadd.xlane.f32.xlu0 %v2687
    %v2689 = vpop.xlane.xlu0 %2688
    %v2690 = vmul.f32 %v2689, %v81
    %v2691 = vadd.f32 %v2690, 1e-05
    %v2692 = vrsqrt.pop %v2691
    %v2693 = vmul.f32 %v2685, %v2692
    %2694 = vrot.lane.b32.xlu0 %v95, 64
    %v2695 = vpop.permute.xlu0 %2694
    %v2697 = vmul.f32 %v2693, %v2695
    %2698 = vrot.lane.b32.xlu0 %v95, 32
    %v2699 = vpop.permute.xlu0 %2698
    %v2701 = vadd.f32 %v2697, %v2699
    %v2702 = vlaneseq
    %v2703 = vshrl.u32 %v2702, 7
    %v2704 = vsub.s32 0, %v2703
    %v2705 = vrot.slane %v72, %v2704
    %v2707 = vsel %vm77, %v2701, 0
    %2709 = vmatprep.subr.mxu0 0.0
    %2710 = vmatpush1.msra.mxu0 %v50
    %2711 = vmatprep.subr.mxu0 0.0
    %2712 = vmatpush1.msra.mxu0 %v51
    %2713 = vmatprep.subr.mxu0 0.0
    %2714 = vmatpush1.msra.mxu0 %v52
    %2715 = vmatprep.subr.mxu0 0.0
    %2716 = vmatpush1.msra.mxu0 %v53
    %2717 = vmatprep.subr.mxu0 0.0
    %2718 = vmatpush1.msra.mxu0 0.0
    %2719 = vmatprep.subr.mxu0 0.0
    %2720 = vmatpush1.msra.mxu0 0.0
    %2721 = vmatprep.subr.mxu0 0.0
    %2722 = vmatpush1.msra.mxu0 0.0
    %2723 = vmatprep.subr.mxu0 0.0
    %2724 = vmatpush1.msra.mxu0 0.0
    %2725 = vmatprep.subr.mxu0 0.0
    %2726 = vmatpush1.msra.mxu0 0.0
    %2727 = vmatprep.subr.mxu0 0.0
    %2728 = vmatpush1.msra.mxu0 0.0
    %2729 = vmatprep.subr.mxu0 0.0
    %2730 = vmatpush1.msra.mxu0 0.0
    %2731 = vmatprep.subr.mxu0 0.0
    %2732 = vmatpush1.msra.mxu0 0.0
    %2733 = vmatprep.subr.mxu0 0.0
    %2734 = vmatpush1.msra.mxu0 0.0
    %2735 = vmatprep.subr.mxu0 0.0
    %2736 = vmatpush1.msra.mxu0 0.0
    %2737 = vmatprep.subr.mxu0 0.0
    %2738 = vmatpush1.msra.mxu0 0.0
    %2739 = vmatprep.subr.mxu0 0.0
    %2740 = vmatpush1.msra.mxu0 0.0
    %2741 = vmatprep.subr.mxu0 0.0
    %2742 = vmatpush1.msra.mxu0 0.0
    %2743 = vmatprep.subr.mxu0 0.0
    %2744 = vmatpush1.msra.mxu0 0.0
    %2745 = vmatprep.subr.mxu0 0.0
    %2746 = vmatpush1.msra.mxu0 0.0
    %2747 = vmatprep.subr.mxu0 0.0
    %2748 = vmatpush1.msra.mxu0 0.0
    %2749 = vmatprep.subr.mxu0 0.0
    %2750 = vmatpush1.msra.mxu0 0.0
    %2751 = vmatprep.subr.mxu0 0.0
    %2752 = vmatpush1.msra.mxu0 0.0
    %2753 = vmatprep.subr.mxu0 0.0
    %2754 = vmatpush1.msra.mxu0 0.0
    %2755 = vmatprep.subr.mxu0 0.0
    %2756 = vmatpush1.msra.mxu0 0.0
    %2757 = vmatprep.subr.mxu0 0.0
    %2758 = vmatpush1.msra.mxu0 0.0
    %2759 = vmatprep.subr.mxu0 0.0
    %2760 = vmatpush1.msra.mxu0 0.0
    %2761 = vmatprep.subr.mxu0 0.0
    %2762 = vmatpush1.msra.mxu0 0.0
    %2763 = vmatprep.subr.mxu0 0.0
    %2764 = vmatpush1.msra.mxu0 0.0
    %2765 = vmatprep.subr.mxu0 0.0
    %2766 = vmatpush1.msra.mxu0 0.0
    %2767 = vmatprep.subr.mxu0 0.0
    %2768 = vmatpush1.msra.mxu0 0.0
    %2769 = vmatprep.subr.mxu0 0.0
    %2770 = vmatpush1.msra.mxu0 0.0
    %2771 = vmatprep.subr.mxu0 0.0
    %2772 = vmatpush1.msra.mxu0 0.0
    %2773 = vmatprep.mubr.f32.mxu0 0.0
    %2774 = vmatmul.mubr.f32.gmra.mrb[0].mxu0 %v2707
    %v2775 = vpop.f32.mrb[0].mxu0
    %v2776 = vadd.f32 %v2705, %v2775
    %v2777 = vpop.f32.mrb[0].mxu0
    %2778 = vdwg.mxu0
    %v2779 = vmax.f32 %v2776, 0.0
    %2780 = vmatprep.subr.mxu0 0.0
    %2781 = vmatpush1.msra.mxu0 %v54
    %2782 = vmatprep.subr.mxu0 0.0
    %2783 = vmatpush1.msra.mxu0 %v55
    %2784 = vmatprep.subr.mxu0 0.0
    %2785 = vmatpush1.msra.mxu0 %v56
    %2786 = vmatprep.subr.mxu0 0.0
    %2787 = vmatpush1.msra.mxu0 %v57
    %2788 = vmatprep.subr.mxu0 0.0
    %2789 = vmatpush1.msra.mxu0 %v58
    %2790 = vmatprep.subr.mxu0 0.0
    %2791 = vmatpush1.msra.mxu0 %v59
    %2792 = vmatprep.subr.mxu0 0.0
    %2793 = vmatpush1.msra.mxu0 %v60
    %2794 = vmatprep.subr.mxu0 0.0
    %2795 = vmatpush1.msra.mxu0 %v61
    %2796 = vmatprep.subr.mxu0 0.0
    %2797 = vmatpush1.msra.mxu0 %v62
    %2798 = vmatprep.subr.mxu0 0.0
    %2799 = vmatpush1.msra.mxu0 %v63
    %2800 = vmatprep.subr.mxu0 0.0
    %2801 = vmatpush1.msra.mxu0 %v64
    %2802 = vmatprep.subr.mxu0 0.0
    %2803 = vmatpush1.msra.mxu0 %v65
    %2804 = vmatprep.subr.mxu0 0.0
    %2805 = vmatpush1.msra.mxu0 %v66
    %2806 = vmatprep.subr.mxu0 0.0
    %2807 = vmatpush1.msra.mxu0 %v67
    %2808 = vmatprep.subr.mxu0 0.0
    %2809 = vmatpush1.msra.mxu0 %v68
    %2810 = vmatprep.subr.mxu0 0.0
    %2811 = vmatpush1.msra.mxu0 %v69
    %2812 = vmatprep.subr.mxu0 0.0
    %2813 = vmatpush1.msra.mxu0 0.0
    %2814 = vmatprep.subr.mxu0 0.0
    %2815 = vmatpush1.msra.mxu0 0.0
    %2816 = vmatprep.subr.mxu0 0.0
    %2817 = vmatpush1.msra.mxu0 0.0
    %2818 = vmatprep.subr.mxu0 0.0
    %2819 = vmatpush1.msra.mxu0 0.0
    %2820 = vmatprep.subr.mxu0 0.0
    %2821 = vmatpush1.msra.mxu0 0.0
    %2822 = vmatprep.subr.mxu0 0.0
    %2823 = vmatpush1.msra.mxu0 0.0
    %2824 = vmatprep.subr.mxu0 0.0
    %2825 = vmatpush1.msra.mxu0 0.0
    %2826 = vmatprep.subr.mxu0 0.0
    %2827 = vmatpush1.msra.mxu0 0.0
    %2828 = vmatprep.subr.mxu0 0.0
    %2829 = vmatpush1.msra.mxu0 0.0
    %2830 = vmatprep.subr.mxu0 0.0
    %2831 = vmatpush1.msra.mxu0 0.0
    %2832 = vmatprep.subr.mxu0 0.0
    %2833 = vmatpush1.msra.mxu0 0.0
    %2834 = vmatprep.subr.mxu0 0.0
    %2835 = vmatpush1.msra.mxu0 0.0
    %2836 = vmatprep.subr.mxu0 0.0
    %2837 = vmatpush1.msra.mxu0 0.0
    %2838 = vmatprep.subr.mxu0 0.0
    %2839 = vmatpush1.msra.mxu0 0.0
    %2840 = vmatprep.subr.mxu0 0.0
    %2841 = vmatpush1.msra.mxu0 0.0
    %2842 = vmatprep.subr.mxu0 0.0
    %2843 = vmatpush1.msra.mxu0 0.0
    %2844 = vmatprep.mubr.f32.mxu0 0.0
    %2845 = vmatmul.mubr.f32.gmra.mrb[0].mxu0 %v2779
    %v2846 = vpop.f32.mrb[0].mxu0
    %v2847 = vadd.f32 0.0, %v2846
    %v2848 = vpop.f32.mrb[0].mxu0
    %2849 = vdwg.mxu0
    %v2850 = vadd.f32 %v2680, %v2847
    %v2851 = vlaneseq
    %v2852 = vshrl.u32 %v2851, 7
    %v2853 = vsub.s32 0, %v2852
    %v2854 = vrot.slane %v73, %v2853
    %v2855 = vadd.f32 %v2850, %v2854
    %s2856 = scalar_lea.vmem [#allocation2], 224
    %v2857 = vld [vmem:[%s2856] sm:$0xff]
    %v2858 = vld [vmem:[%s2856 + $0x8] sm:$0xff]
    %v2859 = vld [vmem:[%s2856 + $0x10] sm:$0xff]
    %v2860 = vld [vmem:[%s2856 + $0x18] sm:$0xff]
    %v2861 = vld [vmem:[%s2856 + $0x20] sm:$0xff]
    %v2862 = vld [vmem:[%s2856 + $0x28] sm:$0xff]
    %v2863 = vld [vmem:[%s2856 + $0x30] sm:$0xff]
    %v2864 = vld [vmem:[%s2856 + $0x38] sm:$0xff]
    %v2865 = vld [vmem:[%s2856 + $0x40] sm:$0xff]
    %v2866 = vld [vmem:[%s2856 + $0x48] sm:$0xff]
    %v2867 = vld [vmem:[%s2856 + $0x50] sm:$0xff]
    %v2868 = vld [vmem:[%s2856 + $0x58] sm:$0xff]
    %v2869 = vld [vmem:[%s2856 + $0x60] sm:$0xff]
    %v2870 = vld [vmem:[%s2856 + $0x68] sm:$0xff]
    %v2871 = vld [vmem:[%s2856 + $0x70] sm:$0xff]
    %v2872 = vld [vmem:[%s2856 + $0x78] sm:$0xff]
    %v2873 = vld [vmem:[%s2856 + $0x80] sm:$0xff]
    %v2874 = vld [vmem:[%s2856 + $0x88] sm:$0xff]
    %v2875 = vld [vmem:[%s2856 + $0x90] sm:$0xff]
    %v2876 = vld [vmem:[%s2856 + $0x98] sm:$0xff]
    %v2877 = vld [vmem:[%s2856 + $0xa0] sm:$0xff]
    %v2878 = vld [vmem:[%s2856 + $0xa8] sm:$0xff]
    %v2879 = vld [vmem:[%s2856 + $0xb0] sm:$0xff]
    %v2880 = vld [vmem:[%s2856 + $0xb8] sm:$0xff]
    %v2881 = vld [vmem:[%s2856 + $0xc0] sm:$0x1]
    %v2882 = vld [vmem:[%s2856 + $0xc1] sm:$0x1]
    %v2883 = vld [vmem:[%s2856 + $0xc2] sm:$0x1]
    %v2884 = vld [vmem:[%s2856 + $0xc3] sm:$0x1]
    %v2885 = vld [vmem:[%s2856 + $0xc8] sm:$0xff]
    %v2886 = vld [vmem:[%s2856 + $0xd0] sm:$0xff]
    %v2887 = vld [vmem:[%s2856 + $0xd8] sm:$0x3]
    %v2888 = vsel %vm77, %v2855, 0.0
    %2889 = vadd.xlane.f32.xlu0 %v2888
    %v2890 = vpop.xlane.xlu0 %2889
    %v2891 = vmul.f32 %v2890, %v81
    %v2892 = vsub.f32 %v2855, %v2891
    %v2893 = vmul.f32 %v2892, %v2892
    %v2894 = vsel %vm77, %v2893, 0.0
    %2895 = vadd.xlane.f32.xlu0 %v2894
    %v2896 = vpop.xlane.xlu0 %2895
    %v2897 = vmul.f32 %v2896, %v81
    %v2898 = vadd.f32 %v2897, 1e-05
    %v2899 = vrsqrt.pop %v2898
    %v2900 = vmul.f32 %v2892, %v2899
    %v2901 = vlaneseq
    %v2902 = vshrl.u32 %v2901, 7
    %v2903 = vsub.s32 0, %v2902
    %v2904 = vrot.slane %v2881, %v2903
    %v2905 = vmul.f32 %v2900, %v2904
    %2907 = vrot.lane.b32.xlu0 %v2904, 96
    %v2908 = vpop.permute.xlu0 %2907
    %v2910 = vadd.f32 %v2905, %v2908
    %v2911 = vlaneseq
    %v2912 = vshrl.u32 %v2911, 7
    %v2913 = vsub.s32 0, %v2912
    %v2914 = vrot.slane %v2882, %v2913
    %v2916 = vsel %vm77, %v2910, 0
    %2918 = vmatprep.subr.mxu0 0.0
    %2919 = vmatpush1.msra.mxu0 %v2857
    %2920 = vmatprep.subr.mxu0 0.0
    %2921 = vmatpush1.msra.mxu0 %v2858
    %2922 = vmatprep.subr.mxu0 0.0
    %2923 = vmatpush1.msra.mxu0 %v2859
    %2924 = vmatprep.subr.mxu0 0.0
    %2925 = vmatpush1.msra.mxu0 %v2860
    %2926 = vmatprep.subr.mxu0 0.0
    %2927 = vmatpush1.msra.mxu0 0.0
    %2928 = vmatprep.subr.mxu0 0.0
    %2929 = vmatpush1.msra.mxu0 0.0
    %2930 = vmatprep.subr.mxu0 0.0
    %2931 = vmatpush1.msra.mxu0 0.0
    %2932 = vmatprep.subr.mxu0 0.0
    %2933 = vmatpush1.msra.mxu0 0.0
    %2934 = vmatprep.subr.mxu0 0.0
    %2935 = vmatpush1.msra.mxu0 0.0
    %2936 = vmatprep.subr.mxu0 0.0
    %2937 = vmatpush1.msra.mxu0 0.0
    %2938 = vmatprep.subr.mxu0 0.0
    %2939 = vmatpush1.msra.mxu0 0.0
    %2940 = vmatprep.subr.mxu0 0.0
    %2941 = vmatpush1.msra.mxu0 0.0
    %2942 = vmatprep.subr.mxu0 0.0
    %2943 = vmatpush1.msra.mxu0 0.0
    %2944 = vmatprep.subr.mxu0 0.0
    %2945 = vmatpush1.msra.mxu0 0.0
    %2946 = vmatprep.subr.mxu0 0.0
    %2947 = vmatpush1.msra.mxu0 0.0
    %2948 = vmatprep.subr.mxu0 0.0
    %2949 = vmatpush1.msra.mxu0 0.0
    %2950 = vmatprep.subr.mxu0 0.0
    %2951 = vmatpush1.msra.mxu0 0.0
    %2952 = vmatprep.subr.mxu0 0.0
    %2953 = vmatpush1.msra.mxu0 0.0
    %2954 = vmatprep.subr.mxu0 0.0
    %2955 = vmatpush1.msra.mxu0 0.0
    %2956 = vmatprep.subr.mxu0 0.0
    %2957 = vmatpush1.msra.mxu0 0.0
    %2958 = vmatprep.subr.mxu0 0.0
    %2959 = vmatpush1.msra.mxu0 0.0
    %2960 = vmatprep.subr.mxu0 0.0
    %2961 = vmatpush1.msra.mxu0 0.0
    %2962 = vmatprep.subr.mxu0 0.0
    %2963 = vmatpush1.msra.mxu0 0.0
    %2964 = vmatprep.subr.mxu0 0.0
    %2965 = vmatpush1.msra.mxu0 0.0
    %2966 = vmatprep.subr.mxu0 0.0
    %2967 = vmatpush1.msra.mxu0 0.0
    %2968 = vmatprep.subr.mxu0 0.0
    %2969 = vmatpush1.msra.mxu0 0.0
    %2970 = vmatprep.subr.mxu0 0.0
    %2971 = vmatpush1.msra.mxu0 0.0
    %2972 = vmatprep.subr.mxu0 0.0
    %2973 = vmatpush1.msra.mxu0 0.0
    %2974 = vmatprep.subr.mxu0 0.0
    %2975 = vmatpush1.msra.mxu0 0.0
    %2976 = vmatprep.subr.mxu0 0.0
    %2977 = vmatpush1.msra.mxu0 0.0
    %2978 = vmatprep.subr.mxu0 0.0
    %2979 = vmatpush1.msra.mxu0 0.0
    %2980 = vmatprep.subr.mxu0 0.0
    %2981 = vmatpush1.msra.mxu0 0.0
    %2982 = vmatprep.mubr.f32.mxu0 0.0
    %2983 = vmatmul.mubr.f32.gmra.mrb[0].mxu0 %v2916
    %v2984 = vpop.f32.mrb[0].mxu0
    %v2985 = vadd.f32 %v2914, %v2984
    %v2986 = vpop.f32.mrb[0].mxu0
    %2987 = vdwg.mxu0
    %2989 = vrot.lane.b32.xlu0 %v2985, 120
    %v2990 = vpop.permute.xlu0 %2989
    %2991 = vrot.lane.b32.xlu0 %v2985, 112
    %v2992 = vpop.permute.xlu0 %2991
    %2993 = vrot.lane.b32.xlu0 %v2985, 104
    %v2994 = vpop.permute.xlu0 %2993
    %v2995 = vsel %vm186, %v2985, 0
    %v2997 = vsel %vm186, %v2990, 0
    %v2999 = vsel %vm186, %v2992, 0
    %v3001 = vsel %vm186, %v2994, 0
    %3003 = vmatprep.subr.mxu0 0.0
    %3004 = vmatpush1.msra.mxu0 %v2885
    %3005 = vmatprep.subr.mxu0 0.0
    %3006 = vmatpush1.msra.mxu0 0.0
    %3007 = vmatprep.subr.mxu0 0.0
    %3008 = vmatpush1.msra.mxu0 0.0
    %3009 = vmatprep.subr.mxu0 0.0
    %3010 = vmatpush1.msra.mxu0 0.0
    %3011 = vmatprep.subr.mxu0 0.0
    %3012 = vmatpush1.msra.mxu0 0.0
    %3013 = vmatprep.subr.mxu0 0.0
    %3014 = vmatpush1.msra.mxu0 0.0
    %3015 = vmatprep.subr.mxu0 0.0
    %3016 = vmatpush1.msra.mxu0 0.0
    %3017 = vmatprep.subr.mxu0 0.0
    %3018 = vmatpush1.msra.mxu0 0.0
    %3019 = vmatprep.subr.mxu0 0.0
    %3020 = vmatpush1.msra.mxu0 0.0
    %3021 = vmatprep.subr.mxu0 0.0
    %3022 = vmatpush1.msra.mxu0 0.0
    %3023 = vmatprep.subr.mxu0 0.0
    %3024 = vmatpush1.msra.mxu0 0.0
    %3025 = vmatprep.subr.mxu0 0.0
    %3026 = vmatpush1.msra.mxu0 0.0
    %3027 = vmatprep.subr.mxu0 0.0
    %3028 = vmatpush1.msra.mxu0 0.0
    %3029 = vmatprep.subr.mxu0 0.0
    %3030 = vmatpush1.msra.mxu0 0.0
    %3031 = vmatprep.subr.mxu0 0.0
    %3032 = vmatpush1.msra.mxu0 0.0
    %3033 = vmatprep.subr.mxu0 0.0
    %3034 = vmatpush1.msra.mxu0 0.0
    %3035 = vmatprep.subr.mxu0 0.0
    %3036 = vmatpush1.msra.mxu0 0.0
    %3037 = vmatprep.subr.mxu0 0.0
    %3038 = vmatpush1.msra.mxu0 0.0
    %3039 = vmatprep.subr.mxu0 0.0
    %3040 = vmatpush1.msra.mxu0 0.0
    %3041 = vmatprep.subr.mxu0 0.0
    %3042 = vmatpush1.msra.mxu0 0.0
    %3043 = vmatprep.subr.mxu0 0.0
    %3044 = vmatpush1.msra.mxu0 0.0
    %3045 = vmatprep.subr.mxu0 0.0
    %3046 = vmatpush1.msra.mxu0 0.0
    %3047 = vmatprep.subr.mxu0 0.0
    %3048 = vmatpush1.msra.mxu0 0.0
    %3049 = vmatprep.subr.mxu0 0.0
    %3050 = vmatpush1.msra.mxu0 0.0
    %3051 = vmatprep.subr.mxu0 0.0
    %3052 = vmatpush1.msra.mxu0 0.0
    %3053 = vmatprep.subr.mxu0 0.0
    %3054 = vmatpush1.msra.mxu0 0.0
    %3055 = vmatprep.subr.mxu0 0.0
    %3056 = vmatpush1.msra.mxu0 0.0
    %3057 = vmatprep.subr.mxu0 0.0
    %3058 = vmatpush1.msra.mxu0 0.0
    %3059 = vmatprep.subr.mxu0 0.0
    %3060 = vmatpush1.msra.mxu0 0.0
    %3061 = vmatprep.subr.mxu0 0.0
    %3062 = vmatpush1.msra.mxu0 0.0
    %3063 = vmatprep.subr.mxu0 0.0
    %3064 = vmatpush1.msra.mxu0 0.0
    %3065 = vmatprep.subr.mxu0 0.0
    %3066 = vmatpush1.msra.mxu0 0.0
    %3067 = vmatprep.mubr.f32.mxu0 0.0
    %3068 = vmatmul.mubr.f32.gmra.mrb[0].mxu0 %v2995
    %v3069 = vpop.f32.mrb[0].mxu0
    %v3070 = vadd.f32 0.0, %v3069
    %v3071 = vpop.f32.mrb[0].mxu0
    %3072 = vmatprep.mubr.f32.mxu0 0.0
    %3073 = vmatmul.mubr.f32.gmra.mrb[0].mxu0 %v2997
    %v3074 = vpop.f32.mrb[0].mxu0
    %v3075 = vadd.f32 0.0, %v3074
    %v3076 = vpop.f32.mrb[0].mxu0
    %3077 = vmatprep.mubr.f32.mxu0 0.0
    %3078 = vmatmul.mubr.f32.gmra.mrb[0].mxu0 %v2999
    %v3079 = vpop.f32.mrb[0].mxu0
    %v3080 = vadd.f32 0.0, %v3079
    %v3081 = vpop.f32.mrb[0].mxu0
    %3082 = vmatprep.mubr.f32.mxu0 0.0
    %3083 = vmatmul.mubr.f32.gmra.mrb[0].mxu0 %v3001
    %v3084 = vpop.f32.mrb[0].mxu0
    %v3085 = vadd.f32 0.0, %v3084
    %v3086 = vpop.f32.mrb[0].mxu0
    %3087 = vdwg.mxu0
    %v3088 = vcombine.low %v3070, %v3080
    %v3089 = vcombine.high %v3070, %v3080
    %v3091 = vunpack.c.l.s4 1983009808
    %v3092 = vunpack.c.0.s8 %v3091
    %v3093 = vlaneseq
    %v3094 = vshrl.u32 %v3093, 7
    %v3095 = vsub.s32 %v3092, %v3094
    %v3096 = vrot.slane %v3088, %v3095
    %v3098 = vunpack.c.l.s4 1983009808
    %v3099 = vunpack.c.0.s8 %v3098
    %v3100 = vlaneseq
    %v3101 = vshrl.u32 %v3100, 7
    %v3102 = vsub.s32 %v3099, %v3101
    %v3103 = vrot.slane %v3089, %v3102
    %v3104 = vcombine.low %v3075, %v3085
    %v3105 = vcombine.high %v3075, %v3085
    %v3107 = vunpack.c.l.s4 1983009808
    %v3108 = vunpack.c.0.s8 %v3107
    %v3109 = vlaneseq
    %v3110 = vshrl.u32 %v3109, 7
    %v3111 = vsub.s32 %v3108, %v3110
    %v3112 = vrot.slane %v3104, %v3111
    %v3114 = vunpack.c.l.s4 1983009808
    %v3115 = vunpack.c.0.s8 %v3114
    %v3116 = vlaneseq
    %v3117 = vshrl.u32 %v3116, 7
    %v3118 = vsub.s32 %v3115, %v3117
    %v3119 = vrot.slane %v3105, %v3118
    %v3120 = vcombine.low %v3096, %v3112
    %v3121 = vcombine.high %v3096, %v3112
    %v3123 = vunpack.c.l.s4 1934713408
    %v3124 = vunpack.c.0.s8 %v3123
    %v3125 = vlaneseq
    %v3126 = vshrl.u32 %v3125, 7
    %v3127 = vsub.s32 %v3124, %v3126
    %v3128 = vrot.slane %v3120, %v3127
    %v3130 = vunpack.c.l.s4 1934713408
    %v3131 = vunpack.c.0.s8 %v3130
    %v3132 = vlaneseq
    %v3133 = vshrl.u32 %v3132, 7
    %v3134 = vsub.s32 %v3131, %v3133
    %v3135 = vrot.slane %v3121, %v3134
    %v3136 = vcombine.low %v3103, %v3119
    %v3137 = vcombine.high %v3103, %v3119
    %v3139 = vunpack.c.l.s4 1934713408
    %v3140 = vunpack.c.0.s8 %v3139
    %v3141 = vlaneseq
    %v3142 = vshrl.u32 %v3141, 7
    %v3143 = vsub.s32 %v3140, %v3142
    %v3144 = vrot.slane %v3136, %v3143
    %v3146 = vunpack.c.l.s4 1934713408
    %v3147 = vunpack.c.0.s8 %v3146
    %v3148 = vlaneseq
    %v3149 = vshrl.u32 %v3148, 7
    %v3150 = vsub.s32 %v3147, %v3149
    %v3151 = vrot.slane %v3137, %v3150
    %v3152 = vcombine.high %v3128, 0.0
    %v3153 = vcombine.high %v3135, 0.0
    %v3154 = vcombine.high %v3144, 0.0
    %v3155 = vcombine.high %v3151, 0.0
    %v3157 = vsel %vm348, %v3128, 0
    %3159 = vmatprep.subr.mxu0 0.0
    %3160 = vmatpush1.msra.mxu0 %v30
    %3161 = vmatprep.subr.mxu0 0.0
    %3162 = vmatpush1.msra.mxu0 %v354
    %3163 = vmatprep.subr.mxu0 0.0
    %3164 = vmatpush1.msra.mxu0 0.0
    %3165 = vmatprep.subr.mxu0 0.0
    %3166 = vmatpush1.msra.mxu0 0.0
    %3167 = vmatprep.subr.mxu0 0.0
    %3168 = vmatpush1.msra.mxu0 0.0
    %3169 = vmatprep.subr.mxu0 0.0
    %3170 = vmatpush1.msra.mxu0 0.0
    %3171 = vmatprep.subr.mxu0 0.0
    %3172 = vmatpush1.msra.mxu0 0.0
    %3173 = vmatprep.subr.mxu0 0.0
    %3174 = vmatpush1.msra.mxu0 0.0
    %3175 = vmatprep.subr.mxu0 0.0
    %3176 = vmatpush1.msra.mxu0 0.0
    %3177 = vmatprep.subr.mxu0 0.0
    %3178 = vmatpush1.msra.mxu0 0.0
    %3179 = vmatprep.subr.mxu0 0.0
    %3180 = vmatpush1.msra.mxu0 0.0
    %3181 = vmatprep.subr.mxu0 0.0
    %3182 = vmatpush1.msra.mxu0 0.0
    %3183 = vmatprep.subr.mxu0 0.0
    %3184 = vmatpush1.msra.mxu0 0.0
    %3185 = vmatprep.subr.mxu0 0.0
    %3186 = vmatpush1.msra.mxu0 0.0
    %3187 = vmatprep.subr.mxu0 0.0
    %3188 = vmatpush1.msra.mxu0 0.0
    %3189 = vmatprep.subr.mxu0 0.0
    %3190 = vmatpush1.msra.mxu0 0.0
    %3191 = vmatprep.subr.mxu0 0.0
    %3192 = vmatpush1.msra.mxu0 0.0
    %3193 = vmatprep.subr.mxu0 0.0
    %3194 = vmatpush1.msra.mxu0 0.0
    %3195 = vmatprep.subr.mxu0 0.0
    %3196 = vmatpush1.msra.mxu0 0.0
    %3197 = vmatprep.subr.mxu0 0.0
    %3198 = vmatpush1.msra.mxu0 0.0
    %3199 = vmatprep.subr.mxu0 0.0
    %3200 = vmatpush1.msra.mxu0 0.0
    %3201 = vmatprep.subr.mxu0 0.0
    %3202 = vmatpush1.msra.mxu0 0.0
    %3203 = vmatprep.subr.mxu0 0.0
    %3204 = vmatpush1.msra.mxu0 0.0
    %3205 = vmatprep.subr.mxu0 0.0
    %3206 = vmatpush1.msra.mxu0 0.0
    %3207 = vmatprep.subr.mxu0 0.0
    %3208 = vmatpush1.msra.mxu0 0.0
    %3209 = vmatprep.subr.mxu0 0.0
    %3210 = vmatpush1.msra.mxu0 0.0
    %3211 = vmatprep.subr.mxu0 0.0
    %3212 = vmatpush1.msra.mxu0 0.0
    %3213 = vmatprep.subr.mxu0 0.0
    %3214 = vmatpush1.msra.mxu0 0.0
    %3215 = vmatprep.subr.mxu0 0.0
    %3216 = vmatpush1.msra.mxu0 0.0
    %3217 = vmatprep.subr.mxu0 0.0
    %3218 = vmatpush1.msra.mxu0 0.0
    %3219 = vmatprep.subr.mxu0 0.0
    %3220 = vmatpush1.msra.mxu0 0.0
    %3221 = vmatprep.subr.mxu0 0.0
    %3222 = vmatpush1.msra.mxu0 0.0
    %3223 = vmatprep.mubr.f32.mxu0 0.0
    %3224 = vmatmul.mubr.f32.gmra.mrb[0].mxu0 %v3157
    %v3225 = vpop.f32.mrb[0].mxu0
    %v3226 = vadd.f32 0.0, %v3225
    %v3227 = vpop.f32.mrb[0].mxu0
    %3228 = vdwg.mxu0
    %v3230 = vsel %vm348, %v3152, 0
    %3232 = vmatprep.subr.mxu0 0.0
    %3233 = vmatpush1.msra.mxu0 %v32
    %3234 = vmatprep.subr.mxu0 0.0
    %3235 = vmatpush1.msra.mxu0 %v430
    %3236 = vmatprep.subr.mxu0 0.0
    %3237 = vmatpush1.msra.mxu0 0.0
    %3238 = vmatprep.subr.mxu0 0.0
    %3239 = vmatpush1.msra.mxu0 0.0
    %3240 = vmatprep.subr.mxu0 0.0
    %3241 = vmatpush1.msra.mxu0 0.0
    %3242 = vmatprep.subr.mxu0 0.0
    %3243 = vmatpush1.msra.mxu0 0.0
    %3244 = vmatprep.subr.mxu0 0.0
    %3245 = vmatpush1.msra.mxu0 0.0
    %3246 = vmatprep.subr.mxu0 0.0
    %3247 = vmatpush1.msra.mxu0 0.0
    %3248 = vmatprep.subr.mxu0 0.0
    %3249 = vmatpush1.msra.mxu0 0.0
    %3250 = vmatprep.subr.mxu0 0.0
    %3251 = vmatpush1.msra.mxu0 0.0
    %3252 = vmatprep.subr.mxu0 0.0
    %3253 = vmatpush1.msra.mxu0 0.0
    %3254 = vmatprep.subr.mxu0 0.0
    %3255 = vmatpush1.msra.mxu0 0.0
    %3256 = vmatprep.subr.mxu0 0.0
    %3257 = vmatpush1.msra.mxu0 0.0
    %3258 = vmatprep.subr.mxu0 0.0
    %3259 = vmatpush1.msra.mxu0 0.0
    %3260 = vmatprep.subr.mxu0 0.0
    %3261 = vmatpush1.msra.mxu0 0.0
    %3262 = vmatprep.subr.mxu0 0.0
    %3263 = vmatpush1.msra.mxu0 0.0
    %3264 = vmatprep.subr.mxu0 0.0
    %3265 = vmatpush1.msra.mxu0 0.0
    %3266 = vmatprep.subr.mxu0 0.0
    %3267 = vmatpush1.msra.mxu0 0.0
    %3268 = vmatprep.subr.mxu0 0.0
    %3269 = vmatpush1.msra.mxu0 0.0
    %3270 = vmatprep.subr.mxu0 0.0
    %3271 = vmatpush1.msra.mxu0 0.0
    %3272 = vmatprep.subr.mxu0 0.0
    %3273 = vmatpush1.msra.mxu0 0.0
    %3274 = vmatprep.subr.mxu0 0.0
    %3275 = vmatpush1.msra.mxu0 0.0
    %3276 = vmatprep.subr.mxu0 0.0
    %3277 = vmatpush1.msra.mxu0 0.0
    %3278 = vmatprep.subr.mxu0 0.0
    %3279 = vmatpush1.msra.mxu0 0.0
    %3280 = vmatprep.subr.mxu0 0.0
    %3281 = vmatpush1.msra.mxu0 0.0
    %3282 = vmatprep.subr.mxu0 0.0
    %3283 = vmatpush1.msra.mxu0 0.0
    %3284 = vmatprep.subr.mxu0 0.0
    %3285 = vmatpush1.msra.mxu0 0.0
    %3286 = vmatprep.subr.mxu0 0.0
    %3287 = vmatpush1.msra.mxu0 0.0
    %3288 = vmatprep.subr.mxu0 0.0
    %3289 = vmatpush1.msra.mxu0 0.0
    %3290 = vmatprep.subr.mxu0 0.0
    %3291 = vmatpush1.msra.mxu0 0.0
    %3292 = vmatprep.subr.mxu0 0.0
    %3293 = vmatpush1.msra.mxu0 0.0
    %3294 = vmatprep.subr.mxu0 0.0
    %3295 = vmatpush1.msra.mxu0 0.0
    %3296 = vmatprep.mubr.f32.mxu0 0.0
    %3297 = vmatmul.mubr.f32.gmra.mrb[0].mxu0 %v3230
    %v3298 = vpop.f32.mrb[0].mxu0
    %v3299 = vadd.f32 0.0, %v3298
    %v3300 = vpop.f32.mrb[0].mxu0
    %3301 = vdwg.mxu0
    %v3303 = vsel %vm348, %v3135, 0
    %3305 = vmatprep.subr.mxu0 0.0
    %3306 = vmatpush1.msra.mxu0 %v34
    %3307 = vmatprep.subr.mxu0 0.0
    %3308 = vmatpush1.msra.mxu0 %v506
    %3309 = vmatprep.subr.mxu0 0.0
    %3310 = vmatpush1.msra.mxu0 0.0
    %3311 = vmatprep.subr.mxu0 0.0
    %3312 = vmatpush1.msra.mxu0 0.0
    %3313 = vmatprep.subr.mxu0 0.0
    %3314 = vmatpush1.msra.mxu0 0.0
    %3315 = vmatprep.subr.mxu0 0.0
    %3316 = vmatpush1.msra.mxu0 0.0
    %3317 = vmatprep.subr.mxu0 0.0
    %3318 = vmatpush1.msra.mxu0 0.0
    %3319 = vmatprep.subr.mxu0 0.0
    %3320 = vmatpush1.msra.mxu0 0.0
    %3321 = vmatprep.subr.mxu0 0.0
    %3322 = vmatpush1.msra.mxu0 0.0
    %3323 = vmatprep.subr.mxu0 0.0
    %3324 = vmatpush1.msra.mxu0 0.0
    %3325 = vmatprep.subr.mxu0 0.0
    %3326 = vmatpush1.msra.mxu0 0.0
    %3327 = vmatprep.subr.mxu0 0.0
    %3328 = vmatpush1.msra.mxu0 0.0
    %3329 = vmatprep.subr.mxu0 0.0
    %3330 = vmatpush1.msra.mxu0 0.0
    %3331 = vmatprep.subr.mxu0 0.0
    %3332 = vmatpush1.msra.mxu0 0.0
    %3333 = vmatprep.subr.mxu0 0.0
    %3334 = vmatpush1.msra.mxu0 0.0
    %3335 = vmatprep.subr.mxu0 0.0
    %3336 = vmatpush1.msra.mxu0 0.0
    %3337 = vmatprep.subr.mxu0 0.0
    %3338 = vmatpush1.msra.mxu0 0.0
    %3339 = vmatprep.subr.mxu0 0.0
    %3340 = vmatpush1.msra.mxu0 0.0
    %3341 = vmatprep.subr.mxu0 0.0
    %3342 = vmatpush1.msra.mxu0 0.0
    %3343 = vmatprep.subr.mxu0 0.0
    %3344 = vmatpush1.msra.mxu0 0.0
    %3345 = vmatprep.subr.mxu0 0.0
    %3346 = vmatpush1.msra.mxu0 0.0
    %3347 = vmatprep.subr.mxu0 0.0
    %3348 = vmatpush1.msra.mxu0 0.0
    %3349 = vmatprep.subr.mxu0 0.0
    %3350 = vmatpush1.msra.mxu0 0.0
    %3351 = vmatprep.subr.mxu0 0.0
    %3352 = vmatpush1.msra.mxu0 0.0
    %3353 = vmatprep.subr.mxu0 0.0
    %3354 = vmatpush1.msra.mxu0 0.0
    %3355 = vmatprep.subr.mxu0 0.0
    %3356 = vmatpush1.msra.mxu0 0.0
    %3357 = vmatprep.subr.mxu0 0.0
    %3358 = vmatpush1.msra.mxu0 0.0
    %3359 = vmatprep.subr.mxu0 0.0
    %3360 = vmatpush1.msra.mxu0 0.0
    %3361 = vmatprep.subr.mxu0 0.0
    %3362 = vmatpush1.msra.mxu0 0.0
    %3363 = vmatprep.subr.mxu0 0.0
    %3364 = vmatpush1.msra.mxu0 0.0
    %3365 = vmatprep.subr.mxu0 0.0
    %3366 = vmatpush1.msra.mxu0 0.0
    %3367 = vmatprep.subr.mxu0 0.0
    %3368 = vmatpush1.msra.mxu0 0.0
    %3369 = vmatprep.mubr.f32.mxu0 0.0
    %3370 = vmatmul.mubr.f32.gmra.mrb[0].mxu0 %v3303
    %v3371 = vpop.f32.mrb[0].mxu0
    %v3372 = vadd.f32 0.0, %v3371
    %v3373 = vpop.f32.mrb[0].mxu0
    %3374 = vdwg.mxu0
    %v3376 = vsel %vm348, %v3153, 0
    %3378 = vmatprep.subr.mxu0 0.0
    %3379 = vmatpush1.msra.mxu0 %v36
    %3380 = vmatprep.subr.mxu0 0.0
    %3381 = vmatpush1.msra.mxu0 %v582
    %3382 = vmatprep.subr.mxu0 0.0
    %3383 = vmatpush1.msra.mxu0 0.0
    %3384 = vmatprep.subr.mxu0 0.0
    %3385 = vmatpush1.msra.mxu0 0.0
    %3386 = vmatprep.subr.mxu0 0.0
    %3387 = vmatpush1.msra.mxu0 0.0
    %3388 = vmatprep.subr.mxu0 0.0
    %3389 = vmatpush1.msra.mxu0 0.0
    %3390 = vmatprep.subr.mxu0 0.0
    %3391 = vmatpush1.msra.mxu0 0.0
    %3392 = vmatprep.subr.mxu0 0.0
    %3393 = vmatpush1.msra.mxu0 0.0
    %3394 = vmatprep.subr.mxu0 0.0
    %3395 = vmatpush1.msra.mxu0 0.0
    %3396 = vmatprep.subr.mxu0 0.0
    %3397 = vmatpush1.msra.mxu0 0.0
    %3398 = vmatprep.subr.mxu0 0.0
    %3399 = vmatpush1.msra.mxu0 0.0
    %3400 = vmatprep.subr.mxu0 0.0
    %3401 = vmatpush1.msra.mxu0 0.0
    %3402 = vmatprep.subr.mxu0 0.0
    %3403 = vmatpush1.msra.mxu0 0.0
    %3404 = vmatprep.subr.mxu0 0.0
    %3405 = vmatpush1.msra.mxu0 0.0
    %3406 = vmatprep.subr.mxu0 0.0
    %3407 = vmatpush1.msra.mxu0 0.0
    %3408 = vmatprep.subr.mxu0 0.0
    %3409 = vmatpush1.msra.mxu0 0.0
    %3410 = vmatprep.subr.mxu0 0.0
    %3411 = vmatpush1.msra.mxu0 0.0
    %3412 = vmatprep.subr.mxu0 0.0
    %3413 = vmatpush1.msra.mxu0 0.0
    %3414 = vmatprep.subr.mxu0 0.0
    %3415 = vmatpush1.msra.mxu0 0.0
    %3416 = vmatprep.subr.mxu0 0.0
    %3417 = vmatpush1.msra.mxu0 0.0
    %3418 = vmatprep.subr.mxu0 0.0
    %3419 = vmatpush1.msra.mxu0 0.0
    %3420 = vmatprep.subr.mxu0 0.0
    %3421 = vmatpush1.msra.mxu0 0.0
    %3422 = vmatprep.subr.mxu0 0.0
    %3423 = vmatpush1.msra.mxu0 0.0
    %3424 = vmatprep.subr.mxu0 0.0
    %3425 = vmatpush1.msra.mxu0 0.0
    %3426 = vmatprep.subr.mxu0 0.0
    %3427 = vmatpush1.msra.mxu0 0.0
    %3428 = vmatprep.subr.mxu0 0.0
    %3429 = vmatpush1.msra.mxu0 0.0
    %3430 = vmatprep.subr.mxu0 0.0
    %3431 = vmatpush1.msra.mxu0 0.0
    %3432 = vmatprep.subr.mxu0 0.0
    %3433 = vmatpush1.msra.mxu0 0.0
    %3434 = vmatprep.subr.mxu0 0.0
    %3435 = vmatpush1.msra.mxu0 0.0
    %3436 = vmatprep.subr.mxu0 0.0
    %3437 = vmatpush1.msra.mxu0 0.0
    %3438 = vmatprep.subr.mxu0 0.0
    %3439 = vmatpush1.msra.mxu0 0.0
    %3440 = vmatprep.subr.mxu0 0.0
    %3441 = vmatpush1.msra.mxu0 0.0
    %3442 = vmatprep.mubr.f32.mxu0 0.0
    %3443 = vmatmul.mubr.f32.gmra.mrb[0].mxu0 %v3376
    %v3444 = vpop.f32.mrb[0].mxu0
    %v3445 = vadd.f32 0.0, %v3444
    %v3446 = vpop.f32.mrb[0].mxu0
    %3447 = vdwg.mxu0
    %v3449 = vsel %vm348, %v3144, 0
    %3451 = vmatprep.subr.mxu0 0.0
    %3452 = vmatpush1.msra.mxu0 %v38
    %3453 = vmatprep.subr.mxu0 0.0
    %3454 = vmatpush1.msra.mxu0 %v658
    %3455 = vmatprep.subr.mxu0 0.0
    %3456 = vmatpush1.msra.mxu0 0.0
    %3457 = vmatprep.subr.mxu0 0.0
    %3458 = vmatpush1.msra.mxu0 0.0
    %3459 = vmatprep.subr.mxu0 0.0
    %3460 = vmatpush1.msra.mxu0 0.0
    %3461 = vmatprep.subr.mxu0 0.0
    %3462 = vmatpush1.msra.mxu0 0.0
    %3463 = vmatprep.subr.mxu0 0.0
    %3464 = vmatpush1.msra.mxu0 0.0
    %3465 = vmatprep.subr.mxu0 0.0
    %3466 = vmatpush1.msra.mxu0 0.0
    %3467 = vmatprep.subr.mxu0 0.0
    %3468 = vmatpush1.msra.mxu0 0.0
    %3469 = vmatprep.subr.mxu0 0.0
    %3470 = vmatpush1.msra.mxu0 0.0
    %3471 = vmatprep.subr.mxu0 0.0
    %3472 = vmatpush1.msra.mxu0 0.0
    %3473 = vmatprep.subr.mxu0 0.0
    %3474 = vmatpush1.msra.mxu0 0.0
    %3475 = vmatprep.subr.mxu0 0.0
    %3476 = vmatpush1.msra.mxu0 0.0
    %3477 = vmatprep.subr.mxu0 0.0
    %3478 = vmatpush1.msra.mxu0 0.0
    %3479 = vmatprep.subr.mxu0 0.0
    %3480 = vmatpush1.msra.mxu0 0.0
    %3481 = vmatprep.subr.mxu0 0.0
    %3482 = vmatpush1.msra.mxu0 0.0
    %3483 = vmatprep.subr.mxu0 0.0
    %3484 = vmatpush1.msra.mxu0 0.0
    %3485 = vmatprep.subr.mxu0 0.0
    %3486 = vmatpush1.msra.mxu0 0.0
    %3487 = vmatprep.subr.mxu0 0.0
    %3488 = vmatpush1.msra.mxu0 0.0
    %3489 = vmatprep.subr.mxu0 0.0
    %3490 = vmatpush1.msra.mxu0 0.0
    %3491 = vmatprep.subr.mxu0 0.0
    %3492 = vmatpush1.msra.mxu0 0.0
    %3493 = vmatprep.subr.mxu0 0.0
    %3494 = vmatpush1.msra.mxu0 0.0
    %3495 = vmatprep.subr.mxu0 0.0
    %3496 = vmatpush1.msra.mxu0 0.0
    %3497 = vmatprep.subr.mxu0 0.0
    %3498 = vmatpush1.msra.mxu0 0.0
    %3499 = vmatprep.subr.mxu0 0.0
    %3500 = vmatpush1.msra.mxu0 0.0
    %3501 = vmatprep.subr.mxu0 0.0
    %3502 = vmatpush1.msra.mxu0 0.0
    %3503 = vmatprep.subr.mxu0 0.0
    %3504 = vmatpush1.msra.mxu0 0.0
    %3505 = vmatprep.subr.mxu0 0.0
    %3506 = vmatpush1.msra.mxu0 0.0
    %3507 = vmatprep.subr.mxu0 0.0
    %3508 = vmatpush1.msra.mxu0 0.0
    %3509 = vmatprep.subr.mxu0 0.0
    %3510 = vmatpush1.msra.mxu0 0.0
    %3511 = vmatprep.subr.mxu0 0.0
    %3512 = vmatpush1.msra.mxu0 0.0
    %3513 = vmatprep.subr.mxu0 0.0
    %3514 = vmatpush1.msra.mxu0 0.0
    %3515 = vmatprep.mubr.f32.mxu0 0.0
    %3516 = vmatmul.mubr.f32.gmra.mrb[0].mxu0 %v3449
    %v3517 = vpop.f32.mrb[0].mxu0
    %v3518 = vadd.f32 0.0, %v3517
    %v3519 = vpop.f32.mrb[0].mxu0
    %3520 = vdwg.mxu0
    %v3522 = vsel %vm348, %v3154, 0
    %3524 = vmatprep.subr.mxu0 0.0
    %3525 = vmatpush1.msra.mxu0 %v40
    %3526 = vmatprep.subr.mxu0 0.0
    %3527 = vmatpush1.msra.mxu0 %v734
    %3528 = vmatprep.subr.mxu0 0.0
    %3529 = vmatpush1.msra.mxu0 0.0
    %3530 = vmatprep.subr.mxu0 0.0
    %3531 = vmatpush1.msra.mxu0 0.0
    %3532 = vmatprep.subr.mxu0 0.0
    %3533 = vmatpush1.msra.mxu0 0.0
    %3534 = vmatprep.subr.mxu0 0.0
    %3535 = vmatpush1.msra.mxu0 0.0
    %3536 = vmatprep.subr.mxu0 0.0
    %3537 = vmatpush1.msra.mxu0 0.0
    %3538 = vmatprep.subr.mxu0 0.0
    %3539 = vmatpush1.msra.mxu0 0.0
    %3540 = vmatprep.subr.mxu0 0.0
    %3541 = vmatpush1.msra.mxu0 0.0
    %3542 = vmatprep.subr.mxu0 0.0
    %3543 = vmatpush1.msra.mxu0 0.0
    %3544 = vmatprep.subr.mxu0 0.0
    %3545 = vmatpush1.msra.mxu0 0.0
    %3546 = vmatprep.subr.mxu0 0.0
    %3547 = vmatpush1.msra.mxu0 0.0
    %3548 = vmatprep.subr.mxu0 0.0
    %3549 = vmatpush1.msra.mxu0 0.0
    %3550 = vmatprep.subr.mxu0 0.0
    %3551 = vmatpush1.msra.mxu0 0.0
    %3552 = vmatprep.subr.mxu0 0.0
    %3553 = vmatpush1.msra.mxu0 0.0
    %3554 = vmatprep.subr.mxu0 0.0
    %3555 = vmatpush1.msra.mxu0 0.0
    %3556 = vmatprep.subr.mxu0 0.0
    %3557 = vmatpush1.msra.mxu0 0.0
    %3558 = vmatprep.subr.mxu0 0.0
    %3559 = vmatpush1.msra.mxu0 0.0
    %3560 = vmatprep.subr.mxu0 0.0
    %3561 = vmatpush1.msra.mxu0 0.0
    %3562 = vmatprep.subr.mxu0 0.0
    %3563 = vmatpush1.msra.mxu0 0.0
    %3564 = vmatprep.subr.mxu0 0.0
    %3565 = vmatpush1.msra.mxu0 0.0
    %3566 = vmatprep.subr.mxu0 0.0
    %3567 = vmatpush1.msra.mxu0 0.0
    %3568 = vmatprep.subr.mxu0 0.0
    %3569 = vmatpush1.msra.mxu0 0.0
    %3570 = vmatprep.subr.mxu0 0.0
    %3571 = vmatpush1.msra.mxu0 0.0
    %3572 = vmatprep.subr.mxu0 0.0
    %3573 = vmatpush1.msra.mxu0 0.0
    %3574 = vmatprep.subr.mxu0 0.0
    %3575 = vmatpush1.msra.mxu0 0.0
    %3576 = vmatprep.subr.mxu0 0.0
    %3577 = vmatpush1.msra.mxu0 0.0
    %3578 = vmatprep.subr.mxu0 0.0
    %3579 = vmatpush1.msra.mxu0 0.0
    %3580 = vmatprep.subr.mxu0 0.0
    %3581 = vmatpush1.msra.mxu0 0.0
    %3582 = vmatprep.subr.mxu0 0.0
    %3583 = vmatpush1.msra.mxu0 0.0
    %3584 = vmatprep.subr.mxu0 0.0
    %3585 = vmatpush1.msra.mxu0 0.0
    %3586 = vmatprep.subr.mxu0 0.0
    %3587 = vmatpush1.msra.mxu0 0.0
    %3588 = vmatprep.mubr.f32.mxu0 0.0
    %3589 = vmatmul.mubr.f32.gmra.mrb[0].mxu0 %v3522
    %v3590 = vpop.f32.mrb[0].mxu0
    %v3591 = vadd.f32 0.0, %v3590
    %v3592 = vpop.f32.mrb[0].mxu0
    %3593 = vdwg.mxu0
    %v3595 = vsel %vm348, %v3151, 0
    %3597 = vmatprep.subr.mxu0 0.0
    %3598 = vmatpush1.msra.mxu0 %v42
    %3599 = vmatprep.subr.mxu0 0.0
    %3600 = vmatpush1.msra.mxu0 %v810
    %3601 = vmatprep.subr.mxu0 0.0
    %3602 = vmatpush1.msra.mxu0 0.0
    %3603 = vmatprep.subr.mxu0 0.0
    %3604 = vmatpush1.msra.mxu0 0.0
    %3605 = vmatprep.subr.mxu0 0.0
    %3606 = vmatpush1.msra.mxu0 0.0
    %3607 = vmatprep.subr.mxu0 0.0
    %3608 = vmatpush1.msra.mxu0 0.0
    %3609 = vmatprep.subr.mxu0 0.0
    %3610 = vmatpush1.msra.mxu0 0.0
    %3611 = vmatprep.subr.mxu0 0.0
    %3612 = vmatpush1.msra.mxu0 0.0
    %3613 = vmatprep.subr.mxu0 0.0
    %3614 = vmatpush1.msra.mxu0 0.0
    %3615 = vmatprep.subr.mxu0 0.0
    %3616 = vmatpush1.msra.mxu0 0.0
    %3617 = vmatprep.subr.mxu0 0.0
    %3618 = vmatpush1.msra.mxu0 0.0
    %3619 = vmatprep.subr.mxu0 0.0
    %3620 = vmatpush1.msra.mxu0 0.0
    %3621 = vmatprep.subr.mxu0 0.0
    %3622 = vmatpush1.msra.mxu0 0.0
    %3623 = vmatprep.subr.mxu0 0.0
    %3624 = vmatpush1.msra.mxu0 0.0
    %3625 = vmatprep.subr.mxu0 0.0
    %3626 = vmatpush1.msra.mxu0 0.0
    %3627 = vmatprep.subr.mxu0 0.0
    %3628 = vmatpush1.msra.mxu0 0.0
    %3629 = vmatprep.subr.mxu0 0.0
    %3630 = vmatpush1.msra.mxu0 0.0
    %3631 = vmatprep.subr.mxu0 0.0
    %3632 = vmatpush1.msra.mxu0 0.0
    %3633 = vmatprep.subr.mxu0 0.0
    %3634 = vmatpush1.msra.mxu0 0.0
    %3635 = vmatprep.subr.mxu0 0.0
    %3636 = vmatpush1.msra.mxu0 0.0
    %3637 = vmatprep.subr.mxu0 0.0
    %3638 = vmatpush1.msra.mxu0 0.0
    %3639 = vmatprep.subr.mxu0 0.0
    %3640 = vmatpush1.msra.mxu0 0.0
    %3641 = vmatprep.subr.mxu0 0.0
    %3642 = vmatpush1.msra.mxu0 0.0
    %3643 = vmatprep.subr.mxu0 0.0
    %3644 = vmatpush1.msra.mxu0 0.0
    %3645 = vmatprep.subr.mxu0 0.0
    %3646 = vmatpush1.msra.mxu0 0.0
    %3647 = vmatprep.subr.mxu0 0.0
    %3648 = vmatpush1.msra.mxu0 0.0
    %3649 = vmatprep.subr.mxu0 0.0
    %3650 = vmatpush1.msra.mxu0 0.0
    %3651 = vmatprep.subr.mxu0 0.0
    %3652 = vmatpush1.msra.mxu0 0.0
    %3653 = vmatprep.subr.mxu0 0.0
    %3654 = vmatpush1.msra.mxu0 0.0
    %3655 = vmatprep.subr.mxu0 0.0
    %3656 = vmatpush1.msra.mxu0 0.0
    %3657 = vmatprep.subr.mxu0 0.0
    %3658 = vmatpush1.msra.mxu0 0.0
    %3659 = vmatprep.subr.mxu0 0.0
    %3660 = vmatpush1.msra.mxu0 0.0
    %3661 = vmatprep.mubr.f32.mxu0 0.0
    %3662 = vmatmul.mubr.f32.gmra.mrb[0].mxu0 %v3595
    %v3663 = vpop.f32.mrb[0].mxu0
    %v3664 = vadd.f32 0.0, %v3663
    %v3665 = vpop.f32.mrb[0].mxu0
    %3666 = vdwg.mxu0
    %v3668 = vsel %vm348, %v3155, 0
    %3670 = vmatprep.subr.mxu0 0.0
    %3671 = vmatpush1.msra.mxu0 %v44
    %3672 = vmatprep.subr.mxu0 0.0
    %3673 = vmatpush1.msra.mxu0 %v886
    %3674 = vmatprep.subr.mxu0 0.0
    %3675 = vmatpush1.msra.mxu0 0.0
    %3676 = vmatprep.subr.mxu0 0.0
    %3677 = vmatpush1.msra.mxu0 0.0
    %3678 = vmatprep.subr.mxu0 0.0
    %3679 = vmatpush1.msra.mxu0 0.0
    %3680 = vmatprep.subr.mxu0 0.0
    %3681 = vmatpush1.msra.mxu0 0.0
    %3682 = vmatprep.subr.mxu0 0.0
    %3683 = vmatpush1.msra.mxu0 0.0
    %3684 = vmatprep.subr.mxu0 0.0
    %3685 = vmatpush1.msra.mxu0 0.0
    %3686 = vmatprep.subr.mxu0 0.0
    %3687 = vmatpush1.msra.mxu0 0.0
    %3688 = vmatprep.subr.mxu0 0.0
    %3689 = vmatpush1.msra.mxu0 0.0
    %3690 = vmatprep.subr.mxu0 0.0
    %3691 = vmatpush1.msra.mxu0 0.0
    %3692 = vmatprep.subr.mxu0 0.0
    %3693 = vmatpush1.msra.mxu0 0.0
    %3694 = vmatprep.subr.mxu0 0.0
    %3695 = vmatpush1.msra.mxu0 0.0
    %3696 = vmatprep.subr.mxu0 0.0
    %3697 = vmatpush1.msra.mxu0 0.0
    %3698 = vmatprep.subr.mxu0 0.0
    %3699 = vmatpush1.msra.mxu0 0.0
    %3700 = vmatprep.subr.mxu0 0.0
    %3701 = vmatpush1.msra.mxu0 0.0
    %3702 = vmatprep.subr.mxu0 0.0
    %3703 = vmatpush1.msra.mxu0 0.0
    %3704 = vmatprep.subr.mxu0 0.0
    %3705 = vmatpush1.msra.mxu0 0.0
    %3706 = vmatprep.subr.mxu0 0.0
    %3707 = vmatpush1.msra.mxu0 0.0
    %3708 = vmatprep.subr.mxu0 0.0
    %3709 = vmatpush1.msra.mxu0 0.0
    %3710 = vmatprep.subr.mxu0 0.0
    %3711 = vmatpush1.msra.mxu0 0.0
    %3712 = vmatprep.subr.mxu0 0.0
    %3713 = vmatpush1.msra.mxu0 0.0
    %3714 = vmatprep.subr.mxu0 0.0
    %3715 = vmatpush1.msra.mxu0 0.0
    %3716 = vmatprep.subr.mxu0 0.0
    %3717 = vmatpush1.msra.mxu0 0.0
    %3718 = vmatprep.subr.mxu0 0.0
    %3719 = vmatpush1.msra.mxu0 0.0
    %3720 = vmatprep.subr.mxu0 0.0
    %3721 = vmatpush1.msra.mxu0 0.0
    %3722 = vmatprep.subr.mxu0 0.0
    %3723 = vmatpush1.msra.mxu0 0.0
    %3724 = vmatprep.subr.mxu0 0.0
    %3725 = vmatpush1.msra.mxu0 0.0
    %3726 = vmatprep.subr.mxu0 0.0
    %3727 = vmatpush1.msra.mxu0 0.0
    %3728 = vmatprep.subr.mxu0 0.0
    %3729 = vmatpush1.msra.mxu0 0.0
    %3730 = vmatprep.subr.mxu0 0.0
    %3731 = vmatpush1.msra.mxu0 0.0
    %3732 = vmatprep.subr.mxu0 0.0
    %3733 = vmatpush1.msra.mxu0 0.0
    %3734 = vmatprep.mubr.f32.mxu0 0.0
    %3735 = vmatmul.mubr.f32.gmra.mrb[0].mxu0 %v3668
    %v3736 = vpop.f32.mrb[0].mxu0
    %v3737 = vadd.f32 0.0, %v3736
    %v3738 = vpop.f32.mrb[0].mxu0
    %3739 = vdwg.mxu0
    %v3740 = vcombine.low %v3226, %v3372
    %v3742 = vunpack.c.l.s4 1983009808
    %v3743 = vunpack.c.0.s8 %v3742
    %v3744 = vlaneseq
    %v3745 = vshrl.u32 %v3744, 7
    %v3746 = vsub.s32 %v3743, %v3745
    %v3747 = vrot.slane %v3740, %v3746
    %v3748 = vcombine.low %v3299, %v3445
    %v3750 = vunpack.c.l.s4 1983009808
    %v3751 = vunpack.c.0.s8 %v3750
    %v3752 = vlaneseq
    %v3753 = vshrl.u32 %v3752, 7
    %v3754 = vsub.s32 %v3751, %v3753
    %v3755 = vrot.slane %v3748, %v3754
    %v3756 = vcombine.low %v3518, %v3664
    %v3758 = vunpack.c.l.s4 1983009808
    %v3759 = vunpack.c.0.s8 %v3758
    %v3760 = vlaneseq
    %v3761 = vshrl.u32 %v3760, 7
    %v3762 = vsub.s32 %v3759, %v3761
    %v3763 = vrot.slane %v3756, %v3762
    %v3764 = vcombine.low %v3591, %v3737
    %v3766 = vunpack.c.l.s4 1983009808
    %v3767 = vunpack.c.0.s8 %v3766
    %v3768 = vlaneseq
    %v3769 = vshrl.u32 %v3768, 7
    %v3770 = vsub.s32 %v3767, %v3769
    %v3771 = vrot.slane %v3764, %v3770
    %v3772 = vcombine.low %v3747, %v3755
    %v3773 = vcombine.high %v3747, %v3755
    %v3775 = vunpack.c.l.s4 1934713408
    %v3776 = vunpack.c.0.s8 %v3775
    %v3777 = vlaneseq
    %v3778 = vshrl.u32 %v3777, 7
    %v3779 = vsub.s32 %v3776, %v3778
    %v3780 = vrot.slane %v3772, %v3779
    %v3782 = vunpack.c.l.s4 1934713408
    %v3783 = vunpack.c.0.s8 %v3782
    %v3784 = vlaneseq
    %v3785 = vshrl.u32 %v3784, 7
    %v3786 = vsub.s32 %v3783, %v3785
    %v3787 = vrot.slane %v3773, %v3786
    %v3788 = vcombine.low %v3763, %v3771
    %v3789 = vcombine.high %v3763, %v3771
    %v3791 = vunpack.c.l.s4 1934713408
    %v3792 = vunpack.c.0.s8 %v3791
    %v3793 = vlaneseq
    %v3794 = vshrl.u32 %v3793, 7
    %v3795 = vsub.s32 %v3792, %v3794
    %v3796 = vrot.slane %v3788, %v3795
    %v3798 = vunpack.c.l.s4 1934713408
    %v3799 = vunpack.c.0.s8 %v3798
    %v3800 = vlaneseq
    %v3801 = vshrl.u32 %v3800, 7
    %v3802 = vsub.s32 %v3799, %v3801
    %v3803 = vrot.slane %v3789, %v3802
    %v3804 = vcombine.low %v3780, %v3796
    %v3805 = vcombine.high %v3780, %v3796
    %v3806 = vcombine.low %v3787, %v3803
    %v3807 = vcombine.high %v3787, %v3803
    %3808 = vrot.lane.b32.xlu0 %v2985, 96
    %v3809 = vpop.permute.xlu0 %3808
    %v3810 = vsel %vm186, %v3809, 0
    %3812 = vmatprep.subr.mxu0 0.0
    %3813 = vmatpush1.xpose.msra.mxu0 %v3810
    %3814 = vmatprep.subr.mxu0 0.0
    %3815 = vmatpush1.xpose.msra.mxu0 0.0
    %3816 = vmatprep.subr.mxu0 0.0
    %3817 = vmatpush1.xpose.msra.mxu0 0.0
    %3818 = vmatprep.subr.mxu0 0.0
    %3819 = vmatpush1.xpose.msra.mxu0 0.0
    %3820 = vmatprep.subr.mxu0 0.0
    %3821 = vmatpush1.xpose.msra.mxu0 0.0
    %3822 = vmatprep.subr.mxu0 0.0
    %3823 = vmatpush1.xpose.msra.mxu0 0.0
    %3824 = vmatprep.subr.mxu0 0.0
    %3825 = vmatpush1.xpose.msra.mxu0 0.0
    %3826 = vmatprep.subr.mxu0 0.0
    %3827 = vmatpush1.xpose.msra.mxu0 0.0
    %3828 = vmatprep.subr.mxu0 0.0
    %3829 = vmatpush1.xpose.msra.mxu0 0.0
    %3830 = vmatprep.subr.mxu0 0.0
    %3831 = vmatpush1.xpose.msra.mxu0 0.0
    %3832 = vmatprep.subr.mxu0 0.0
    %3833 = vmatpush1.xpose.msra.mxu0 0.0
    %3834 = vmatprep.subr.mxu0 0.0
    %3835 = vmatpush1.xpose.msra.mxu0 0.0
    %3836 = vmatprep.subr.mxu0 0.0
    %3837 = vmatpush1.xpose.msra.mxu0 0.0
    %3838 = vmatprep.subr.mxu0 0.0
    %3839 = vmatpush1.xpose.msra.mxu0 0.0
    %3840 = vmatprep.subr.mxu0 0.0
    %3841 = vmatpush1.xpose.msra.mxu0 0.0
    %3842 = vmatprep.subr.mxu0 0.0
    %3843 = vmatpush1.xpose.msra.mxu0 0.0
    %3844 = vmatprep.subr.mxu0 0.0
    %3845 = vmatpush1.xpose.msra.mxu0 0.0
    %3846 = vmatprep.subr.mxu0 0.0
    %3847 = vmatpush1.xpose.msra.mxu0 0.0
    %3848 = vmatprep.subr.mxu0 0.0
    %3849 = vmatpush1.xpose.msra.mxu0 0.0
    %3850 = vmatprep.subr.mxu0 0.0
    %3851 = vmatpush1.xpose.msra.mxu0 0.0
    %3852 = vmatprep.subr.mxu0 0.0
    %3853 = vmatpush1.xpose.msra.mxu0 0.0
    %3854 = vmatprep.subr.mxu0 0.0
    %3855 = vmatpush1.xpose.msra.mxu0 0.0
    %3856 = vmatprep.subr.mxu0 0.0
    %3857 = vmatpush1.xpose.msra.mxu0 0.0
    %3858 = vmatprep.subr.mxu0 0.0
    %3859 = vmatpush1.xpose.msra.mxu0 0.0
    %3860 = vmatprep.subr.mxu0 0.0
    %3861 = vmatpush1.xpose.msra.mxu0 0.0
    %3862 = vmatprep.subr.mxu0 0.0
    %3863 = vmatpush1.xpose.msra.mxu0 0.0
    %3864 = vmatprep.subr.mxu0 0.0
    %3865 = vmatpush1.xpose.msra.mxu0 0.0
    %3866 = vmatprep.subr.mxu0 0.0
    %3867 = vmatpush1.xpose.msra.mxu0 0.0
    %3868 = vmatprep.subr.mxu0 0.0
    %3869 = vmatpush1.xpose.msra.mxu0 0.0
    %3870 = vmatprep.subr.mxu0 0.0
    %3871 = vmatpush1.xpose.msra.mxu0 0.0
    %3872 = vmatprep.subr.mxu0 0.0
    %3873 = vmatpush1.xpose.msra.mxu0 0.0
    %3874 = vmatprep.subr.mxu0 0.0
    %3875 = vmatpush1.xpose.msra.mxu0 0.0
    %3876 = vmatprep.mubr.f32.mxu0 0.0
    %3877 = vmatmul.mubr.f32.gmra.mrb[0].mxu0 %v2995
    %v3878 = vpop.f32.mrb[0].mxu0
    %v3879 = vadd.f32 %v3804, %v3878
    %v3880 = vpop.f32.mrb[0].mxu0
    %3881 = vdwg.mxu0
    %3882 = vrot.lane.b32.xlu0 %v2990, 96
    %v3883 = vpop.permute.xlu0 %3882
    %v3884 = vsel %vm186, %v3883, 0
    %3886 = vmatprep.subr.mxu0 0.0
    %3887 = vmatpush1.xpose.msra.mxu0 %v3884
    %3888 = vmatprep.subr.mxu0 0.0
    %3889 = vmatpush1.xpose.msra.mxu0 0.0
    %3890 = vmatprep.subr.mxu0 0.0
    %3891 = vmatpush1.xpose.msra.mxu0 0.0
    %3892 = vmatprep.subr.mxu0 0.0
    %3893 = vmatpush1.xpose.msra.mxu0 0.0
    %3894 = vmatprep.subr.mxu0 0.0
    %3895 = vmatpush1.xpose.msra.mxu0 0.0
    %3896 = vmatprep.subr.mxu0 0.0
    %3897 = vmatpush1.xpose.msra.mxu0 0.0
    %3898 = vmatprep.subr.mxu0 0.0
    %3899 = vmatpush1.xpose.msra.mxu0 0.0
    %3900 = vmatprep.subr.mxu0 0.0
    %3901 = vmatpush1.xpose.msra.mxu0 0.0
    %3902 = vmatprep.subr.mxu0 0.0
    %3903 = vmatpush1.xpose.msra.mxu0 0.0
    %3904 = vmatprep.subr.mxu0 0.0
    %3905 = vmatpush1.xpose.msra.mxu0 0.0
    %3906 = vmatprep.subr.mxu0 0.0
    %3907 = vmatpush1.xpose.msra.mxu0 0.0
    %3908 = vmatprep.subr.mxu0 0.0
    %3909 = vmatpush1.xpose.msra.mxu0 0.0
    %3910 = vmatprep.subr.mxu0 0.0
    %3911 = vmatpush1.xpose.msra.mxu0 0.0
    %3912 = vmatprep.subr.mxu0 0.0
    %3913 = vmatpush1.xpose.msra.mxu0 0.0
    %3914 = vmatprep.subr.mxu0 0.0
    %3915 = vmatpush1.xpose.msra.mxu0 0.0
    %3916 = vmatprep.subr.mxu0 0.0
    %3917 = vmatpush1.xpose.msra.mxu0 0.0
    %3918 = vmatprep.subr.mxu0 0.0
    %3919 = vmatpush1.xpose.msra.mxu0 0.0
    %3920 = vmatprep.subr.mxu0 0.0
    %3921 = vmatpush1.xpose.msra.mxu0 0.0
    %3922 = vmatprep.subr.mxu0 0.0
    %3923 = vmatpush1.xpose.msra.mxu0 0.0
    %3924 = vmatprep.subr.mxu0 0.0
    %3925 = vmatpush1.xpose.msra.mxu0 0.0
    %3926 = vmatprep.subr.mxu0 0.0
    %3927 = vmatpush1.xpose.msra.mxu0 0.0
    %3928 = vmatprep.subr.mxu0 0.0
    %3929 = vmatpush1.xpose.msra.mxu0 0.0
    %3930 = vmatprep.subr.mxu0 0.0
    %3931 = vmatpush1.xpose.msra.mxu0 0.0
    %3932 = vmatprep.subr.mxu0 0.0
    %3933 = vmatpush1.xpose.msra.mxu0 0.0
    %3934 = vmatprep.subr.mxu0 0.0
    %3935 = vmatpush1.xpose.msra.mxu0 0.0
    %3936 = vmatprep.subr.mxu0 0.0
    %3937 = vmatpush1.xpose.msra.mxu0 0.0
    %3938 = vmatprep.subr.mxu0 0.0
    %3939 = vmatpush1.xpose.msra.mxu0 0.0
    %3940 = vmatprep.subr.mxu0 0.0
    %3941 = vmatpush1.xpose.msra.mxu0 0.0
    %3942 = vmatprep.subr.mxu0 0.0
    %3943 = vmatpush1.xpose.msra.mxu0 0.0
    %3944 = vmatprep.subr.mxu0 0.0
    %3945 = vmatpush1.xpose.msra.mxu0 0.0
    %3946 = vmatprep.subr.mxu0 0.0
    %3947 = vmatpush1.xpose.msra.mxu0 0.0
    %3948 = vmatprep.subr.mxu0 0.0
    %3949 = vmatpush1.xpose.msra.mxu0 0.0
    %3950 = vmatprep.mubr.f32.mxu0 0.0
    %3951 = vmatmul.mubr.f32.gmra.mrb[0].mxu0 %v2997
    %v3952 = vpop.f32.mrb[0].mxu0
    %v3953 = vadd.f32 %v3805, %v3952
    %v3954 = vpop.f32.mrb[0].mxu0
    %3955 = vdwg.mxu0
    %3956 = vrot.lane.b32.xlu0 %v2992, 96
    %v3957 = vpop.permute.xlu0 %3956
    %v3958 = vsel %vm186, %v3957, 0
    %3960 = vmatprep.subr.mxu0 0.0
    %3961 = vmatpush1.xpose.msra.mxu0 %v3958
    %3962 = vmatprep.subr.mxu0 0.0
    %3963 = vmatpush1.xpose.msra.mxu0 0.0
    %3964 = vmatprep.subr.mxu0 0.0
    %3965 = vmatpush1.xpose.msra.mxu0 0.0
    %3966 = vmatprep.subr.mxu0 0.0
    %3967 = vmatpush1.xpose.msra.mxu0 0.0
    %3968 = vmatprep.subr.mxu0 0.0
    %3969 = vmatpush1.xpose.msra.mxu0 0.0
    %3970 = vmatprep.subr.mxu0 0.0
    %3971 = vmatpush1.xpose.msra.mxu0 0.0
    %3972 = vmatprep.subr.mxu0 0.0
    %3973 = vmatpush1.xpose.msra.mxu0 0.0
    %3974 = vmatprep.subr.mxu0 0.0
    %3975 = vmatpush1.xpose.msra.mxu0 0.0
    %3976 = vmatprep.subr.mxu0 0.0
    %3977 = vmatpush1.xpose.msra.mxu0 0.0
    %3978 = vmatprep.subr.mxu0 0.0
    %3979 = vmatpush1.xpose.msra.mxu0 0.0
    %3980 = vmatprep.subr.mxu0 0.0
    %3981 = vmatpush1.xpose.msra.mxu0 0.0
    %3982 = vmatprep.subr.mxu0 0.0
    %3983 = vmatpush1.xpose.msra.mxu0 0.0
    %3984 = vmatprep.subr.mxu0 0.0
    %3985 = vmatpush1.xpose.msra.mxu0 0.0
    %3986 = vmatprep.subr.mxu0 0.0
    %3987 = vmatpush1.xpose.msra.mxu0 0.0
    %3988 = vmatprep.subr.mxu0 0.0
    %3989 = vmatpush1.xpose.msra.mxu0 0.0
    %3990 = vmatprep.subr.mxu0 0.0
    %3991 = vmatpush1.xpose.msra.mxu0 0.0
    %3992 = vmatprep.subr.mxu0 0.0
    %3993 = vmatpush1.xpose.msra.mxu0 0.0
    %3994 = vmatprep.subr.mxu0 0.0
    %3995 = vmatpush1.xpose.msra.mxu0 0.0
    %3996 = vmatprep.subr.mxu0 0.0
    %3997 = vmatpush1.xpose.msra.mxu0 0.0
    %3998 = vmatprep.subr.mxu0 0.0
    %3999 = vmatpush1.xpose.msra.mxu0 0.0
    %4000 = vmatprep.subr.mxu0 0.0
    %4001 = vmatpush1.xpose.msra.mxu0 0.0
    %4002 = vmatprep.subr.mxu0 0.0
    %4003 = vmatpush1.xpose.msra.mxu0 0.0
    %4004 = vmatprep.subr.mxu0 0.0
    %4005 = vmatpush1.xpose.msra.mxu0 0.0
    %4006 = vmatprep.subr.mxu0 0.0
    %4007 = vmatpush1.xpose.msra.mxu0 0.0
    %4008 = vmatprep.subr.mxu0 0.0
    %4009 = vmatpush1.xpose.msra.mxu0 0.0
    %4010 = vmatprep.subr.mxu0 0.0
    %4011 = vmatpush1.xpose.msra.mxu0 0.0
    %4012 = vmatprep.subr.mxu0 0.0
    %4013 = vmatpush1.xpose.msra.mxu0 0.0
    %4014 = vmatprep.subr.mxu0 0.0
    %4015 = vmatpush1.xpose.msra.mxu0 0.0
    %4016 = vmatprep.subr.mxu0 0.0
    %4017 = vmatpush1.xpose.msra.mxu0 0.0
    %4018 = vmatprep.subr.mxu0 0.0
    %4019 = vmatpush1.xpose.msra.mxu0 0.0
    %4020 = vmatprep.subr.mxu0 0.0
    %4021 = vmatpush1.xpose.msra.mxu0 0.0
    %4022 = vmatprep.subr.mxu0 0.0
    %4023 = vmatpush1.xpose.msra.mxu0 0.0
    %4024 = vmatprep.mubr.f32.mxu0 0.0
    %4025 = vmatmul.mubr.f32.gmra.mrb[0].mxu0 %v2999
    %v4026 = vpop.f32.mrb[0].mxu0
    %v4027 = vadd.f32 %v3806, %v4026
    %v4028 = vpop.f32.mrb[0].mxu0
    %4029 = vdwg.mxu0
    %4030 = vrot.lane.b32.xlu0 %v2994, 96
    %v4031 = vpop.permute.xlu0 %4030
    %v4032 = vsel %vm186, %v4031, 0
    %4034 = vmatprep.subr.mxu0 0.0
    %4035 = vmatpush1.xpose.msra.mxu0 %v4032
    %4036 = vmatprep.subr.mxu0 0.0
    %4037 = vmatpush1.xpose.msra.mxu0 0.0
    %4038 = vmatprep.subr.mxu0 0.0
    %4039 = vmatpush1.xpose.msra.mxu0 0.0
    %4040 = vmatprep.subr.mxu0 0.0
    %4041 = vmatpush1.xpose.msra.mxu0 0.0
    %4042 = vmatprep.subr.mxu0 0.0
    %4043 = vmatpush1.xpose.msra.mxu0 0.0
    %4044 = vmatprep.subr.mxu0 0.0
    %4045 = vmatpush1.xpose.msra.mxu0 0.0
    %4046 = vmatprep.subr.mxu0 0.0
    %4047 = vmatpush1.xpose.msra.mxu0 0.0
    %4048 = vmatprep.subr.mxu0 0.0
    %4049 = vmatpush1.xpose.msra.mxu0 0.0
    %4050 = vmatprep.subr.mxu0 0.0
    %4051 = vmatpush1.xpose.msra.mxu0 0.0
    %4052 = vmatprep.subr.mxu0 0.0
    %4053 = vmatpush1.xpose.msra.mxu0 0.0
    %4054 = vmatprep.subr.mxu0 0.0
    %4055 = vmatpush1.xpose.msra.mxu0 0.0
    %4056 = vmatprep.subr.mxu0 0.0
    %4057 = vmatpush1.xpose.msra.mxu0 0.0
    %4058 = vmatprep.subr.mxu0 0.0
    %4059 = vmatpush1.xpose.msra.mxu0 0.0
    %4060 = vmatprep.subr.mxu0 0.0
    %4061 = vmatpush1.xpose.msra.mxu0 0.0
    %4062 = vmatprep.subr.mxu0 0.0
    %4063 = vmatpush1.xpose.msra.mxu0 0.0
    %4064 = vmatprep.subr.mxu0 0.0
    %4065 = vmatpush1.xpose.msra.mxu0 0.0
    %4066 = vmatprep.subr.mxu0 0.0
    %4067 = vmatpush1.xpose.msra.mxu0 0.0
    %4068 = vmatprep.subr.mxu0 0.0
    %4069 = vmatpush1.xpose.msra.mxu0 0.0
    %4070 = vmatprep.subr.mxu0 0.0
    %4071 = vmatpush1.xpose.msra.mxu0 0.0
    %4072 = vmatprep.subr.mxu0 0.0
    %4073 = vmatpush1.xpose.msra.mxu0 0.0
    %4074 = vmatprep.subr.mxu0 0.0
    %4075 = vmatpush1.xpose.msra.mxu0 0.0
    %4076 = vmatprep.subr.mxu0 0.0
    %4077 = vmatpush1.xpose.msra.mxu0 0.0
    %4078 = vmatprep.subr.mxu0 0.0
    %4079 = vmatpush1.xpose.msra.mxu0 0.0
    %4080 = vmatprep.subr.mxu0 0.0
    %4081 = vmatpush1.xpose.msra.mxu0 0.0
    %4082 = vmatprep.subr.mxu0 0.0
    %4083 = vmatpush1.xpose.msra.mxu0 0.0
    %4084 = vmatprep.subr.mxu0 0.0
    %4085 = vmatpush1.xpose.msra.mxu0 0.0
    %4086 = vmatprep.subr.mxu0 0.0
    %4087 = vmatpush1.xpose.msra.mxu0 0.0
    %4088 = vmatprep.subr.mxu0 0.0
    %4089 = vmatpush1.xpose.msra.mxu0 0.0
    %4090 = vmatprep.subr.mxu0 0.0
    %4091 = vmatpush1.xpose.msra.mxu0 0.0
    %4092 = vmatprep.subr.mxu0 0.0
    %4093 = vmatpush1.xpose.msra.mxu0 0.0
    %4094 = vmatprep.subr.mxu0 0.0
    %4095 = vmatpush1.xpose.msra.mxu0 0.0
    %4096 = vmatprep.subr.mxu0 0.0
    %4097 = vmatpush1.xpose.msra.mxu0 0.0
    %4098 = vmatprep.mubr.f32.mxu0 0.0
    %4099 = vmatmul.mubr.f32.gmra.mrb[0].mxu0 %v3001
    %v4100 = vpop.f32.mrb[0].mxu0
    %v4101 = vadd.f32 %v3807, %v4100
    %v4102 = vpop.f32.mrb[0].mxu0
    %4103 = vdwg.mxu0
    %v4104 = vmul.f32 %v3879, 0.35355338
    %v4105 = vmul.f32 %v3953, 0.35355338
    %v4106 = vmul.f32 %v4027, 0.35355338
    %v4107 = vmul.f32 %v4101, 0.35355338
    %v4108 = vsel %vm186, %v4104, -inf
    %4109 = vmax.xlane.f32.xlu0 %v4108
    %v4110 = vpop.xlane.xlu0 %4109
    %v4111 = vsel %vm186, %v4105, -inf
    %4112 = vmax.xlane.f32.xlu0 %v4111
    %v4113 = vpop.xlane.xlu0 %4112
    %v4114 = vsel %vm186, %v4106, -inf
    %4115 = vmax.xlane.f32.xlu0 %v4114
    %v4116 = vpop.xlane.xlu0 %4115
    %v4117 = vsel %vm186, %v4107, -inf
    %4118 = vmax.xlane.f32.xlu0 %v4117
    %v4119 = vpop.xlane.xlu0 %4118
    %v4120 = vsub.f32 %v4104, %v4110
    %v4121 = vsub.f32 %v4105, %v4113
    %v4122 = vsub.f32 %v4106, %v4116
    %v4123 = vsub.f32 %v4107, %v4119
    %v4124 = vmul.f32 %v4120, 1.442695
    %v4125 = vpow.pop %v4124
    %v4126 = vmul.f32 %v4121, 1.442695
    %v4127 = vpow.pop %v4126
    %v4128 = vmul.f32 %v4122, 1.442695
    %v4129 = vpow.pop %v4128
    %v4130 = vmul.f32 %v4123, 1.442695
    %v4131 = vpow.pop %v4130
    %v4132 = vsel %vm186, %v4125, 0.0
    %4133 = vadd.xlane.f32.xlu0 %v4132
    %v4134 = vpop.xlane.xlu0 %4133
    %v4135 = vsel %vm186, %v4127, 0.0
    %4136 = vadd.xlane.f32.xlu0 %v4135
    %v4137 = vpop.xlane.xlu0 %4136
    %v4138 = vsel %vm186, %v4129, 0.0
    %4139 = vadd.xlane.f32.xlu0 %v4138
    %v4140 = vpop.xlane.xlu0 %4139
    %v4141 = vsel %vm186, %v4131, 0.0
    %4142 = vadd.xlane.f32.xlu0 %v4141
    %v4143 = vpop.xlane.xlu0 %4142
    %v4144 = vrcp.pop %v4134
    %v4145 = vrcp.pop %v4137
    %v4146 = vrcp.pop %v4140
    %v4147 = vrcp.pop %v4143
    %v4148 = vmul.f32 %v4125, %v4144
    %v4149 = vmul.f32 %v4127, %v4145
    %v4150 = vmul.f32 %v4129, %v4146
    %v4151 = vmul.f32 %v4131, %v4147
    %v4152 = vcombine.low %v4148, %v4150
    %v4153 = vcombine.high %v4148, %v4150
    %v4155 = vunpack.c.l.s4 1983009808
    %v4156 = vunpack.c.0.s8 %v4155
    %v4157 = vlaneseq
    %v4158 = vshrl.u32 %v4157, 7
    %v4159 = vsub.s32 %v4156, %v4158
    %v4160 = vrot.slane %v4152, %v4159
    %v4162 = vunpack.c.l.s4 1983009808
    %v4163 = vunpack.c.0.s8 %v4162
    %v4164 = vlaneseq
    %v4165 = vshrl.u32 %v4164, 7
    %v4166 = vsub.s32 %v4163, %v4165
    %v4167 = vrot.slane %v4153, %v4166
    %v4168 = vcombine.low %v4149, %v4151
    %v4169 = vcombine.high %v4149, %v4151
    %v4171 = vunpack.c.l.s4 1983009808
    %v4172 = vunpack.c.0.s8 %v4171
    %v4173 = vlaneseq
    %v4174 = vshrl.u32 %v4173, 7
    %v4175 = vsub.s32 %v4172, %v4174
    %v4176 = vrot.slane %v4168, %v4175
    %v4178 = vunpack.c.l.s4 1983009808
    %v4179 = vunpack.c.0.s8 %v4178
    %v4180 = vlaneseq
    %v4181 = vshrl.u32 %v4180, 7
    %v4182 = vsub.s32 %v4179, %v4181
    %v4183 = vrot.slane %v4169, %v4182
    %v4184 = vcombine.low %v4160, %v4176
    %v4185 = vcombine.high %v4160, %v4176
    %v4187 = vunpack.c.l.s4 1934713408
    %v4188 = vunpack.c.0.s8 %v4187
    %v4189 = vlaneseq
    %v4190 = vshrl.u32 %v4189, 7
    %v4191 = vsub.s32 %v4188, %v4190
    %v4192 = vrot.slane %v4184, %v4191
    %v4194 = vunpack.c.l.s4 1934713408
    %v4195 = vunpack.c.0.s8 %v4194
    %v4196 = vlaneseq
    %v4197 = vshrl.u32 %v4196, 7
    %v4198 = vsub.s32 %v4195, %v4197
    %v4199 = vrot.slane %v4185, %v4198
    %v4200 = vcombine.low %v4167, %v4183
    %v4201 = vcombine.high %v4167, %v4183
    %v4203 = vunpack.c.l.s4 1934713408
    %v4204 = vunpack.c.0.s8 %v4203
    %v4205 = vlaneseq
    %v4206 = vshrl.u32 %v4205, 7
    %v4207 = vsub.s32 %v4204, %v4206
    %v4208 = vrot.slane %v4200, %v4207
    %v4210 = vunpack.c.l.s4 1934713408
    %v4211 = vunpack.c.0.s8 %v4210
    %v4212 = vlaneseq
    %v4213 = vshrl.u32 %v4212, 7
    %v4214 = vsub.s32 %v4211, %v4213
    %v4215 = vrot.slane %v4201, %v4214
    %v4216 = vcombine.high %v4192, 0.0
    %v4217 = vcombine.high %v4199, 0.0
    %v4218 = vcombine.high %v4208, 0.0
    %v4219 = vcombine.high %v4215, 0.0
    %v4221 = vsel %vm186, %v4192, 0
    %4223 = vmatprep.subr.mxu0 0.0
    %4224 = vmatpush1.xpose.msra.mxu0 %v1442
    %4225 = vmatprep.subr.mxu0 0.0
    %4226 = vmatpush1.xpose.msra.mxu0 %v1444
    %4227 = vmatprep.subr.mxu0 0.0
    %4228 = vmatpush1.xpose.msra.mxu0 0.0
    %4229 = vmatprep.subr.mxu0 0.0
    %4230 = vmatpush1.xpose.msra.mxu0 0.0
    %4231 = vmatprep.subr.mxu0 0.0
    %4232 = vmatpush1.xpose.msra.mxu0 0.0
    %4233 = vmatprep.subr.mxu0 0.0
    %4234 = vmatpush1.xpose.msra.mxu0 0.0
    %4235 = vmatprep.subr.mxu0 0.0
    %4236 = vmatpush1.xpose.msra.mxu0 0.0
    %4237 = vmatprep.subr.mxu0 0.0
    %4238 = vmatpush1.xpose.msra.mxu0 0.0
    %4239 = vmatprep.subr.mxu0 0.0
    %4240 = vmatpush1.xpose.msra.mxu0 0.0
    %4241 = vmatprep.subr.mxu0 0.0
    %4242 = vmatpush1.xpose.msra.mxu0 0.0
    %4243 = vmatprep.subr.mxu0 0.0
    %4244 = vmatpush1.xpose.msra.mxu0 0.0
    %4245 = vmatprep.subr.mxu0 0.0
    %4246 = vmatpush1.xpose.msra.mxu0 0.0
    %4247 = vmatprep.subr.mxu0 0.0
    %4248 = vmatpush1.xpose.msra.mxu0 0.0
    %4249 = vmatprep.subr.mxu0 0.0
    %4250 = vmatpush1.xpose.msra.mxu0 0.0
    %4251 = vmatprep.subr.mxu0 0.0
    %4252 = vmatpush1.xpose.msra.mxu0 0.0
    %4253 = vmatprep.subr.mxu0 0.0
    %4254 = vmatpush1.xpose.msra.mxu0 0.0
    %4255 = vmatprep.subr.mxu0 0.0
    %4256 = vmatpush1.xpose.msra.mxu0 0.0
    %4257 = vmatprep.subr.mxu0 0.0
    %4258 = vmatpush1.xpose.msra.mxu0 0.0
    %4259 = vmatprep.subr.mxu0 0.0
    %4260 = vmatpush1.xpose.msra.mxu0 0.0
    %4261 = vmatprep.subr.mxu0 0.0
    %4262 = vmatpush1.xpose.msra.mxu0 0.0
    %4263 = vmatprep.subr.mxu0 0.0
    %4264 = vmatpush1.xpose.msra.mxu0 0.0
    %4265 = vmatprep.subr.mxu0 0.0
    %4266 = vmatpush1.xpose.msra.mxu0 0.0
    %4267 = vmatprep.subr.mxu0 0.0
    %4268 = vmatpush1.xpose.msra.mxu0 0.0
    %4269 = vmatprep.subr.mxu0 0.0
    %4270 = vmatpush1.xpose.msra.mxu0 0.0
    %4271 = vmatprep.subr.mxu0 0.0
    %4272 = vmatpush1.xpose.msra.mxu0 0.0
    %4273 = vmatprep.subr.mxu0 0.0
    %4274 = vmatpush1.xpose.msra.mxu0 0.0
    %4275 = vmatprep.subr.mxu0 0.0
    %4276 = vmatpush1.xpose.msra.mxu0 0.0
    %4277 = vmatprep.subr.mxu0 0.0
    %4278 = vmatpush1.xpose.msra.mxu0 0.0
    %4279 = vmatprep.subr.mxu0 0.0
    %4280 = vmatpush1.xpose.msra.mxu0 0.0
    %4281 = vmatprep.subr.mxu0 0.0
    %4282 = vmatpush1.xpose.msra.mxu0 0.0
    %4283 = vmatprep.subr.mxu0 0.0
    %4284 = vmatpush1.xpose.msra.mxu0 0.0
    %4285 = vmatprep.subr.mxu0 0.0
    %4286 = vmatpush1.xpose.msra.mxu0 0.0
    %4287 = vmatprep.mubr.f32.mxu0 0.0
    %4288 = vmatmul.mubr.f32.gmra.mrb[0].mxu0 %v4221
    %v4289 = vpop.f32.mrb[0].mxu0
    %v4290 = vadd.f32 0.0, %v4289
    %v4291 = vpop.f32.mrb[0].mxu0
    %4292 = vdwg.mxu0
    %v4294 = vsel %vm186, %v4216, 0
    %4296 = vmatprep.subr.mxu0 0.0
    %4297 = vmatpush1.xpose.msra.mxu0 %v1520
    %4298 = vmatprep.subr.mxu0 0.0
    %4299 = vmatpush1.xpose.msra.mxu0 %v1522
    %4300 = vmatprep.subr.mxu0 0.0
    %4301 = vmatpush1.xpose.msra.mxu0 0.0
    %4302 = vmatprep.subr.mxu0 0.0
    %4303 = vmatpush1.xpose.msra.mxu0 0.0
    %4304 = vmatprep.subr.mxu0 0.0
    %4305 = vmatpush1.xpose.msra.mxu0 0.0
    %4306 = vmatprep.subr.mxu0 0.0
    %4307 = vmatpush1.xpose.msra.mxu0 0.0
    %4308 = vmatprep.subr.mxu0 0.0
    %4309 = vmatpush1.xpose.msra.mxu0 0.0
    %4310 = vmatprep.subr.mxu0 0.0
    %4311 = vmatpush1.xpose.msra.mxu0 0.0
    %4312 = vmatprep.subr.mxu0 0.0
    %4313 = vmatpush1.xpose.msra.mxu0 0.0
    %4314 = vmatprep.subr.mxu0 0.0
    %4315 = vmatpush1.xpose.msra.mxu0 0.0
    %4316 = vmatprep.subr.mxu0 0.0
    %4317 = vmatpush1.xpose.msra.mxu0 0.0
    %4318 = vmatprep.subr.mxu0 0.0
    %4319 = vmatpush1.xpose.msra.mxu0 0.0
    %4320 = vmatprep.subr.mxu0 0.0
    %4321 = vmatpush1.xpose.msra.mxu0 0.0
    %4322 = vmatprep.subr.mxu0 0.0
    %4323 = vmatpush1.xpose.msra.mxu0 0.0
    %4324 = vmatprep.subr.mxu0 0.0
    %4325 = vmatpush1.xpose.msra.mxu0 0.0
    %4326 = vmatprep.subr.mxu0 0.0
    %4327 = vmatpush1.xpose.msra.mxu0 0.0
    %4328 = vmatprep.subr.mxu0 0.0
    %4329 = vmatpush1.xpose.msra.mxu0 0.0
    %4330 = vmatprep.subr.mxu0 0.0
    %4331 = vmatpush1.xpose.msra.mxu0 0.0
    %4332 = vmatprep.subr.mxu0 0.0
    %4333 = vmatpush1.xpose.msra.mxu0 0.0
    %4334 = vmatprep.subr.mxu0 0.0
    %4335 = vmatpush1.xpose.msra.mxu0 0.0
    %4336 = vmatprep.subr.mxu0 0.0
    %4337 = vmatpush1.xpose.msra.mxu0 0.0
    %4338 = vmatprep.subr.mxu0 0.0
    %4339 = vmatpush1.xpose.msra.mxu0 0.0
    %4340 = vmatprep.subr.mxu0 0.0
    %4341 = vmatpush1.xpose.msra.mxu0 0.0
    %4342 = vmatprep.subr.mxu0 0.0
    %4343 = vmatpush1.xpose.msra.mxu0 0.0
    %4344 = vmatprep.subr.mxu0 0.0
    %4345 = vmatpush1.xpose.msra.mxu0 0.0
    %4346 = vmatprep.subr.mxu0 0.0
    %4347 = vmatpush1.xpose.msra.mxu0 0.0
    %4348 = vmatprep.subr.mxu0 0.0
    %4349 = vmatpush1.xpose.msra.mxu0 0.0
    %4350 = vmatprep.subr.mxu0 0.0
    %4351 = vmatpush1.xpose.msra.mxu0 0.0
    %4352 = vmatprep.subr.mxu0 0.0
    %4353 = vmatpush1.xpose.msra.mxu0 0.0
    %4354 = vmatprep.subr.mxu0 0.0
    %4355 = vmatpush1.xpose.msra.mxu0 0.0
    %4356 = vmatprep.subr.mxu0 0.0
    %4357 = vmatpush1.xpose.msra.mxu0 0.0
    %4358 = vmatprep.subr.mxu0 0.0
    %4359 = vmatpush1.xpose.msra.mxu0 0.0
    %4360 = vmatprep.mubr.f32.mxu0 0.0
    %4361 = vmatmul.mubr.f32.gmra.mrb[0].mxu0 %v4294
    %v4362 = vpop.f32.mrb[0].mxu0
    %v4363 = vadd.f32 0.0, %v4362
    %v4364 = vpop.f32.mrb[0].mxu0
    %4365 = vdwg.mxu0
    %v4367 = vsel %vm186, %v4199, 0
    %4369 = vmatprep.subr.mxu0 0.0
    %4370 = vmatpush1.xpose.msra.mxu0 %v1598
    %4371 = vmatprep.subr.mxu0 0.0
    %4372 = vmatpush1.xpose.msra.mxu0 %v1600
    %4373 = vmatprep.subr.mxu0 0.0
    %4374 = vmatpush1.xpose.msra.mxu0 0.0
    %4375 = vmatprep.subr.mxu0 0.0
    %4376 = vmatpush1.xpose.msra.mxu0 0.0
    %4377 = vmatprep.subr.mxu0 0.0
    %4378 = vmatpush1.xpose.msra.mxu0 0.0
    %4379 = vmatprep.subr.mxu0 0.0
    %4380 = vmatpush1.xpose.msra.mxu0 0.0
    %4381 = vmatprep.subr.mxu0 0.0
    %4382 = vmatpush1.xpose.msra.mxu0 0.0
    %4383 = vmatprep.subr.mxu0 0.0
    %4384 = vmatpush1.xpose.msra.mxu0 0.0
    %4385 = vmatprep.subr.mxu0 0.0
    %4386 = vmatpush1.xpose.msra.mxu0 0.0
    %4387 = vmatprep.subr.mxu0 0.0
    %4388 = vmatpush1.xpose.msra.mxu0 0.0
    %4389 = vmatprep.subr.mxu0 0.0
    %4390 = vmatpush1.xpose.msra.mxu0 0.0
    %4391 = vmatprep.subr.mxu0 0.0
    %4392 = vmatpush1.xpose.msra.mxu0 0.0
    %4393 = vmatprep.subr.mxu0 0.0
    %4394 = vmatpush1.xpose.msra.mxu0 0.0
    %4395 = vmatprep.subr.mxu0 0.0
    %4396 = vmatpush1.xpose.msra.mxu0 0.0
    %4397 = vmatprep.subr.mxu0 0.0
    %4398 = vmatpush1.xpose.msra.mxu0 0.0
    %4399 = vmatprep.subr.mxu0 0.0
    %4400 = vmatpush1.xpose.msra.mxu0 0.0
    %4401 = vmatprep.subr.mxu0 0.0
    %4402 = vmatpush1.xpose.msra.mxu0 0.0
    %4403 = vmatprep.subr.mxu0 0.0
    %4404 = vmatpush1.xpose.msra.mxu0 0.0
    %4405 = vmatprep.subr.mxu0 0.0
    %4406 = vmatpush1.xpose.msra.mxu0 0.0
    %4407 = vmatprep.subr.mxu0 0.0
    %4408 = vmatpush1.xpose.msra.mxu0 0.0
    %4409 = vmatprep.subr.mxu0 0.0
    %4410 = vmatpush1.xpose.msra.mxu0 0.0
    %4411 = vmatprep.subr.mxu0 0.0
    %4412 = vmatpush1.xpose.msra.mxu0 0.0
    %4413 = vmatprep.subr.mxu0 0.0
    %4414 = vmatpush1.xpose.msra.mxu0 0.0
    %4415 = vmatprep.subr.mxu0 0.0
    %4416 = vmatpush1.xpose.msra.mxu0 0.0
    %4417 = vmatprep.subr.mxu0 0.0
    %4418 = vmatpush1.xpose.msra.mxu0 0.0
    %4419 = vmatprep.subr.mxu0 0.0
    %4420 = vmatpush1.xpose.msra.mxu0 0.0
    %4421 = vmatprep.subr.mxu0 0.0
    %4422 = vmatpush1.xpose.msra.mxu0 0.0
    %4423 = vmatprep.subr.mxu0 0.0
    %4424 = vmatpush1.xpose.msra.mxu0 0.0
    %4425 = vmatprep.subr.mxu0 0.0
    %4426 = vmatpush1.xpose.msra.mxu0 0.0
    %4427 = vmatprep.subr.mxu0 0.0
    %4428 = vmatpush1.xpose.msra.mxu0 0.0
    %4429 = vmatprep.subr.mxu0 0.0
    %4430 = vmatpush1.xpose.msra.mxu0 0.0
    %4431 = vmatprep.subr.mxu0 0.0
    %4432 = vmatpush1.xpose.msra.mxu0 0.0
    %4433 = vmatprep.mubr.f32.mxu0 0.0
    %4434 = vmatmul.mubr.f32.gmra.mrb[0].mxu0 %v4367
    %v4435 = vpop.f32.mrb[0].mxu0
    %v4436 = vadd.f32 0.0, %v4435
    %v4437 = vpop.f32.mrb[0].mxu0
    %4438 = vdwg.mxu0
    %v4440 = vsel %vm186, %v4217, 0
    %4442 = vmatprep.subr.mxu0 0.0
    %4443 = vmatpush1.xpose.msra.mxu0 %v1676
    %4444 = vmatprep.subr.mxu0 0.0
    %4445 = vmatpush1.xpose.msra.mxu0 %v1678
    %4446 = vmatprep.subr.mxu0 0.0
    %4447 = vmatpush1.xpose.msra.mxu0 0.0
    %4448 = vmatprep.subr.mxu0 0.0
    %4449 = vmatpush1.xpose.msra.mxu0 0.0
    %4450 = vmatprep.subr.mxu0 0.0
    %4451 = vmatpush1.xpose.msra.mxu0 0.0
    %4452 = vmatprep.subr.mxu0 0.0
    %4453 = vmatpush1.xpose.msra.mxu0 0.0
    %4454 = vmatprep.subr.mxu0 0.0
    %4455 = vmatpush1.xpose.msra.mxu0 0.0
    %4456 = vmatprep.subr.mxu0 0.0
    %4457 = vmatpush1.xpose.msra.mxu0 0.0
    %4458 = vmatprep.subr.mxu0 0.0
    %4459 = vmatpush1.xpose.msra.mxu0 0.0
    %4460 = vmatprep.subr.mxu0 0.0
    %4461 = vmatpush1.xpose.msra.mxu0 0.0
    %4462 = vmatprep.subr.mxu0 0.0
    %4463 = vmatpush1.xpose.msra.mxu0 0.0
    %4464 = vmatprep.subr.mxu0 0.0
    %4465 = vmatpush1.xpose.msra.mxu0 0.0
    %4466 = vmatprep.subr.mxu0 0.0
    %4467 = vmatpush1.xpose.msra.mxu0 0.0
    %4468 = vmatprep.subr.mxu0 0.0
    %4469 = vmatpush1.xpose.msra.mxu0 0.0
    %4470 = vmatprep.subr.mxu0 0.0
    %4471 = vmatpush1.xpose.msra.mxu0 0.0
    %4472 = vmatprep.subr.mxu0 0.0
    %4473 = vmatpush1.xpose.msra.mxu0 0.0
    %4474 = vmatprep.subr.mxu0 0.0
    %4475 = vmatpush1.xpose.msra.mxu0 0.0
    %4476 = vmatprep.subr.mxu0 0.0
    %4477 = vmatpush1.xpose.msra.mxu0 0.0
    %4478 = vmatprep.subr.mxu0 0.0
    %4479 = vmatpush1.xpose.msra.mxu0 0.0
    %4480 = vmatprep.subr.mxu0 0.0
    %4481 = vmatpush1.xpose.msra.mxu0 0.0
    %4482 = vmatprep.subr.mxu0 0.0
    %4483 = vmatpush1.xpose.msra.mxu0 0.0
    %4484 = vmatprep.subr.mxu0 0.0
    %4485 = vmatpush1.xpose.msra.mxu0 0.0
    %4486 = vmatprep.subr.mxu0 0.0
    %4487 = vmatpush1.xpose.msra.mxu0 0.0
    %4488 = vmatprep.subr.mxu0 0.0
    %4489 = vmatpush1.xpose.msra.mxu0 0.0
    %4490 = vmatprep.subr.mxu0 0.0
    %4491 = vmatpush1.xpose.msra.mxu0 0.0
    %4492 = vmatprep.subr.mxu0 0.0
    %4493 = vmatpush1.xpose.msra.mxu0 0.0
    %4494 = vmatprep.subr.mxu0 0.0
    %4495 = vmatpush1.xpose.msra.mxu0 0.0
    %4496 = vmatprep.subr.mxu0 0.0
    %4497 = vmatpush1.xpose.msra.mxu0 0.0
    %4498 = vmatprep.subr.mxu0 0.0
    %4499 = vmatpush1.xpose.msra.mxu0 0.0
    %4500 = vmatprep.subr.mxu0 0.0
    %4501 = vmatpush1.xpose.msra.mxu0 0.0
    %4502 = vmatprep.subr.mxu0 0.0
    %4503 = vmatpush1.xpose.msra.mxu0 0.0
    %4504 = vmatprep.subr.mxu0 0.0
    %4505 = vmatpush1.xpose.msra.mxu0 0.0
    %4506 = vmatprep.mubr.f32.mxu0 0.0
    %4507 = vmatmul.mubr.f32.gmra.mrb[0].mxu0 %v4440
    %v4508 = vpop.f32.mrb[0].mxu0
    %v4509 = vadd.f32 0.0, %v4508
    %v4510 = vpop.f32.mrb[0].mxu0
    %4511 = vdwg.mxu0
    %v4513 = vsel %vm186, %v4208, 0
    %4515 = vmatprep.subr.mxu0 0.0
    %4516 = vmatpush1.xpose.msra.mxu0 %v1754
    %4517 = vmatprep.subr.mxu0 0.0
    %4518 = vmatpush1.xpose.msra.mxu0 %v1756
    %4519 = vmatprep.subr.mxu0 0.0
    %4520 = vmatpush1.xpose.msra.mxu0 0.0
    %4521 = vmatprep.subr.mxu0 0.0
    %4522 = vmatpush1.xpose.msra.mxu0 0.0
    %4523 = vmatprep.subr.mxu0 0.0
    %4524 = vmatpush1.xpose.msra.mxu0 0.0
    %4525 = vmatprep.subr.mxu0 0.0
    %4526 = vmatpush1.xpose.msra.mxu0 0.0
    %4527 = vmatprep.subr.mxu0 0.0
    %4528 = vmatpush1.xpose.msra.mxu0 0.0
    %4529 = vmatprep.subr.mxu0 0.0
    %4530 = vmatpush1.xpose.msra.mxu0 0.0
    %4531 = vmatprep.subr.mxu0 0.0
    %4532 = vmatpush1.xpose.msra.mxu0 0.0
    %4533 = vmatprep.subr.mxu0 0.0
    %4534 = vmatpush1.xpose.msra.mxu0 0.0
    %4535 = vmatprep.subr.mxu0 0.0
    %4536 = vmatpush1.xpose.msra.mxu0 0.0
    %4537 = vmatprep.subr.mxu0 0.0
    %4538 = vmatpush1.xpose.msra.mxu0 0.0
    %4539 = vmatprep.subr.mxu0 0.0
    %4540 = vmatpush1.xpose.msra.mxu0 0.0
    %4541 = vmatprep.subr.mxu0 0.0
    %4542 = vmatpush1.xpose.msra.mxu0 0.0
    %4543 = vmatprep.subr.mxu0 0.0
    %4544 = vmatpush1.xpose.msra.mxu0 0.0
    %4545 = vmatprep.subr.mxu0 0.0
    %4546 = vmatpush1.xpose.msra.mxu0 0.0
    %4547 = vmatprep.subr.mxu0 0.0
    %4548 = vmatpush1.xpose.msra.mxu0 0.0
    %4549 = vmatprep.subr.mxu0 0.0
    %4550 = vmatpush1.xpose.msra.mxu0 0.0
    %4551 = vmatprep.subr.mxu0 0.0
    %4552 = vmatpush1.xpose.msra.mxu0 0.0
    %4553 = vmatprep.subr.mxu0 0.0
    %4554 = vmatpush1.xpose.msra.mxu0 0.0
    %4555 = vmatprep.subr.mxu0 0.0
    %4556 = vmatpush1.xpose.msra.mxu0 0.0
    %4557 = vmatprep.subr.mxu0 0.0
    %4558 = vmatpush1.xpose.msra.mxu0 0.0
    %4559 = vmatprep.subr.mxu0 0.0
    %4560 = vmatpush1.xpose.msra.mxu0 0.0
    %4561 = vmatprep.subr.mxu0 0.0
    %4562 = vmatpush1.xpose.msra.mxu0 0.0
    %4563 = vmatprep.subr.mxu0 0.0
    %4564 = vmatpush1.xpose.msra.mxu0 0.0
    %4565 = vmatprep.subr.mxu0 0.0
    %4566 = vmatpush1.xpose.msra.mxu0 0.0
    %4567 = vmatprep.subr.mxu0 0.0
    %4568 = vmatpush1.xpose.msra.mxu0 0.0
    %4569 = vmatprep.subr.mxu0 0.0
    %4570 = vmatpush1.xpose.msra.mxu0 0.0
    %4571 = vmatprep.subr.mxu0 0.0
    %4572 = vmatpush1.xpose.msra.mxu0 0.0
    %4573 = vmatprep.subr.mxu0 0.0
    %4574 = vmatpush1.xpose.msra.mxu0 0.0
    %4575 = vmatprep.subr.mxu0 0.0
    %4576 = vmatpush1.xpose.msra.mxu0 0.0
    %4577 = vmatprep.subr.mxu0 0.0
    %4578 = vmatpush1.xpose.msra.mxu0 0.0
    %4579 = vmatprep.mubr.f32.mxu0 0.0
    %4580 = vmatmul.mubr.f32.gmra.mrb[0].mxu0 %v4513
    %v4581 = vpop.f32.mrb[0].mxu0
    %v4582 = vadd.f32 0.0, %v4581
    %v4583 = vpop.f32.mrb[0].mxu0
    %4584 = vdwg.mxu0
    %v4586 = vsel %vm186, %v4218, 0
    %4588 = vmatprep.subr.mxu0 0.0
    %4589 = vmatpush1.xpose.msra.mxu0 %v1832
    %4590 = vmatprep.subr.mxu0 0.0
    %4591 = vmatpush1.xpose.msra.mxu0 %v1834
    %4592 = vmatprep.subr.mxu0 0.0
    %4593 = vmatpush1.xpose.msra.mxu0 0.0
    %4594 = vmatprep.subr.mxu0 0.0
    %4595 = vmatpush1.xpose.msra.mxu0 0.0
    %4596 = vmatprep.subr.mxu0 0.0
    %4597 = vmatpush1.xpose.msra.mxu0 0.0
    %4598 = vmatprep.subr.mxu0 0.0
    %4599 = vmatpush1.xpose.msra.mxu0 0.0
    %4600 = vmatprep.subr.mxu0 0.0
    %4601 = vmatpush1.xpose.msra.mxu0 0.0
    %4602 = vmatprep.subr.mxu0 0.0
    %4603 = vmatpush1.xpose.msra.mxu0 0.0
    %4604 = vmatprep.subr.mxu0 0.0
    %4605 = vmatpush1.xpose.msra.mxu0 0.0
    %4606 = vmatprep.subr.mxu0 0.0
    %4607 = vmatpush1.xpose.msra.mxu0 0.0
    %4608 = vmatprep.subr.mxu0 0.0
    %4609 = vmatpush1.xpose.msra.mxu0 0.0
    %4610 = vmatprep.subr.mxu0 0.0
    %4611 = vmatpush1.xpose.msra.mxu0 0.0
    %4612 = vmatprep.subr.mxu0 0.0
    %4613 = vmatpush1.xpose.msra.mxu0 0.0
    %4614 = vmatprep.subr.mxu0 0.0
    %4615 = vmatpush1.xpose.msra.mxu0 0.0
    %4616 = vmatprep.subr.mxu0 0.0
    %4617 = vmatpush1.xpose.msra.mxu0 0.0
    %4618 = vmatprep.subr.mxu0 0.0
    %4619 = vmatpush1.xpose.msra.mxu0 0.0
    %4620 = vmatprep.subr.mxu0 0.0
    %4621 = vmatpush1.xpose.msra.mxu0 0.0
    %4622 = vmatprep.subr.mxu0 0.0
    %4623 = vmatpush1.xpose.msra.mxu0 0.0
    %4624 = vmatprep.subr.mxu0 0.0
    %4625 = vmatpush1.xpose.msra.mxu0 0.0
    %4626 = vmatprep.subr.mxu0 0.0
    %4627 = vmatpush1.xpose.msra.mxu0 0.0
    %4628 = vmatprep.subr.mxu0 0.0
    %4629 = vmatpush1.xpose.msra.mxu0 0.0
    %4630 = vmatprep.subr.mxu0 0.0
    %4631 = vmatpush1.xpose.msra.mxu0 0.0
    %4632 = vmatprep.subr.mxu0 0.0
    %4633 = vmatpush1.xpose.msra.mxu0 0.0
    %4634 = vmatprep.subr.mxu0 0.0
    %4635 = vmatpush1.xpose.msra.mxu0 0.0
    %4636 = vmatprep.subr.mxu0 0.0
    %4637 = vmatpush1.xpose.msra.mxu0 0.0
    %4638 = vmatprep.subr.mxu0 0.0
    %4639 = vmatpush1.xpose.msra.mxu0 0.0
    %4640 = vmatprep.subr.mxu0 0.0
    %4641 = vmatpush1.xpose.msra.mxu0 0.0
    %4642 = vmatprep.subr.mxu0 0.0
    %4643 = vmatpush1.xpose.msra.mxu0 0.0
    %4644 = vmatprep.subr.mxu0 0.0
    %4645 = vmatpush1.xpose.msra.mxu0 0.0
    %4646 = vmatprep.subr.mxu0 0.0
    %4647 = vmatpush1.xpose.msra.mxu0 0.0
    %4648 = vmatprep.subr.mxu0 0.0
    %4649 = vmatpush1.xpose.msra.mxu0 0.0
    %4650 = vmatprep.subr.mxu0 0.0
    %4651 = vmatpush1.xpose.msra.mxu0 0.0
    %4652 = vmatprep.mubr.f32.mxu0 0.0
    %4653 = vmatmul.mubr.f32.gmra.mrb[0].mxu0 %v4586
    %v4654 = vpop.f32.mrb[0].mxu0
    %v4655 = vadd.f32 0.0, %v4654
    %v4656 = vpop.f32.mrb[0].mxu0
    %4657 = vdwg.mxu0
    %v4659 = vsel %vm186, %v4215, 0
    %4661 = vmatprep.subr.mxu0 0.0
    %4662 = vmatpush1.xpose.msra.mxu0 %v1910
    %4663 = vmatprep.subr.mxu0 0.0
    %4664 = vmatpush1.xpose.msra.mxu0 %v1912
    %4665 = vmatprep.subr.mxu0 0.0
    %4666 = vmatpush1.xpose.msra.mxu0 0.0
    %4667 = vmatprep.subr.mxu0 0.0
    %4668 = vmatpush1.xpose.msra.mxu0 0.0
    %4669 = vmatprep.subr.mxu0 0.0
    %4670 = vmatpush1.xpose.msra.mxu0 0.0
    %4671 = vmatprep.subr.mxu0 0.0
    %4672 = vmatpush1.xpose.msra.mxu0 0.0
    %4673 = vmatprep.subr.mxu0 0.0
    %4674 = vmatpush1.xpose.msra.mxu0 0.0
    %4675 = vmatprep.subr.mxu0 0.0
    %4676 = vmatpush1.xpose.msra.mxu0 0.0
    %4677 = vmatprep.subr.mxu0 0.0
    %4678 = vmatpush1.xpose.msra.mxu0 0.0
    %4679 = vmatprep.subr.mxu0 0.0
    %4680 = vmatpush1.xpose.msra.mxu0 0.0
    %4681 = vmatprep.subr.mxu0 0.0
    %4682 = vmatpush1.xpose.msra.mxu0 0.0
    %4683 = vmatprep.subr.mxu0 0.0
    %4684 = vmatpush1.xpose.msra.mxu0 0.0
    %4685 = vmatprep.subr.mxu0 0.0
    %4686 = vmatpush1.xpose.msra.mxu0 0.0
    %4687 = vmatprep.subr.mxu0 0.0
    %4688 = vmatpush1.xpose.msra.mxu0 0.0
    %4689 = vmatprep.subr.mxu0 0.0
    %4690 = vmatpush1.xpose.msra.mxu0 0.0
    %4691 = vmatprep.subr.mxu0 0.0
    %4692 = vmatpush1.xpose.msra.mxu0 0.0
    %4693 = vmatprep.subr.mxu0 0.0
    %4694 = vmatpush1.xpose.msra.mxu0 0.0
    %4695 = vmatprep.subr.mxu0 0.0
    %4696 = vmatpush1.xpose.msra.mxu0 0.0
    %4697 = vmatprep.subr.mxu0 0.0
    %4698 = vmatpush1.xpose.msra.mxu0 0.0
    %4699 = vmatprep.subr.mxu0 0.0
    %4700 = vmatpush1.xpose.msra.mxu0 0.0
    %4701 = vmatprep.subr.mxu0 0.0
    %4702 = vmatpush1.xpose.msra.mxu0 0.0
    %4703 = vmatprep.subr.mxu0 0.0
    %4704 = vmatpush1.xpose.msra.mxu0 0.0
    %4705 = vmatprep.subr.mxu0 0.0
    %4706 = vmatpush1.xpose.msra.mxu0 0.0
    %4707 = vmatprep.subr.mxu0 0.0
    %4708 = vmatpush1.xpose.msra.mxu0 0.0
    %4709 = vmatprep.subr.mxu0 0.0
    %4710 = vmatpush1.xpose.msra.mxu0 0.0
    %4711 = vmatprep.subr.mxu0 0.0
    %4712 = vmatpush1.xpose.msra.mxu0 0.0
    %4713 = vmatprep.subr.mxu0 0.0
    %4714 = vmatpush1.xpose.msra.mxu0 0.0
    %4715 = vmatprep.subr.mxu0 0.0
    %4716 = vmatpush1.xpose.msra.mxu0 0.0
    %4717 = vmatprep.subr.mxu0 0.0
    %4718 = vmatpush1.xpose.msra.mxu0 0.0
    %4719 = vmatprep.subr.mxu0 0.0
    %4720 = vmatpush1.xpose.msra.mxu0 0.0
    %4721 = vmatprep.subr.mxu0 0.0
    %4722 = vmatpush1.xpose.msra.mxu0 0.0
    %4723 = vmatprep.subr.mxu0 0.0
    %4724 = vmatpush1.xpose.msra.mxu0 0.0
    %4725 = vmatprep.mubr.f32.mxu0 0.0
    %4726 = vmatmul.mubr.f32.gmra.mrb[0].mxu0 %v4659
    %v4727 = vpop.f32.mrb[0].mxu0
    %v4728 = vadd.f32 0.0, %v4727
    %v4729 = vpop.f32.mrb[0].mxu0
    %4730 = vdwg.mxu0
    %v4732 = vsel %vm186, %v4219, 0
    %4734 = vmatprep.subr.mxu0 0.0
    %4735 = vmatpush1.xpose.msra.mxu0 %v1988
    %4736 = vmatprep.subr.mxu0 0.0
    %4737 = vmatpush1.xpose.msra.mxu0 %v1990
    %4738 = vmatprep.subr.mxu0 0.0
    %4739 = vmatpush1.xpose.msra.mxu0 0.0
    %4740 = vmatprep.subr.mxu0 0.0
    %4741 = vmatpush1.xpose.msra.mxu0 0.0
    %4742 = vmatprep.subr.mxu0 0.0
    %4743 = vmatpush1.xpose.msra.mxu0 0.0
    %4744 = vmatprep.subr.mxu0 0.0
    %4745 = vmatpush1.xpose.msra.mxu0 0.0
    %4746 = vmatprep.subr.mxu0 0.0
    %4747 = vmatpush1.xpose.msra.mxu0 0.0
    %4748 = vmatprep.subr.mxu0 0.0
    %4749 = vmatpush1.xpose.msra.mxu0 0.0
    %4750 = vmatprep.subr.mxu0 0.0
    %4751 = vmatpush1.xpose.msra.mxu0 0.0
    %4752 = vmatprep.subr.mxu0 0.0
    %4753 = vmatpush1.xpose.msra.mxu0 0.0
    %4754 = vmatprep.subr.mxu0 0.0
    %4755 = vmatpush1.xpose.msra.mxu0 0.0
    %4756 = vmatprep.subr.mxu0 0.0
    %4757 = vmatpush1.xpose.msra.mxu0 0.0
    %4758 = vmatprep.subr.mxu0 0.0
    %4759 = vmatpush1.xpose.msra.mxu0 0.0
    %4760 = vmatprep.subr.mxu0 0.0
    %4761 = vmatpush1.xpose.msra.mxu0 0.0
    %4762 = vmatprep.subr.mxu0 0.0
    %4763 = vmatpush1.xpose.msra.mxu0 0.0
    %4764 = vmatprep.subr.mxu0 0.0
    %4765 = vmatpush1.xpose.msra.mxu0 0.0
    %4766 = vmatprep.subr.mxu0 0.0
    %4767 = vmatpush1.xpose.msra.mxu0 0.0
    %4768 = vmatprep.subr.mxu0 0.0
    %4769 = vmatpush1.xpose.msra.mxu0 0.0
    %4770 = vmatprep.subr.mxu0 0.0
    %4771 = vmatpush1.xpose.msra.mxu0 0.0
    %4772 = vmatprep.subr.mxu0 0.0
    %4773 = vmatpush1.xpose.msra.mxu0 0.0
    %4774 = vmatprep.subr.mxu0 0.0
    %4775 = vmatpush1.xpose.msra.mxu0 0.0
    %4776 = vmatprep.subr.mxu0 0.0
    %4777 = vmatpush1.xpose.msra.mxu0 0.0
    %4778 = vmatprep.subr.mxu0 0.0
    %4779 = vmatpush1.xpose.msra.mxu0 0.0
    %4780 = vmatprep.subr.mxu0 0.0
    %4781 = vmatpush1.xpose.msra.mxu0 0.0
    %4782 = vmatprep.subr.mxu0 0.0
    %4783 = vmatpush1.xpose.msra.mxu0 0.0
    %4784 = vmatprep.subr.mxu0 0.0
    %4785 = vmatpush1.xpose.msra.mxu0 0.0
    %4786 = vmatprep.subr.mxu0 0.0
    %4787 = vmatpush1.xpose.msra.mxu0 0.0
    %4788 = vmatprep.subr.mxu0 0.0
    %4789 = vmatpush1.xpose.msra.mxu0 0.0
    %4790 = vmatprep.subr.mxu0 0.0
    %4791 = vmatpush1.xpose.msra.mxu0 0.0
    %4792 = vmatprep.subr.mxu0 0.0
    %4793 = vmatpush1.xpose.msra.mxu0 0.0
    %4794 = vmatprep.subr.mxu0 0.0
    %4795 = vmatpush1.xpose.msra.mxu0 0.0
    %4796 = vmatprep.subr.mxu0 0.0
    %4797 = vmatpush1.xpose.msra.mxu0 0.0
    %4798 = vmatprep.mubr.f32.mxu0 0.0
    %4799 = vmatmul.mubr.f32.gmra.mrb[0].mxu0 %v4732
    %v4800 = vpop.f32.mrb[0].mxu0
    %v4801 = vadd.f32 0.0, %v4800
    %v4802 = vpop.f32.mrb[0].mxu0
    %4803 = vdwg.mxu0
    %v4812 = vcombine.low %v4290, %v4363
    %v4813 = vcombine.low %v4436, %v4509
    %v4814 = vcombine.low %v4582, %v4655
    %v4815 = vcombine.low %v4728, %v4801
    %v4816 = vsel %vm348, %v4812, 0
    %v4818 = vsel %vm348, %v4813, 0
    %v4820 = vsel %vm348, %v4814, 0
    %v4822 = vsel %vm348, %v4815, 0
    %v4825 = vsel %vm352, %v2887, 0
    %4827 = vmatprep.subr.mxu0 0.0
    %4828 = vmatpush1.msra.mxu0 %v2886
    %4829 = vmatprep.subr.mxu0 0.0
    %4830 = vmatpush1.msra.mxu0 %v4825
    %4831 = vmatprep.subr.mxu0 0.0
    %4832 = vmatpush1.msra.mxu0 0.0
    %4833 = vmatprep.subr.mxu0 0.0
    %4834 = vmatpush1.msra.mxu0 0.0
    %4835 = vmatprep.subr.mxu0 0.0
    %4836 = vmatpush1.msra.mxu0 0.0
    %4837 = vmatprep.subr.mxu0 0.0
    %4838 = vmatpush1.msra.mxu0 0.0
    %4839 = vmatprep.subr.mxu0 0.0
    %4840 = vmatpush1.msra.mxu0 0.0
    %4841 = vmatprep.subr.mxu0 0.0
    %4842 = vmatpush1.msra.mxu0 0.0
    %4843 = vmatprep.subr.mxu0 0.0
    %4844 = vmatpush1.msra.mxu0 0.0
    %4845 = vmatprep.subr.mxu0 0.0
    %4846 = vmatpush1.msra.mxu0 0.0
    %4847 = vmatprep.subr.mxu0 0.0
    %4848 = vmatpush1.msra.mxu0 0.0
    %4849 = vmatprep.subr.mxu0 0.0
    %4850 = vmatpush1.msra.mxu0 0.0
    %4851 = vmatprep.subr.mxu0 0.0
    %4852 = vmatpush1.msra.mxu0 0.0
    %4853 = vmatprep.subr.mxu0 0.0
    %4854 = vmatpush1.msra.mxu0 0.0
    %4855 = vmatprep.subr.mxu0 0.0
    %4856 = vmatpush1.msra.mxu0 0.0
    %4857 = vmatprep.subr.mxu0 0.0
    %4858 = vmatpush1.msra.mxu0 0.0
    %4859 = vmatprep.subr.mxu0 0.0
    %4860 = vmatpush1.msra.mxu0 0.0
    %4861 = vmatprep.subr.mxu0 0.0
    %4862 = vmatpush1.msra.mxu0 0.0
    %4863 = vmatprep.subr.mxu0 0.0
    %4864 = vmatpush1.msra.mxu0 0.0
    %4865 = vmatprep.subr.mxu0 0.0
    %4866 = vmatpush1.msra.mxu0 0.0
    %4867 = vmatprep.subr.mxu0 0.0
    %4868 = vmatpush1.msra.mxu0 0.0
    %4869 = vmatprep.subr.mxu0 0.0
    %4870 = vmatpush1.msra.mxu0 0.0
    %4871 = vmatprep.subr.mxu0 0.0
    %4872 = vmatpush1.msra.mxu0 0.0
    %4873 = vmatprep.subr.mxu0 0.0
    %4874 = vmatpush1.msra.mxu0 0.0
    %4875 = vmatprep.subr.mxu0 0.0
    %4876 = vmatpush1.msra.mxu0 0.0
    %4877 = vmatprep.subr.mxu0 0.0
    %4878 = vmatpush1.msra.mxu0 0.0
    %4879 = vmatprep.subr.mxu0 0.0
    %4880 = vmatpush1.msra.mxu0 0.0
    %4881 = vmatprep.subr.mxu0 0.0
    %4882 = vmatpush1.msra.mxu0 0.0
    %4883 = vmatprep.subr.mxu0 0.0
    %4884 = vmatpush1.msra.mxu0 0.0
    %4885 = vmatprep.subr.mxu0 0.0
    %4886 = vmatpush1.msra.mxu0 0.0
    %4887 = vmatprep.subr.mxu0 0.0
    %4888 = vmatpush1.msra.mxu0 0.0
    %4889 = vmatprep.subr.mxu0 0.0
    %4890 = vmatpush1.msra.mxu0 0.0
    %4891 = vmatprep.mubr.f32.mxu0 0.0
    %4892 = vmatmul.mubr.f32.gmra.mrb[0].mxu0 %v4816
    %v4893 = vpop.f32.mrb[0].mxu0
    %v4894 = vadd.f32 0.0, %v4893
    %v4895 = vpop.f32.mrb[0].mxu0
    %4896 = vmatprep.mubr.f32.mxu0 0.0
    %4897 = vmatmul.mubr.f32.gmra.mrb[0].mxu0 %v4818
    %v4898 = vpop.f32.mrb[0].mxu0
    %v4899 = vadd.f32 0.0, %v4898
    %v4900 = vpop.f32.mrb[0].mxu0
    %4901 = vmatprep.mubr.f32.mxu0 0.0
    %4902 = vmatmul.mubr.f32.gmra.mrb[0].mxu0 %v4820
    %v4903 = vpop.f32.mrb[0].mxu0
    %v4904 = vadd.f32 0.0, %v4903
    %v4905 = vpop.f32.mrb[0].mxu0
    %4906 = vmatprep.mubr.f32.mxu0 0.0
    %4907 = vmatmul.mubr.f32.gmra.mrb[0].mxu0 %v4822
    %v4908 = vpop.f32.mrb[0].mxu0
    %v4909 = vadd.f32 0.0, %v4908
    %v4910 = vpop.f32.mrb[0].mxu0
    %4911 = vdwg.mxu0
    %v4916 = vcombine.high %v4894, %v4894
    %v4917 = vcombine.high %v4899, %v4899
    %v4918 = vcombine.high %v4904, %v4904
    %v4919 = vcombine.high %v4909, %v4909
    %v4924 = vcombine.low %v4894, %v4899
    %v4926 = vunpack.c.l.s4 1983009808
    %v4927 = vunpack.c.0.s8 %v4926
    %v4928 = vlaneseq
    %v4929 = vshrl.u32 %v4928, 7
    %v4930 = vsub.s32 %v4927, %v4929
    %v4931 = vrot.slane %v4924, %v4930
    %v4932 = vcombine.low %v4916, %v4917
    %v4934 = vunpack.c.l.s4 1983009808
    %v4935 = vunpack.c.0.s8 %v4934
    %v4936 = vlaneseq
    %v4937 = vshrl.u32 %v4936, 7
    %v4938 = vsub.s32 %v4935, %v4937
    %v4939 = vrot.slane %v4932, %v4938
    %v4940 = vcombine.low %v4931, %v4939
    %v4941 = vcombine.high %v4931, %v4939
    %v4943 = vunpack.c.l.s4 1934713408
    %v4944 = vunpack.c.0.s8 %v4943
    %v4945 = vlaneseq
    %v4946 = vshrl.u32 %v4945, 7
    %v4947 = vsub.s32 %v4944, %v4946
    %v4948 = vrot.slane %v4940, %v4947
    %v4950 = vunpack.c.l.s4 1934713408
    %v4951 = vunpack.c.0.s8 %v4950
    %v4952 = vlaneseq
    %v4953 = vshrl.u32 %v4952, 7
    %v4954 = vsub.s32 %v4951, %v4953
    %v4955 = vrot.slane %v4941, %v4954
    %v4956 = vcombine.high %v4948, 0.0
    %v4957 = vcombine.high %v4955, 0.0
    %v4958 = vcombine.low %v4904, %v4909
    %v4960 = vunpack.c.l.s4 1983009808
    %v4961 = vunpack.c.0.s8 %v4960
    %v4962 = vlaneseq
    %v4963 = vshrl.u32 %v4962, 7
    %v4964 = vsub.s32 %v4961, %v4963
    %v4965 = vrot.slane %v4958, %v4964
    %v4966 = vcombine.low %v4918, %v4919
    %v4968 = vunpack.c.l.s4 1983009808
    %v4969 = vunpack.c.0.s8 %v4968
    %v4970 = vlaneseq
    %v4971 = vshrl.u32 %v4970, 7
    %v4972 = vsub.s32 %v4969, %v4971
    %v4973 = vrot.slane %v4966, %v4972
    %v4974 = vcombine.low %v4965, %v4973
    %v4975 = vcombine.high %v4965, %v4973
    %v4977 = vunpack.c.l.s4 1934713408
    %v4978 = vunpack.c.0.s8 %v4977
    %v4979 = vlaneseq
    %v4980 = vshrl.u32 %v4979, 7
    %v4981 = vsub.s32 %v4978, %v4980
    %v4982 = vrot.slane %v4974, %v4981
    %v4984 = vunpack.c.l.s4 1934713408
    %v4985 = vunpack.c.0.s8 %v4984
    %v4986 = vlaneseq
    %v4987 = vshrl.u32 %v4986, 7
    %v4988 = vsub.s32 %v4985, %v4987
    %v4989 = vrot.slane %v4975, %v4988
    %v4990 = vcombine.high %v4982, 0.0
    %v4991 = vcombine.high %v4989, 0.0
    %4992 = vrot.lane.b32.xlu0 %v2985, 64
    %v4993 = vpop.permute.xlu0 %4992
    %v4997 = vcombine.low %v4948, %v4982
    %v5000 = vsel %vm186, %v4148, 0
    %5002 = vmatprep.subr.mxu0 0.0
    %5003 = vmatpush1.msra.mxu0 %v4993
    %5004 = vmatprep.subr.mxu0 0.0
    %5005 = vmatpush1.msra.mxu0 0.0
    %5006 = vmatprep.subr.mxu0 0.0
    %5007 = vmatpush1.msra.mxu0 0.0
    %5008 = vmatprep.subr.mxu0 0.0
    %5009 = vmatpush1.msra.mxu0 0.0
    %5010 = vmatprep.subr.mxu0 0.0
    %5011 = vmatpush1.msra.mxu0 0.0
    %5012 = vmatprep.subr.mxu0 0.0
    %5013 = vmatpush1.msra.mxu0 0.0
    %5014 = vmatprep.subr.mxu0 0.0
    %5015 = vmatpush1.msra.mxu0 0.0
    %5016 = vmatprep.subr.mxu0 0.0
    %5017 = vmatpush1.msra.mxu0 0.0
    %5018 = vmatprep.subr.mxu0 0.0
    %5019 = vmatpush1.msra.mxu0 0.0
    %5020 = vmatprep.subr.mxu0 0.0
    %5021 = vmatpush1.msra.mxu0 0.0
    %5022 = vmatprep.subr.mxu0 0.0
    %5023 = vmatpush1.msra.mxu0 0.0
    %5024 = vmatprep.subr.mxu0 0.0
    %5025 = vmatpush1.msra.mxu0 0.0
    %5026 = vmatprep.subr.mxu0 0.0
    %5027 = vmatpush1.msra.mxu0 0.0
    %5028 = vmatprep.subr.mxu0 0.0
    %5029 = vmatpush1.msra.mxu0 0.0
    %5030 = vmatprep.subr.mxu0 0.0
    %5031 = vmatpush1.msra.mxu0 0.0
    %5032 = vmatprep.subr.mxu0 0.0
    %5033 = vmatpush1.msra.mxu0 0.0
    %5034 = vmatprep.subr.mxu0 0.0
    %5035 = vmatpush1.msra.mxu0 0.0
    %5036 = vmatprep.subr.mxu0 0.0
    %5037 = vmatpush1.msra.mxu0 0.0
    %5038 = vmatprep.subr.mxu0 0.0
    %5039 = vmatpush1.msra.mxu0 0.0
    %5040 = vmatprep.subr.mxu0 0.0
    %5041 = vmatpush1.msra.mxu0 0.0
    %5042 = vmatprep.subr.mxu0 0.0
    %5043 = vmatpush1.msra.mxu0 0.0
    %5044 = vmatprep.subr.mxu0 0.0
    %5045 = vmatpush1.msra.mxu0 0.0
    %5046 = vmatprep.subr.mxu0 0.0
    %5047 = vmatpush1.msra.mxu0 0.0
    %5048 = vmatprep.subr.mxu0 0.0
    %5049 = vmatpush1.msra.mxu0 0.0
    %5050 = vmatprep.subr.mxu0 0.0
    %5051 = vmatpush1.msra.mxu0 0.0
    %5052 = vmatprep.subr.mxu0 0.0
    %5053 = vmatpush1.msra.mxu0 0.0
    %5054 = vmatprep.subr.mxu0 0.0
    %5055 = vmatpush1.msra.mxu0 0.0
    %5056 = vmatprep.subr.mxu0 0.0
    %5057 = vmatpush1.msra.mxu0 0.0
    %5058 = vmatprep.subr.mxu0 0.0
    %5059 = vmatpush1.msra.mxu0 0.0
    %5060 = vmatprep.subr.mxu0 0.0
    %5061 = vmatpush1.msra.mxu0 0.0
    %5062 = vmatprep.subr.mxu0 0.0
    %5063 = vmatpush1.msra.mxu0 0.0
    %5064 = vmatprep.subr.mxu0 0.0
    %5065 = vmatpush1.msra.mxu0 0.0
    %5066 = vmatprep.mubr.f32.mxu0 0.0
    %5067 = vmatmul.mubr.f32.gmra.mrb[0].mxu0 %v5000
    %v5068 = vpop.f32.mrb[0].mxu0
    %v5069 = vadd.f32 %v4997, %v5068
    %v5070 = vpop.f32.mrb[0].mxu0
    %5071 = vdwg.mxu0
    %5072 = vrot.lane.b32.xlu0 %v2990, 64
    %v5073 = vpop.permute.xlu0 %5072
    %v5077 = vcombine.low %v4956, %v4990
    %v5080 = vsel %vm186, %v4149, 0
    %5082 = vmatprep.subr.mxu0 0.0
    %5083 = vmatpush1.msra.mxu0 %v5073
    %5084 = vmatprep.subr.mxu0 0.0
    %5085 = vmatpush1.msra.mxu0 0.0
    %5086 = vmatprep.subr.mxu0 0.0
    %5087 = vmatpush1.msra.mxu0 0.0
    %5088 = vmatprep.subr.mxu0 0.0
    %5089 = vmatpush1.msra.mxu0 0.0
    %5090 = vmatprep.subr.mxu0 0.0
    %5091 = vmatpush1.msra.mxu0 0.0
    %5092 = vmatprep.subr.mxu0 0.0
    %5093 = vmatpush1.msra.mxu0 0.0
    %5094 = vmatprep.subr.mxu0 0.0
    %5095 = vmatpush1.msra.mxu0 0.0
    %5096 = vmatprep.subr.mxu0 0.0
    %5097 = vmatpush1.msra.mxu0 0.0
    %5098 = vmatprep.subr.mxu0 0.0
    %5099 = vmatpush1.msra.mxu0 0.0
    %5100 = vmatprep.subr.mxu0 0.0
    %5101 = vmatpush1.msra.mxu0 0.0
    %5102 = vmatprep.subr.mxu0 0.0
    %5103 = vmatpush1.msra.mxu0 0.0
    %5104 = vmatprep.subr.mxu0 0.0
    %5105 = vmatpush1.msra.mxu0 0.0
    %5106 = vmatprep.subr.mxu0 0.0
    %5107 = vmatpush1.msra.mxu0 0.0
    %5108 = vmatprep.subr.mxu0 0.0
    %5109 = vmatpush1.msra.mxu0 0.0
    %5110 = vmatprep.subr.mxu0 0.0
    %5111 = vmatpush1.msra.mxu0 0.0
    %5112 = vmatprep.subr.mxu0 0.0
    %5113 = vmatpush1.msra.mxu0 0.0
    %5114 = vmatprep.subr.mxu0 0.0
    %5115 = vmatpush1.msra.mxu0 0.0
    %5116 = vmatprep.subr.mxu0 0.0
    %5117 = vmatpush1.msra.mxu0 0.0
    %5118 = vmatprep.subr.mxu0 0.0
    %5119 = vmatpush1.msra.mxu0 0.0
    %5120 = vmatprep.subr.mxu0 0.0
    %5121 = vmatpush1.msra.mxu0 0.0
    %5122 = vmatprep.subr.mxu0 0.0
    %5123 = vmatpush1.msra.mxu0 0.0
    %5124 = vmatprep.subr.mxu0 0.0
    %5125 = vmatpush1.msra.mxu0 0.0
    %5126 = vmatprep.subr.mxu0 0.0
    %5127 = vmatpush1.msra.mxu0 0.0
    %5128 = vmatprep.subr.mxu0 0.0
    %5129 = vmatpush1.msra.mxu0 0.0
    %5130 = vmatprep.subr.mxu0 0.0
    %5131 = vmatpush1.msra.mxu0 0.0
    %5132 = vmatprep.subr.mxu0 0.0
    %5133 = vmatpush1.msra.mxu0 0.0
    %5134 = vmatprep.subr.mxu0 0.0
    %5135 = vmatpush1.msra.mxu0 0.0
    %5136 = vmatprep.subr.mxu0 0.0
    %5137 = vmatpush1.msra.mxu0 0.0
    %5138 = vmatprep.subr.mxu0 0.0
    %5139 = vmatpush1.msra.mxu0 0.0
    %5140 = vmatprep.subr.mxu0 0.0
    %5141 = vmatpush1.msra.mxu0 0.0
    %5142 = vmatprep.subr.mxu0 0.0
    %5143 = vmatpush1.msra.mxu0 0.0
    %5144 = vmatprep.subr.mxu0 0.0
    %5145 = vmatpush1.msra.mxu0 0.0
    %5146 = vmatprep.mubr.f32.mxu0 0.0
    %5147 = vmatmul.mubr.f32.gmra.mrb[0].mxu0 %v5080
    %v5148 = vpop.f32.mrb[0].mxu0
    %v5149 = vadd.f32 %v5077, %v5148
    %v5150 = vpop.f32.mrb[0].mxu0
    %5151 = vdwg.mxu0
    %5152 = vrot.lane.b32.xlu0 %v2992, 64
    %v5153 = vpop.permute.xlu0 %5152
    %v5157 = vcombine.low %v4955, %v4989
    %v5160 = vsel %vm186, %v4150, 0
    %5162 = vmatprep.subr.mxu0 0.0
    %5163 = vmatpush1.msra.mxu0 %v5153
    %5164 = vmatprep.subr.mxu0 0.0
    %5165 = vmatpush1.msra.mxu0 0.0
    %5166 = vmatprep.subr.mxu0 0.0
    %5167 = vmatpush1.msra.mxu0 0.0
    %5168 = vmatprep.subr.mxu0 0.0
    %5169 = vmatpush1.msra.mxu0 0.0
    %5170 = vmatprep.subr.mxu0 0.0
    %5171 = vmatpush1.msra.mxu0 0.0
    %5172 = vmatprep.subr.mxu0 0.0
    %5173 = vmatpush1.msra.mxu0 0.0
    %5174 = vmatprep.subr.mxu0 0.0
    %5175 = vmatpush1.msra.mxu0 0.0
    %5176 = vmatprep.subr.mxu0 0.0
    %5177 = vmatpush1.msra.mxu0 0.0
    %5178 = vmatprep.subr.mxu0 0.0
    %5179 = vmatpush1.msra.mxu0 0.0
    %5180 = vmatprep.subr.mxu0 0.0
    %5181 = vmatpush1.msra.mxu0 0.0
    %5182 = vmatprep.subr.mxu0 0.0
    %5183 = vmatpush1.msra.mxu0 0.0
    %5184 = vmatprep.subr.mxu0 0.0
    %5185 = vmatpush1.msra.mxu0 0.0
    %5186 = vmatprep.subr.mxu0 0.0
    %5187 = vmatpush1.msra.mxu0 0.0
    %5188 = vmatprep.subr.mxu0 0.0
    %5189 = vmatpush1.msra.mxu0 0.0
    %5190 = vmatprep.subr.mxu0 0.0
    %5191 = vmatpush1.msra.mxu0 0.0
    %5192 = vmatprep.subr.mxu0 0.0
    %5193 = vmatpush1.msra.mxu0 0.0
    %5194 = vmatprep.subr.mxu0 0.0
    %5195 = vmatpush1.msra.mxu0 0.0
    %5196 = vmatprep.subr.mxu0 0.0
    %5197 = vmatpush1.msra.mxu0 0.0
    %5198 = vmatprep.subr.mxu0 0.0
    %5199 = vmatpush1.msra.mxu0 0.0
    %5200 = vmatprep.subr.mxu0 0.0
    %5201 = vmatpush1.msra.mxu0 0.0
    %5202 = vmatprep.subr.mxu0 0.0
    %5203 = vmatpush1.msra.mxu0 0.0
    %5204 = vmatprep.subr.mxu0 0.0
    %5205 = vmatpush1.msra.mxu0 0.0
    %5206 = vmatprep.subr.mxu0 0.0
    %5207 = vmatpush1.msra.mxu0 0.0
    %5208 = vmatprep.subr.mxu0 0.0
    %5209 = vmatpush1.msra.mxu0 0.0
    %5210 = vmatprep.subr.mxu0 0.0
    %5211 = vmatpush1.msra.mxu0 0.0
    %5212 = vmatprep.subr.mxu0 0.0
    %5213 = vmatpush1.msra.mxu0 0.0
    %5214 = vmatprep.subr.mxu0 0.0
    %5215 = vmatpush1.msra.mxu0 0.0
    %5216 = vmatprep.subr.mxu0 0.0
    %5217 = vmatpush1.msra.mxu0 0.0
    %5218 = vmatprep.subr.mxu0 0.0
    %5219 = vmatpush1.msra.mxu0 0.0
    %5220 = vmatprep.subr.mxu0 0.0
    %5221 = vmatpush1.msra.mxu0 0.0
    %5222 = vmatprep.subr.mxu0 0.0
    %5223 = vmatpush1.msra.mxu0 0.0
    %5224 = vmatprep.subr.mxu0 0.0
    %5225 = vmatpush1.msra.mxu0 0.0
    %5226 = vmatprep.mubr.f32.mxu0 0.0
    %5227 = vmatmul.mubr.f32.gmra.mrb[0].mxu0 %v5160
    %v5228 = vpop.f32.mrb[0].mxu0
    %v5229 = vadd.f32 %v5157, %v5228
    %v5230 = vpop.f32.mrb[0].mxu0
    %5231 = vdwg.mxu0
    %5232 = vrot.lane.b32.xlu0 %v2994, 64
    %v5233 = vpop.permute.xlu0 %5232
    %v5237 = vcombine.low %v4957, %v4991
    %v5240 = vsel %vm186, %v4151, 0
    %5242 = vmatprep.subr.mxu0 0.0
    %5243 = vmatpush1.msra.mxu0 %v5233
    %5244 = vmatprep.subr.mxu0 0.0
    %5245 = vmatpush1.msra.mxu0 0.0
    %5246 = vmatprep.subr.mxu0 0.0
    %5247 = vmatpush1.msra.mxu0 0.0
    %5248 = vmatprep.subr.mxu0 0.0
    %5249 = vmatpush1.msra.mxu0 0.0
    %5250 = vmatprep.subr.mxu0 0.0
    %5251 = vmatpush1.msra.mxu0 0.0
    %5252 = vmatprep.subr.mxu0 0.0
    %5253 = vmatpush1.msra.mxu0 0.0
    %5254 = vmatprep.subr.mxu0 0.0
    %5255 = vmatpush1.msra.mxu0 0.0
    %5256 = vmatprep.subr.mxu0 0.0
    %5257 = vmatpush1.msra.mxu0 0.0
    %5258 = vmatprep.subr.mxu0 0.0
    %5259 = vmatpush1.msra.mxu0 0.0
    %5260 = vmatprep.subr.mxu0 0.0
    %5261 = vmatpush1.msra.mxu0 0.0
    %5262 = vmatprep.subr.mxu0 0.0
    %5263 = vmatpush1.msra.mxu0 0.0
    %5264 = vmatprep.subr.mxu0 0.0
    %5265 = vmatpush1.msra.mxu0 0.0
    %5266 = vmatprep.subr.mxu0 0.0
    %5267 = vmatpush1.msra.mxu0 0.0
    %5268 = vmatprep.subr.mxu0 0.0
    %5269 = vmatpush1.msra.mxu0 0.0
    %5270 = vmatprep.subr.mxu0 0.0
    %5271 = vmatpush1.msra.mxu0 0.0
    %5272 = vmatprep.subr.mxu0 0.0
    %5273 = vmatpush1.msra.mxu0 0.0
    %5274 = vmatprep.subr.mxu0 0.0
    %5275 = vmatpush1.msra.mxu0 0.0
    %5276 = vmatprep.subr.mxu0 0.0
    %5277 = vmatpush1.msra.mxu0 0.0
    %5278 = vmatprep.subr.mxu0 0.0
    %5279 = vmatpush1.msra.mxu0 0.0
    %5280 = vmatprep.subr.mxu0 0.0
    %5281 = vmatpush1.msra.mxu0 0.0
    %5282 = vmatprep.subr.mxu0 0.0
    %5283 = vmatpush1.msra.mxu0 0.0
    %5284 = vmatprep.subr.mxu0 0.0
    %5285 = vmatpush1.msra.mxu0 0.0
    %5286 = vmatprep.subr.mxu0 0.0
    %5287 = vmatpush1.msra.mxu0 0.0
    %5288 = vmatprep.subr.mxu0 0.0
    %5289 = vmatpush1.msra.mxu0 0.0
    %5290 = vmatprep.subr.mxu0 0.0
    %5291 = vmatpush1.msra.mxu0 0.0
    %5292 = vmatprep.subr.mxu0 0.0
    %5293 = vmatpush1.msra.mxu0 0.0
    %5294 = vmatprep.subr.mxu0 0.0
    %5295 = vmatpush1.msra.mxu0 0.0
    %5296 = vmatprep.subr.mxu0 0.0
    %5297 = vmatpush1.msra.mxu0 0.0
    %5298 = vmatprep.subr.mxu0 0.0
    %5299 = vmatpush1.msra.mxu0 0.0
    %5300 = vmatprep.subr.mxu0 0.0
    %5301 = vmatpush1.msra.mxu0 0.0
    %5302 = vmatprep.subr.mxu0 0.0
    %5303 = vmatpush1.msra.mxu0 0.0
    %5304 = vmatprep.subr.mxu0 0.0
    %5305 = vmatpush1.msra.mxu0 0.0
    %5306 = vmatprep.mubr.f32.mxu0 0.0
    %5307 = vmatmul.mubr.f32.gmra.mrb[0].mxu0 %v5240
    %v5308 = vpop.f32.mrb[0].mxu0
    %v5309 = vadd.f32 %v5237, %v5308
    %v5310 = vpop.f32.mrb[0].mxu0
    %5311 = vdwg.mxu0
    %5313 = vrot.lane.b32.xlu0 %v5149, 8
    %v5314 = vpop.permute.xlu0 %5313
    %5317 = vrot.lane.b32.xlu0 %v5229, 16
    %v5318 = vpop.permute.xlu0 %5317
    %5321 = vrot.lane.b32.xlu0 %v5309, 24
    %v5322 = vpop.permute.xlu0 %5321
    %v5324 = vsel %vm186, %v5069, %v5314
    %v5325 = vsel %vm2583, %v5324, %v5318
    %v5326 = vsel %vm2585, %v5325, %v5322
    %5331 = vrot.lane.b32.xlu0 %v2857, 32
    %v5332 = vpop.permute.xlu0 %5331
    %5333 = vrot.lane.b32.xlu0 %v2858, 32
    %v5334 = vpop.permute.xlu0 %5333
    %5335 = vrot.lane.b32.xlu0 %v2859, 32
    %v5336 = vpop.permute.xlu0 %5335
    %5337 = vrot.lane.b32.xlu0 %v2860, 32
    %v5338 = vpop.permute.xlu0 %5337
    %5344 = vrot.lane.b32.xlu0 %v2914, 32
    %v5345 = vpop.permute.xlu0 %5344
    %v5348 = vsel %vm77, %v5326, 0
    %5350 = vmatprep.subr.mxu0 0.0
    %5351 = vmatpush1.msra.mxu0 %v5332
    %5352 = vmatprep.subr.mxu0 0.0
    %5353 = vmatpush1.msra.mxu0 %v5334
    %5354 = vmatprep.subr.mxu0 0.0
    %5355 = vmatpush1.msra.mxu0 %v5336
    %5356 = vmatprep.subr.mxu0 0.0
    %5357 = vmatpush1.msra.mxu0 %v5338
    %5358 = vmatprep.subr.mxu0 0.0
    %5359 = vmatpush1.msra.mxu0 0.0
    %5360 = vmatprep.subr.mxu0 0.0
    %5361 = vmatpush1.msra.mxu0 0.0
    %5362 = vmatprep.subr.mxu0 0.0
    %5363 = vmatpush1.msra.mxu0 0.0
    %5364 = vmatprep.subr.mxu0 0.0
    %5365 = vmatpush1.msra.mxu0 0.0
    %5366 = vmatprep.subr.mxu0 0.0
    %5367 = vmatpush1.msra.mxu0 0.0
    %5368 = vmatprep.subr.mxu0 0.0
    %5369 = vmatpush1.msra.mxu0 0.0
    %5370 = vmatprep.subr.mxu0 0.0
    %5371 = vmatpush1.msra.mxu0 0.0
    %5372 = vmatprep.subr.mxu0 0.0
    %5373 = vmatpush1.msra.mxu0 0.0
    %5374 = vmatprep.subr.mxu0 0.0
    %5375 = vmatpush1.msra.mxu0 0.0
    %5376 = vmatprep.subr.mxu0 0.0
    %5377 = vmatpush1.msra.mxu0 0.0
    %5378 = vmatprep.subr.mxu0 0.0
    %5379 = vmatpush1.msra.mxu0 0.0
    %5380 = vmatprep.subr.mxu0 0.0
    %5381 = vmatpush1.msra.mxu0 0.0
    %5382 = vmatprep.subr.mxu0 0.0
    %5383 = vmatpush1.msra.mxu0 0.0
    %5384 = vmatprep.subr.mxu0 0.0
    %5385 = vmatpush1.msra.mxu0 0.0
    %5386 = vmatprep.subr.mxu0 0.0
    %5387 = vmatpush1.msra.mxu0 0.0
    %5388 = vmatprep.subr.mxu0 0.0
    %5389 = vmatpush1.msra.mxu0 0.0
    %5390 = vmatprep.subr.mxu0 0.0
    %5391 = vmatpush1.msra.mxu0 0.0
    %5392 = vmatprep.subr.mxu0 0.0
    %5393 = vmatpush1.msra.mxu0 0.0
    %5394 = vmatprep.subr.mxu0 0.0
    %5395 = vmatpush1.msra.mxu0 0.0
    %5396 = vmatprep.subr.mxu0 0.0
    %5397 = vmatpush1.msra.mxu0 0.0
    %5398 = vmatprep.subr.mxu0 0.0
    %5399 = vmatpush1.msra.mxu0 0.0
    %5400 = vmatprep.subr.mxu0 0.0
    %5401 = vmatpush1.msra.mxu0 0.0
    %5402 = vmatprep.subr.mxu0 0.0
    %5403 = vmatpush1.msra.mxu0 0.0
    %5404 = vmatprep.subr.mxu0 0.0
    %5405 = vmatpush1.msra.mxu0 0.0
    %5406 = vmatprep.subr.mxu0 0.0
    %5407 = vmatpush1.msra.mxu0 0.0
    %5408 = vmatprep.subr.mxu0 0.0
    %5409 = vmatpush1.msra.mxu0 0.0
    %5410 = vmatprep.subr.mxu0 0.0
    %5411 = vmatpush1.msra.mxu0 0.0
    %5412 = vmatprep.subr.mxu0 0.0
    %5413 = vmatpush1.msra.mxu0 0.0
    %5414 = vmatprep.mubr.f32.mxu0 0.0
    %5415 = vmatmul.mubr.f32.gmra.mrb[0].mxu0 %v5348
    %v5416 = vpop.f32.mrb[0].mxu0
    %v5417 = vadd.f32 %v5345, %v5416
    %v5418 = vpop.f32.mrb[0].mxu0
    %5419 = vdwg.mxu0
    %v5420 = vadd.f32 %v2855, %v5417
    %v5421 = vsel %vm77, %v5420, 0.0
    %5422 = vadd.xlane.f32.xlu0 %v5421
    %v5423 = vpop.xlane.xlu0 %5422
    %v5424 = vmul.f32 %v5423, %v81
    %v5425 = vsub.f32 %v5420, %v5424
    %v5426 = vmul.f32 %v5425, %v5425
    %v5427 = vsel %vm77, %v5426, 0.0
    %5428 = vadd.xlane.f32.xlu0 %v5427
    %v5429 = vpop.xlane.xlu0 %5428
    %v5430 = vmul.f32 %v5429, %v81
    %v5431 = vadd.f32 %v5430, 1e-05
    %v5432 = vrsqrt.pop %v5431
    %v5433 = vmul.f32 %v5425, %v5432
    %5434 = vrot.lane.b32.xlu0 %v2904, 64
    %v5435 = vpop.permute.xlu0 %5434
    %v5437 = vmul.f32 %v5433, %v5435
    %5438 = vrot.lane.b32.xlu0 %v2904, 32
    %v5439 = vpop.permute.xlu0 %5438
    %v5441 = vadd.f32 %v5437, %v5439
    %v5442 = vlaneseq
    %v5443 = vshrl.u32 %v5442, 7
    %v5444 = vsub.s32 0, %v5443
    %v5445 = vrot.slane %v2883, %v5444
    %v5447 = vsel %vm77, %v5441, 0
    %5449 = vmatprep.subr.mxu0 0.0
    %5450 = vmatpush1.msra.mxu0 %v2861
    %5451 = vmatprep.subr.mxu0 0.0
    %5452 = vmatpush1.msra.mxu0 %v2862
    %5453 = vmatprep.subr.mxu0 0.0
    %5454 = vmatpush1.msra.mxu0 %v2863
    %5455 = vmatprep.subr.mxu0 0.0
    %5456 = vmatpush1.msra.mxu0 %v2864
    %5457 = vmatprep.subr.mxu0 0.0
    %5458 = vmatpush1.msra.mxu0 0.0
    %5459 = vmatprep.subr.mxu0 0.0
    %5460 = vmatpush1.msra.mxu0 0.0
    %5461 = vmatprep.subr.mxu0 0.0
    %5462 = vmatpush1.msra.mxu0 0.0
    %5463 = vmatprep.subr.mxu0 0.0
    %5464 = vmatpush1.msra.mxu0 0.0
    %5465 = vmatprep.subr.mxu0 0.0
    %5466 = vmatpush1.msra.mxu0 0.0
    %5467 = vmatprep.subr.mxu0 0.0
    %5468 = vmatpush1.msra.mxu0 0.0
    %5469 = vmatprep.subr.mxu0 0.0
    %5470 = vmatpush1.msra.mxu0 0.0
    %5471 = vmatprep.subr.mxu0 0.0
    %5472 = vmatpush1.msra.mxu0 0.0
    %5473 = vmatprep.subr.mxu0 0.0
    %5474 = vmatpush1.msra.mxu0 0.0
    %5475 = vmatprep.subr.mxu0 0.0
    %5476 = vmatpush1.msra.mxu0 0.0
    %5477 = vmatprep.subr.mxu0 0.0
    %5478 = vmatpush1.msra.mxu0 0.0
    %5479 = vmatprep.subr.mxu0 0.0
    %5480 = vmatpush1.msra.mxu0 0.0
    %5481 = vmatprep.subr.mxu0 0.0
    %5482 = vmatpush1.msra.mxu0 0.0
    %5483 = vmatprep.subr.mxu0 0.0
    %5484 = vmatpush1.msra.mxu0 0.0
    %5485 = vmatprep.subr.mxu0 0.0
    %5486 = vmatpush1.msra.mxu0 0.0
    %5487 = vmatprep.subr.mxu0 0.0
    %5488 = vmatpush1.msra.mxu0 0.0
    %5489 = vmatprep.subr.mxu0 0.0
    %5490 = vmatpush1.msra.mxu0 0.0
    %5491 = vmatprep.subr.mxu0 0.0
    %5492 = vmatpush1.msra.mxu0 0.0
    %5493 = vmatprep.subr.mxu0 0.0
    %5494 = vmatpush1.msra.mxu0 0.0
    %5495 = vmatprep.subr.mxu0 0.0
    %5496 = vmatpush1.msra.mxu0 0.0
    %5497 = vmatprep.subr.mxu0 0.0
    %5498 = vmatpush1.msra.mxu0 0.0
    %5499 = vmatprep.subr.mxu0 0.0
    %5500 = vmatpush1.msra.mxu0 0.0
    %5501 = vmatprep.subr.mxu0 0.0
    %5502 = vmatpush1.msra.mxu0 0.0
    %5503 = vmatprep.subr.mxu0 0.0
    %5504 = vmatpush1.msra.mxu0 0.0
    %5505 = vmatprep.subr.mxu0 0.0
    %5506 = vmatpush1.msra.mxu0 0.0
    %5507 = vmatprep.subr.mxu0 0.0
    %5508 = vmatpush1.msra.mxu0 0.0
    %5509 = vmatprep.subr.mxu0 0.0
    %5510 = vmatpush1.msra.mxu0 0.0
    %5511 = vmatprep.subr.mxu0 0.0
    %5512 = vmatpush1.msra.mxu0 0.0
    %5513 = vmatprep.mubr.f32.mxu0 0.0
    %5514 = vmatmul.mubr.f32.gmra.mrb[0].mxu0 %v5447
    %v5515 = vpop.f32.mrb[0].mxu0
    %v5516 = vadd.f32 %v5445, %v5515
    %v5517 = vpop.f32.mrb[0].mxu0
    %5518 = vdwg.mxu0
    %v5519 = vmax.f32 %v5516, 0.0
    %5520 = vmatprep.subr.mxu0 0.0
    %5521 = vmatpush1.msra.mxu0 %v2865
    %5522 = vmatprep.subr.mxu0 0.0
    %5523 = vmatpush1.msra.mxu0 %v2866
    %5524 = vmatprep.subr.mxu0 0.0
    %5525 = vmatpush1.msra.mxu0 %v2867
    %5526 = vmatprep.subr.mxu0 0.0
    %5527 = vmatpush1.msra.mxu0 %v2868
    %5528 = vmatprep.subr.mxu0 0.0
    %5529 = vmatpush1.msra.mxu0 %v2869
    %5530 = vmatprep.subr.mxu0 0.0
    %5531 = vmatpush1.msra.mxu0 %v2870
    %5532 = vmatprep.subr.mxu0 0.0
    %5533 = vmatpush1.msra.mxu0 %v2871
    %5534 = vmatprep.subr.mxu0 0.0
    %5535 = vmatpush1.msra.mxu0 %v2872
    %5536 = vmatprep.subr.mxu0 0.0
    %5537 = vmatpush1.msra.mxu0 %v2873
    %5538 = vmatprep.subr.mxu0 0.0
    %5539 = vmatpush1.msra.mxu0 %v2874
    %5540 = vmatprep.subr.mxu0 0.0
    %5541 = vmatpush1.msra.mxu0 %v2875
    %5542 = vmatprep.subr.mxu0 0.0
    %5543 = vmatpush1.msra.mxu0 %v2876
    %5544 = vmatprep.subr.mxu0 0.0
    %5545 = vmatpush1.msra.mxu0 %v2877
    %5546 = vmatprep.subr.mxu0 0.0
    %5547 = vmatpush1.msra.mxu0 %v2878
    %5548 = vmatprep.subr.mxu0 0.0
    %5549 = vmatpush1.msra.mxu0 %v2879
    %5550 = vmatprep.subr.mxu0 0.0
    %5551 = vmatpush1.msra.mxu0 %v2880
    %5552 = vmatprep.subr.mxu0 0.0
    %5553 = vmatpush1.msra.mxu0 0.0
    %5554 = vmatprep.subr.mxu0 0.0
    %5555 = vmatpush1.msra.mxu0 0.0
    %5556 = vmatprep.subr.mxu0 0.0
    %5557 = vmatpush1.msra.mxu0 0.0
    %5558 = vmatprep.subr.mxu0 0.0
    %5559 = vmatpush1.msra.mxu0 0.0
    %5560 = vmatprep.subr.mxu0 0.0
    %5561 = vmatpush1.msra.mxu0 0.0
    %5562 = vmatprep.subr.mxu0 0.0
    %5563 = vmatpush1.msra.mxu0 0.0
    %5564 = vmatprep.subr.mxu0 0.0
    %5565 = vmatpush1.msra.mxu0 0.0
    %5566 = vmatprep.subr.mxu0 0.0
    %5567 = vmatpush1.msra.mxu0 0.0
    %5568 = vmatprep.subr.mxu0 0.0
    %5569 = vmatpush1.msra.mxu0 0.0
    %5570 = vmatprep.subr.mxu0 0.0
    %5571 = vmatpush1.msra.mxu0 0.0
    %5572 = vmatprep.subr.mxu0 0.0
    %5573 = vmatpush1.msra.mxu0 0.0
    %5574 = vmatprep.subr.mxu0 0.0
    %5575 = vmatpush1.msra.mxu0 0.0
    %5576 = vmatprep.subr.mxu0 0.0
    %5577 = vmatpush1.msra.mxu0 0.0
    %5578 = vmatprep.subr.mxu0 0.0
    %5579 = vmatpush1.msra.mxu0 0.0
    %5580 = vmatprep.subr.mxu0 0.0
    %5581 = vmatpush1.msra.mxu0 0.0
    %5582 = vmatprep.subr.mxu0 0.0
    %5583 = vmatpush1.msra.mxu0 0.0
    %5584 = vmatprep.mubr.f32.mxu0 0.0
    %5585 = vmatmul.mubr.f32.gmra.mrb[0].mxu0 %v5519
    %v5586 = vpop.f32.mrb[0].mxu0
    %v5587 = vadd.f32 0.0, %v5586
    %v5588 = vpop.f32.mrb[0].mxu0
    %5589 = vdwg.mxu0
    %v5590 = vadd.f32 %v5420, %v5587
    %v5591 = vlaneseq
    %v5592 = vshrl.u32 %v5591, 7
    %v5593 = vsub.s32 0, %v5592
    %v5594 = vrot.slane %v2884, %v5593
    %v5595 = vadd.f32 %v5590, %v5594
    %v5596 = vld [vmem:[#allocation2 + $0xc3] sm:$0x1]
    %v5597 = vsel %vm77, %v5595, 0.0
    %5598 = vadd.xlane.f32.xlu0 %v5597
    %v5599 = vpop.xlane.xlu0 %5598
    %v5600 = vmul.f32 %v5599, %v81
    %v5601 = vsub.f32 %v5595, %v5600
    %v5602 = vmul.f32 %v5601, %v5601
    %v5603 = vsel %vm77, %v5602, 0.0
    %5604 = vadd.xlane.f32.xlu0 %v5603
    %v5605 = vpop.xlane.xlu0 %5604
    %v5606 = vmul.f32 %v5605, %v81
    %v5607 = vadd.f32 %v5606, 1e-05
    %v5608 = vrsqrt.pop %v5607
    %v5609 = vmul.f32 %v5601, %v5608
    %v5610 = vlaneseq
    %v5611 = vshrl.u32 %v5610, 7
    %v5612 = vsub.s32 0, %v5611
    %v5613 = vrot.slane %v5596, %v5612
    %5615 = vrot.lane.b32.xlu0 %v5613, 96
    %v5616 = vpop.permute.xlu0 %5615
    %v5618 = vmul.f32 %v5609, %v5616
    %5619 = vrot.lane.b32.xlu0 %v5613, 64
    %v5620 = vpop.permute.xlu0 %5619
    %v5622 = vadd.f32 %v5618, %v5620
    %5623 = vst.msk [vmem:[#allocation5] sm:$0xff] %vm77, %v5622
    // Predicated region
    $region18: #{tpu_custom_call.1} parent=1 // pred_check
      _
    $region19: #{tpu_custom_call.1} parent=1 // pred_check_branch
      %5625 = sbr.rel (0) target = $region21
    $region20: #{tpu_custom_call.1} parent=1 // pred_region
      %s5627 = ssub.s32 128, 128
      %5628 = vsyncadd [#allocation4], %s5627
      %s5630 = sshll.u32 [#allocation5], 4
      %s5631 = int_to_ptr.vmem [resolvable:$true] %s5630
      %5633 = dma.vmem_to_hbm [thread:$0]  %s5631, 128, %s3, [#allocation4]
    $region21: #{tpu_custom_call.1} parent=1 // pred_fallthru
      _
    // Predicated region
    $region22: #{tpu_custom_call.1} parent=1 // pred_check
      _
    $region23: #{tpu_custom_call.1} parent=1 // pred_check_branch
      %5635 = sbr.rel (0) target = $region25
    $region24: #{tpu_custom_call.1} parent=1 // pred_region
      %5636 = dma.done [#allocation4], 128
    $region25: #{tpu_custom_call.1} parent=1 // pred_fallthru
      _
    %5637 = vsyncpa [#allocation3], 1
    %5638 = vsyncpa [#allocation4], 1

</llo_original>
